<compile_context>
chip_gen: v6e
topology: v6e:2x2x1
jax: 0.10.0
libtpu: 0.0.40
codegen_flags: <defaults>
</compile_context>

<pallas_src>
import functools

import jax
import jax.numpy as jnp
from jax.experimental import pallas as pl
from jax.experimental.pallas import tpu as pltpu


# ---------------------------------------------------------------------------
# Pallas kernel 1a: single-K-tile fused matmul + bias + LeakyReLU
# ---------------------------------------------------------------------------
def _matmul_bias_act_1k_kernel(x_ref, w_ref, b_ref, o_ref, *, leaky_slope):
    y = jnp.dot(x_ref[...], w_ref[...], preferred_element_type=jnp.float32)
    y = y + b_ref[...]
    if leaky_slope is not None:
        y = jnp.where(y > 0, y, leaky_slope * y)
    o_ref[...] = y.astype(o_ref.dtype)


# ---------------------------------------------------------------------------
# Pallas kernel 1b: multi-K-tile matmul with f32 accumulator (fallback)
# ---------------------------------------------------------------------------
def _matmul_bias_act_kernel(x_ref, w_ref, b_ref, o_ref, acc_ref, *, leaky_slope):
    k = pl.program_id(1)

    @pl.when(k == 0)
    def _init():
        acc_ref[...] = jnp.zeros_like(acc_ref)

    acc_ref[...] += jnp.dot(
        x_ref[...], w_ref[...], preferred_element_type=jnp.float32
    )

    @pl.when(k == pl.num_programs(1) - 1)
    def _finalize():
        y = acc_ref[...] + b_ref[...]
        if leaky_slope is not None:
            y = jnp.where(y > 0, y, leaky_slope * y)
        o_ref[...] = y.astype(o_ref.dtype)


def _pick_k_tile(K, max_tk=2048):
    """Largest K tile <= max_tk that divides K (multiple of 128 when tiled)."""
    if K <= max_tk:
        return K
    tk = (max_tk // 128) * 128
    while tk > 128 and K % tk != 0:
        tk -= 128
    return tk if K % tk == 0 else K


def _vmem_estimate(tm, tk, n):
    """Conservative VMEM bytes: double-buffered bf16 ins/outs + f32 acc/bias."""
    x = 2 * tm * tk * 2
    w = 2 * tk * n * 2
    b = 2 * n * 4
    o = 2 * tm * n * 2
    acc = tm * n * 4
    return x + w + b + o + acc


def matmul_bias_act(x, w, b, *, leaky_slope=None, out_dtype=jnp.bfloat16,
                    vmem_budget=12 << 20):
    """x: (M, K) bf16, w: (K, N) bf16, b: (N,) f32 -> (M, N) out_dtype."""
    M, K = x.shape
    K2, N = w.shape
    assert K == K2 and b.shape == (N,)
    b2 = b.reshape(1, N).astype(jnp.float32)

    # Prefer a single K tile: weight BlockSpec index is constant -> resident.
    tk = K if K <= 4096 else _pick_k_tile(K, max_tk=2048)
    n_k = K // tk

    # Largest M tile within the VMEM budget (no vmem_limit override needed).
    tm = 8
    for cand in (1024, 512, 256, 128, 64, 32, 16, 8):
        if _vmem_estimate(cand, tk, N) <= vmem_budget:
            tm = cand
            break
    tm = min(tm, M)

    if n_k == 1:
        kernel = functools.partial(_matmul_bias_act_1k_kernel,
                                   leaky_slope=leaky_slope)
        return pl.pallas_call(
            kernel,
            out_shape=jax.ShapeDtypeStruct((M, N), out_dtype),
            grid_spec=pltpu.PrefetchScalarGridSpec(
                num_scalar_prefetch=0,
                grid=(pl.cdiv(M, tm),),
                in_specs=[
                    pl.BlockSpec((tm, K), lambda m: (m, 0)),   # patches tile
                    pl.BlockSpec((K, N), lambda m: (0, 0)),    # weight (resident)
                    pl.BlockSpec((1, N), lambda m: (0, 0)),    # bias (resident)
                ],
                out_specs=pl.BlockSpec((tm, N), lambda m: (m, 0)),
            ),
            compiler_params=pltpu.CompilerParams(
                dimension_semantics=("parallel",)),
        )(x, w, b2)

    kernel = functools.partial(_matmul_bias_act_kernel, leaky_slope=leaky_slope)
    return pl.pallas_call(
        kernel,
        out_shape=jax.ShapeDtypeStruct((M, N), out_dtype),
        grid_spec=pltpu.PrefetchScalarGridSpec(
            num_scalar_prefetch=0,
            grid=(pl.cdiv(M, tm), n_k),
            in_specs=[
                pl.BlockSpec((tm, tk), lambda m, k: (m, k)),
                pl.BlockSpec((tk, N), lambda m, k: (k, 0)),
                pl.BlockSpec((1, N), lambda m, k: (0, 0)),
            ],
            out_specs=pl.BlockSpec((tm, N), lambda m, k: (m, 0)),
            scratch_shapes=[pltpu.VMEM((tm, N), jnp.float32)],
        ),
        compiler_params=pltpu.CompilerParams(
            dimension_semantics=("parallel", "arbitrary")),
    )(x, w, b2)


# ---------------------------------------------------------------------------
# Pallas kernel 2: final 1-output conv as a VPU reduction (no MXU, N=1)
# ---------------------------------------------------------------------------
def _reduce_head_kernel(x_ref, w_ref, b_ref, o_ref):
    xf = x_ref[...].astype(jnp.float32)                       # (TB, K)
    y = jnp.sum(xf * w_ref[...], axis=1, keepdims=True) + b_ref[...]
    o_ref[...] = y


def conv_head(x_flat, w_flat, b, *, tb_target=512):
    """x_flat: (B, K) bf16, w_flat: (1, K) f32, b: (1,) f32 -> (B, 1) f32."""
    Bn, K = x_flat.shape
    tb = min(tb_target, Bn)
    return pl.pallas_call(
        _reduce_head_kernel,
        out_shape=jax.ShapeDtypeStruct((Bn, 1), jnp.float32),
        grid_spec=pltpu.PrefetchScalarGridSpec(
            num_scalar_prefetch=0,
            grid=(pl.cdiv(Bn, tb),),
            in_specs=[
                pl.BlockSpec((tb, K), lambda i: (i, 0)),
                pl.BlockSpec((1, K), lambda i: (0, 0)),
                pl.BlockSpec((1, 1), lambda i: (0, 0)),
            ],
            out_specs=pl.BlockSpec((tb, 1), lambda i: (i, 0)),
        ),
        compiler_params=pltpu.CompilerParams(dimension_semantics=("parallel",)),
    )(x_flat, w_flat, b.reshape(1, 1))


# ---------------------------------------------------------------------------
# Conv2d via NHWC patch extraction (XLA glue) + Pallas fused matmul
# ---------------------------------------------------------------------------
def _extract_patches_nhwc(x, kh, kw, stride, pad):
    """x: (B, H, W, C) -> (B*Ho*Wo, kh*kw*C); feature idx = (ki*kw + kj)*C + c."""
    B, H, W, C = x.shape
    if pad:
        x = jnp.pad(x, ((0, 0), (pad, pad), (pad, pad), (0, 0)))
    Ho = (H + 2 * pad - kh) // stride + 1
    Wo = (W + 2 * pad - kw) // stride + 1
    cols = []
    for ki in range(kh):
        for kj in range(kw):
            cols.append(
                x[:, ki:ki + stride * (Ho - 1) + 1:stride,
                     kj:kj + stride * (Wo - 1) + 1:stride, :]
            )  # (B, Ho, Wo, C)
    patches = jnp.concatenate(cols, axis=-1)        # (B, Ho, Wo, kh*kw*C)
    return patches.reshape(B * Ho * Wo, kh * kw * C), Ho, Wo


def conv2d_nhwc(x, w_mat, b, *, kh, kw, stride, pad, leaky_slope, out_dtype):
    """x: (B, H, W, Cin) bf16, w_mat: (kh*kw*Cin, Cout) bf16 -> (B, Ho, Wo, Cout)."""
    B = x.shape[0]
    cout = w_mat.shape[1]
    patches, Ho, Wo = _extract_patches_nhwc(x, kh, kw, stride, pad)
    y = matmul_bias_act(patches, w_mat, b,
                        leaky_slope=leaky_slope, out_dtype=out_dtype)
    return y.reshape(B, Ho, Wo, cout)   # free reshape: rows are (b, ho, wo)


# ---------------------------------------------------------------------------
# Discriminator parameters + forward
# ---------------------------------------------------------------------------
def init_discriminator_params(key, image_size):
    C = image_size
    shapes = [
        (C, 1, 4, 4),
        (2 * C, C, 4, 4),
        (4 * C, 2 * C, 4, 4),
        (8 * C, 4 * C, 4, 4),
        (1, 8 * C, 4, 4),
    ]
    params = []
    for s in shapes:
        key, kw_, kb_ = jax.random.split(key, 3)
        fan_in = s[1] * s[2] * s[3]
        bound = 1.0 / (fan_in ** 0.5)  # matches PyTorch default uniform bound
        w = jax.random.uniform(kw_, s, jnp.float32, -bound, bound)
        b = jax.random.uniform(kb_, (s[0],), jnp.float32, -bound, bound)
        params.append((w, b))
    return params


def prepare_params(raw_params):
    """PyTorch-layout (Cout, Cin, KH, KW) f32 -> kernel-friendly bf16/f32 mats."""
    prepped = []
    for idx, (w, b) in enumerate(raw_params):
        cout, cin, kh, kw_ = w.shape
        if idx < 4:
            # feature ordering (ki, kj, c) to match _extract_patches_nhwc
            wm = w.transpose(2, 3, 1, 0).reshape(kh * kw_ * cin, cout)
            prepped.append((wm.astype(jnp.bfloat16), b.astype(jnp.float32)))
        else:
            # head: flatten in NHWC (h, w, c) order; keep f32 for the reduction
            wf = w.transpose(0, 2, 3, 1).reshape(1, kh * kw_ * cin)
            prepped.append((wf.astype(jnp.float32), b.astype(jnp.float32)))
    return prepped


def discriminator_forward(x_nchw, prepped):
    # one-time layout change NCHW -> NHWC, activations in bf16 on the hot path
    x = jnp.transpose(x_nchw, (0, 2, 3, 1)).astype(jnp.bfloat16)
    # layers 1-4: Conv2d(k=4, s=2, p=1) + LeakyReLU(0.1)
    for i in range(4):
        w_mat, b = prepped[i]
        x = conv2d_nhwc(x, w_mat, b, kh=4, kw=4, stride=2, pad=1,
                        leaky_slope=0.1, out_dtype=jnp.bfloat16)
    # last: Conv2d(8C -> 1, k=4, s=1, valid) on a 4x4 map == full flatten + dot
    assert x.shape[1] == 4 and x.shape[2] == 4, x.shape
    w_flat, b = prepped[4]
    B = x.shape[0]
    y = conv_head(x.reshape(B, -1), w_flat, b)      # (B, 1) f32
    return y.reshape(B, 1, 1, 1)


# ---------------------------------------------------------------------------
# Pure-JAX reference (lax conv, bf16-matched rounding) to validate the kernels
# ---------------------------------------------------------------------------
def _reference_forward(x_nchw, raw_params):
    def q(v):  # same bf16 rounding the Pallas path applies to operands
        return v.astype(jnp.bfloat16).astype(jnp.float32)

    def conv(x, w, stride, pad):
        return jax.lax.conv_general_dilated(
            x, w, window_strides=(stride, stride),
            padding=[(pad, pad), (pad, pad)],
            dimension_numbers=("NCHW", "OIHW", "NCHW"))

    x = q(x_nchw)
    for i in range(4):
        w, b = raw_params[i]
        y = conv(x, q(w), 2, 1) + b.reshape(1, -1, 1, 1)
        y = jnp.where(y > 0, y, 0.1 * y)
        x = q(y)
    w, b = raw_params[4]
    return conv(x, w.astype(jnp.float32), 1, 0) + b.reshape(1, -1, 1, 1)


if __name__ == "__main__":
    key = jax.random.PRNGKey(0)
    k_param, k_input = jax.random.split(key)

    image_size = 8   # channel base (small for test); real DCGAN uses 64
    B = 2
    # DCGAN discriminator geometry requires 64x64 spatial input
    raw_params = init_discriminator_params(k_param, image_size)
    prepped = prepare_params(raw_params)
    x = jax.random.normal(k_input, (B, 1, 64, 64), dtype=jnp.float32)

    fwd = jax.jit(discriminator_forward)
    out = jax.block_until_ready(fwd(x, prepped))
    assert out.shape == (B, 1, 1, 1), out.shape

    ref = jax.block_until_ready(_reference_forward(x, raw_params))
    assert jnp.allclose(out, ref, atol=1e-2, rtol=1e-2), (out, ref)

    print("KERNEL_OK")
</pallas_src>

<mosaic_0001>
module attributes {stable_mosaic.version = 11 : i64} {
  func.func @_matmul_bias_act_1k_kernel(%arg0: i32, %arg1: memref<1024x16xbf16, #tpu.memory_space<vmem>>, %arg2: memref<16x8xbf16, #tpu.memory_space<vmem>>, %arg3: memref<1x8xf32, #tpu.memory_space<vmem>>, %arg4: memref<1024x8xbf16, #tpu.memory_space<vmem>>) attributes {dimension_semantics = [#tpu.dimension_semantics<parallel>], iteration_bounds = array<i64: 2>, scalar_prefetch = 0 : i64, scratch_operands = 0 : i64, tpu.core_type = #tpu.core_type<tc>, window_params = [{transform_indices = @transform_0, window_bounds = array<i64: 1024, 16>}, {pipeline_mode = #tpu.pipeline_mode<synchronous>, transform_indices = @transform_1, window_bounds = array<i64: 16, 8>}, {pipeline_mode = #tpu.pipeline_mode<synchronous>, transform_indices = @transform_2, window_bounds = array<i64: 1, 8>}, {transform_indices = @transform_3, window_bounds = array<i64: 1024, 8>}]} {
    %c0 = arith.constant 0 : index
    %c0_0 = arith.constant 0 : index
    %0 = vector.load %arg1[%c0, %c0_0] : memref<1024x16xbf16, #tpu.memory_space<vmem>>, vector<1024x16xbf16>
    %c0_1 = arith.constant 0 : index
    %c0_2 = arith.constant 0 : index
    %1 = vector.load %arg2[%c0_1, %c0_2] : memref<16x8xbf16, #tpu.memory_space<vmem>>, vector<16x8xbf16>
    %cst = arith.constant dense<0.000000e+00> : vector<1024x8xf32>
    %2 = tpu.matmul %0, %1, %cst {dimension_numbers = #tpu.dot_dimension_numbers<[1], [0], [0], [1], [0, 0, 1, 1], [], []>} : vector<1024x16xbf16>, vector<16x8xbf16>, vector<1024x8xf32> -> vector<1024x8xf32>
    %c0_3 = arith.constant 0 : index
    %c0_4 = arith.constant 0 : index
    %3 = vector.load %arg3[%c0_3, %c0_4] : memref<1x8xf32, #tpu.memory_space<vmem>>, vector<1x8xf32>
    %4 = vector.broadcast %3 : vector<1x8xf32> to vector<1024x8xf32>
    %5 = arith.addf %2, %4 : vector<1024x8xf32>
    %cst_5 = arith.constant 0.000000e+00 : f32
    %6 = vector.broadcast %cst_5 : f32 to vector<1024x8xf32>
    %7 = arith.cmpf ogt, %5, %6 : vector<1024x8xf32>
    %cst_6 = arith.constant 1.000000e-01 : f32
    %8 = vector.broadcast %cst_6 : f32 to vector<1024x8xf32>
    %9 = arith.mulf %8, %5 : vector<1024x8xf32>
    %10 = arith.select %7, %5, %9 : vector<1024x8xi1>, vector<1024x8xf32>
    %11 = arith.truncf %10 : vector<1024x8xf32> to vector<1024x8xbf16>
    %c0_7 = arith.constant 0 : index
    %c0_8 = arith.constant 0 : index
    %12 = vector.load %arg4[%c0_7, %c0_8] : memref<1024x8xbf16, #tpu.memory_space<vmem>>, vector<1024x8xbf16>
    tpu.vector_store %arg4[%c0_7, %c0_8], %11 {strides = array<i32>} : memref<1024x8xbf16, #tpu.memory_space<vmem>>, vector<1024x8xbf16>,
    return
  }
  func.func @transform_0(%arg0: i32) -> (i32, i32) {
    %c0_i32 = arith.constant 0 : i32
    %c0_i32_0 = arith.constant 0 : i32
    return %arg0, %c0_i32 : i32, i32
  }
  func.func @transform_1(%arg0: i32) -> (i32, i32) {
    %c0_i32 = arith.constant 0 : i32
    %c0_i32_0 = arith.constant 0 : i32
    %c0_i32_1 = arith.constant 0 : i32
    return %c0_i32, %c0_i32_0 : i32, i32
  }
  func.func @transform_2(%arg0: i32) -> (i32, i32) {
    %c0_i32 = arith.constant 0 : i32
    %c0_i32_0 = arith.constant 0 : i32
    %c0_i32_1 = arith.constant 0 : i32
    return %c0_i32, %c0_i32_0 : i32, i32
  }
  func.func @transform_3(%arg0: i32) -> (i32, i32) {
    %c0_i32 = arith.constant 0 : i32
    %c0_i32_0 = arith.constant 0 : i32
    return %arg0, %c0_i32 : i32, i32
  }
}

module attributes {stable_mosaic.version = 11 : i64} {
  func.func @_matmul_bias_act_1k_kernel(%arg0: i32, %arg1: memref<512x128xbf16, #tpu.memory_space<vmem>>, %arg2: memref<128x16xbf16, #tpu.memory_space<vmem>>, %arg3: memref<1x16xf32, #tpu.memory_space<vmem>>, %arg4: memref<512x16xbf16, #tpu.memory_space<vmem>>) attributes {dimension_semantics = [#tpu.dimension_semantics<parallel>], iteration_bounds = array<i64: 1>, scalar_prefetch = 0 : i64, scratch_operands = 0 : i64, tpu.core_type = #tpu.core_type<tc>, window_params = [{transform_indices = @transform_0, window_bounds = array<i64: 512, 128>}, {pipeline_mode = #tpu.pipeline_mode<synchronous>, transform_indices = @transform_1, window_bounds = array<i64: 128, 16>}, {pipeline_mode = #tpu.pipeline_mode<synchronous>, transform_indices = @transform_2, window_bounds = array<i64: 1, 16>}, {transform_indices = @transform_3, window_bounds = array<i64: 512, 16>}]} {
    %c0 = arith.constant 0 : index
    %c0_0 = arith.constant 0 : index
    %0 = vector.load %arg1[%c0, %c0_0] : memref<512x128xbf16, #tpu.memory_space<vmem>>, vector<512x128xbf16>
    %c0_1 = arith.constant 0 : index
    %c0_2 = arith.constant 0 : index
    %1 = vector.load %arg2[%c0_1, %c0_2] : memref<128x16xbf16, #tpu.memory_space<vmem>>, vector<128x16xbf16>
    %cst = arith.constant dense<0.000000e+00> : vector<512x16xf32>
    %2 = tpu.matmul %0, %1, %cst {dimension_numbers = #tpu.dot_dimension_numbers<[1], [0], [0], [1], [0, 0, 1, 1], [], []>} : vector<512x128xbf16>, vector<128x16xbf16>, vector<512x16xf32> -> vector<512x16xf32>
    %c0_3 = arith.constant 0 : index
    %c0_4 = arith.constant 0 : index
    %3 = vector.load %arg3[%c0_3, %c0_4] : memref<1x16xf32, #tpu.memory_space<vmem>>, vector<1x16xf32>
    %4 = vector.broadcast %3 : vector<1x16xf32> to vector<512x16xf32>
    %5 = arith.addf %2, %4 : vector<512x16xf32>
    %cst_5 = arith.constant 0.000000e+00 : f32
    %6 = vector.broadcast %cst_5 : f32 to vector<512x16xf32>
    %7 = arith.cmpf ogt, %5, %6 : vector<512x16xf32>
    %cst_6 = arith.constant 1.000000e-01 : f32
    %8 = vector.broadcast %cst_6 : f32 to vector<512x16xf32>
    %9 = arith.mulf %8, %5 : vector<512x16xf32>
    %10 = arith.select %7, %5, %9 : vector<512x16xi1>, vector<512x16xf32>
    %11 = arith.truncf %10 : vector<512x16xf32> to vector<512x16xbf16>
    %c0_7 = arith.constant 0 : index
    %c0_8 = arith.constant 0 : index
    %12 = vector.load %arg4[%c0_7, %c0_8] : memref<512x16xbf16, #tpu.memory_space<vmem>>, vector<512x16xbf16>
    tpu.vector_store %arg4[%c0_7, %c0_8], %11 {strides = array<i32>} : memref<512x16xbf16, #tpu.memory_space<vmem>>, vector<512x16xbf16>,
    return
  }
  func.func @transform_0(%arg0: i32) -> (i32, i32) {
    %c0_i32 = arith.constant 0 : i32
    %c0_i32_0 = arith.constant 0 : i32
    return %arg0, %c0_i32 : i32, i32
  }
  func.func @transform_1(%arg0: i32) -> (i32, i32) {
    %c0_i32 = arith.constant 0 : i32
    %c0_i32_0 = arith.constant 0 : i32
    %c0_i32_1 = arith.constant 0 : i32
    return %c0_i32, %c0_i32_0 : i32, i32
  }
  func.func @transform_2(%arg0: i32) -> (i32, i32) {
    %c0_i32 = arith.constant 0 : i32
    %c0_i32_0 = arith.constant 0 : i32
    %c0_i32_1 = arith.constant 0 : i32
    return %c0_i32, %c0_i32_0 : i32, i32
  }
  func.func @transform_3(%arg0: i32) -> (i32, i32) {
    %c0_i32 = arith.constant 0 : i32
    %c0_i32_0 = arith.constant 0 : i32
    return %arg0, %c0_i32 : i32, i32
  }
}

module attributes {stable_mosaic.version = 11 : i64} {
  func.func @_matmul_bias_act_1k_kernel(%arg0: i32, %arg1: memref<128x256xbf16, #tpu.memory_space<vmem>>, %arg2: memref<256x32xbf16, #tpu.memory_space<vmem>>, %arg3: memref<1x32xf32, #tpu.memory_space<vmem>>, %arg4: memref<128x32xbf16, #tpu.memory_space<vmem>>) attributes {dimension_semantics = [#tpu.dimension_semantics<parallel>], iteration_bounds = array<i64: 1>, scalar_prefetch = 0 : i64, scratch_operands = 0 : i64, tpu.core_type = #tpu.core_type<tc>, window_params = [{transform_indices = @transform_0, window_bounds = array<i64: 128, 256>}, {pipeline_mode = #tpu.pipeline_mode<synchronous>, transform_indices = @transform_1, window_bounds = array<i64: 256, 32>}, {pipeline_mode = #tpu.pipeline_mode<synchronous>, transform_indices = @transform_2, window_bounds = array<i64: 1, 32>}, {transform_indices = @transform_3, window_bounds = array<i64: 128, 32>}]} {
    %c0 = arith.constant 0 : index
    %c0_0 = arith.constant 0 : index
    %0 = vector.load %arg1[%c0, %c0_0] : memref<128x256xbf16, #tpu.memory_space<vmem>>, vector<128x256xbf16>
    %c0_1 = arith.constant 0 : index
    %c0_2 = arith.constant 0 : index
    %1 = vector.load %arg2[%c0_1, %c0_2] : memref<256x32xbf16, #tpu.memory_space<vmem>>, vector<256x32xbf16>
    %cst = arith.constant dense<0.000000e+00> : vector<128x32xf32>
    %2 = tpu.matmul %0, %1, %cst {dimension_numbers = #tpu.dot_dimension_numbers<[1], [0], [0], [1], [0, 0, 1, 1], [], []>} : vector<128x256xbf16>, vector<256x32xbf16>, vector<128x32xf32> -> vector<128x32xf32>
    %c0_3 = arith.constant 0 : index
    %c0_4 = arith.constant 0 : index
    %3 = vector.load %arg3[%c0_3, %c0_4] : memref<1x32xf32, #tpu.memory_space<vmem>>, vector<1x32xf32>
    %4 = vector.broadcast %3 : vector<1x32xf32> to vector<128x32xf32>
    %5 = arith.addf %2, %4 : vector<128x32xf32>
    %cst_5 = arith.constant 0.000000e+00 : f32
    %6 = vector.broadcast %cst_5 : f32 to vector<128x32xf32>
    %7 = arith.cmpf ogt, %5, %6 : vector<128x32xf32>
    %cst_6 = arith.constant 1.000000e-01 : f32
    %8 = vector.broadcast %cst_6 : f32 to vector<128x32xf32>
    %9 = arith.mulf %8, %5 : vector<128x32xf32>
    %10 = arith.select %7, %5, %9 : vector<128x32xi1>, vector<128x32xf32>
    %11 = arith.truncf %10 : vector<128x32xf32> to vector<128x32xbf16>
    %c0_7 = arith.constant 0 : index
    %c0_8 = arith.constant 0 : index
    %12 = vector.load %arg4[%c0_7, %c0_8] : memref<128x32xbf16, #tpu.memory_space<vmem>>, vector<128x32xbf16>
    tpu.vector_store %arg4[%c0_7, %c0_8], %11 {strides = array<i32>} : memref<128x32xbf16, #tpu.memory_space<vmem>>, vector<128x32xbf16>,
    return
  }
  func.func @transform_0(%arg0: i32) -> (i32, i32) {
    %c0_i32 = arith.constant 0 : i32
    %c0_i32_0 = arith.constant 0 : i32
    return %arg0, %c0_i32 : i32, i32
  }
  func.func @transform_1(%arg0: i32) -> (i32, i32) {
    %c0_i32 = arith.constant 0 : i32
    %c0_i32_0 = arith.constant 0 : i32
    %c0_i32_1 = arith.constant 0 : i32
    return %c0_i32, %c0_i32_0 : i32, i32
  }
  func.func @transform_2(%arg0: i32) -> (i32, i32) {
    %c0_i32 = arith.constant 0 : i32
    %c0_i32_0 = arith.constant 0 : i32
    %c0_i32_1 = arith.constant 0 : i32
    return %c0_i32, %c0_i32_0 : i32, i32
  }
  func.func @transform_3(%arg0: i32) -> (i32, i32) {
    %c0_i32 = arith.constant 0 : i32
    %c0_i32_0 = arith.constant 0 : i32
    return %arg0, %c0_i32 : i32, i32
  }
}

module attributes {stable_mosaic.version = 11 : i64} {
  func.func @_matmul_bias_act_1k_kernel(%arg0: i32, %arg1: memref<32x512xbf16, #tpu.memory_space<vmem>>, %arg2: memref<512x64xbf16, #tpu.memory_space<vmem>>, %arg3: memref<1x64xf32, #tpu.memory_space<vmem>>, %arg4: memref<32x64xbf16, #tpu.memory_space<vmem>>) attributes {dimension_semantics = [#tpu.dimension_semantics<parallel>], iteration_bounds = array<i64: 1>, scalar_prefetch = 0 : i64, scratch_operands = 0 : i64, tpu.core_type = #tpu.core_type<tc>, window_params = [{transform_indices = @transform_0, window_bounds = array<i64: 32, 512>}, {pipeline_mode = #tpu.pipeline_mode<synchronous>, transform_indices = @transform_1, window_bounds = array<i64: 512, 64>}, {pipeline_mode = #tpu.pipeline_mode<synchronous>, transform_indices = @transform_2, window_bounds = array<i64: 1, 64>}, {transform_indices = @transform_3, window_bounds = array<i64: 32, 64>}]} {
    %c0 = arith.constant 0 : index
    %c0_0 = arith.constant 0 : index
    %0 = vector.load %arg1[%c0, %c0_0] : memref<32x512xbf16, #tpu.memory_space<vmem>>, vector<32x512xbf16>
    %c0_1 = arith.constant 0 : index
    %c0_2 = arith.constant 0 : index
    %1 = vector.load %arg2[%c0_1, %c0_2] : memref<512x64xbf16, #tpu.memory_space<vmem>>, vector<512x64xbf16>
    %cst = arith.constant dense<0.000000e+00> : vector<32x64xf32>
    %2 = tpu.matmul %0, %1, %cst {dimension_numbers = #tpu.dot_dimension_numbers<[1], [0], [0], [1], [0, 0, 1, 1], [], []>} : vector<32x512xbf16>, vector<512x64xbf16>, vector<32x64xf32> -> vector<32x64xf32>
    %c0_3 = arith.constant 0 : index
    %c0_4 = arith.constant 0 : index
    %3 = vector.load %arg3[%c0_3, %c0_4] : memref<1x64xf32, #tpu.memory_space<vmem>>, vector<1x64xf32>
    %4 = vector.broadcast %3 : vector<1x64xf32> to vector<32x64xf32>
    %5 = arith.addf %2, %4 : vector<32x64xf32>
    %cst_5 = arith.constant 0.000000e+00 : f32
    %6 = vector.broadcast %cst_5 : f32 to vector<32x64xf32>
    %7 = arith.cmpf ogt, %5, %6 : vector<32x64xf32>
    %cst_6 = arith.constant 1.000000e-01 : f32
    %8 = vector.broadcast %cst_6 : f32 to vector<32x64xf32>
    %9 = arith.mulf %8, %5 : vector<32x64xf32>
    %10 = arith.select %7, %5, %9 : vector<32x64xi1>, vector<32x64xf32>
    %11 = arith.truncf %10 : vector<32x64xf32> to vector<32x64xbf16>
    %c0_7 = arith.constant 0 : index
    %c0_8 = arith.constant 0 : index
    %12 = vector.load %arg4[%c0_7, %c0_8] : memref<32x64xbf16, #tpu.memory_space<vmem>>, vector<32x64xbf16>
    tpu.vector_store %arg4[%c0_7, %c0_8], %11 {strides = array<i32>} : memref<32x64xbf16, #tpu.memory_space<vmem>>, vector<32x64xbf16>,
    return
  }
  func.func @transform_0(%arg0: i32) -> (i32, i32) {
    %c0_i32 = arith.constant 0 : i32
    %c0_i32_0 = arith.constant 0 : i32
    return %arg0, %c0_i32 : i32, i32
  }
  func.func @transform_1(%arg0: i32) -> (i32, i32) {
    %c0_i32 = arith.constant 0 : i32
    %c0_i32_0 = arith.constant 0 : i32
    %c0_i32_1 = arith.constant 0 : i32
    return %c0_i32, %c0_i32_0 : i32, i32
  }
  func.func @transform_2(%arg0: i32) -> (i32, i32) {
    %c0_i32 = arith.constant 0 : i32
    %c0_i32_0 = arith.constant 0 : i32
    %c0_i32_1 = arith.constant 0 : i32
    return %c0_i32, %c0_i32_0 : i32, i32
  }
  func.func @transform_3(%arg0: i32) -> (i32, i32) {
    %c0_i32 = arith.constant 0 : i32
    %c0_i32_0 = arith.constant 0 : i32
    return %arg0, %c0_i32 : i32, i32
  }
}

module attributes {stable_mosaic.version = 11 : i64} {
  func.func @_reduce_head_kernel(%arg0: i32, %arg1: memref<2x1024xbf16, #tpu.memory_space<vmem>>, %arg2: memref<1x1024xf32, #tpu.memory_space<vmem>>, %arg3: memref<1x1xf32, #tpu.memory_space<vmem>>, %arg4: memref<2x1xf32, #tpu.memory_space<vmem>>) attributes {dimension_semantics = [#tpu.dimension_semantics<parallel>], iteration_bounds = array<i64: 1>, scalar_prefetch = 0 : i64, scratch_operands = 0 : i64, tpu.core_type = #tpu.core_type<tc>, window_params = [{transform_indices = @transform_0, window_bounds = array<i64: 2, 1024>}, {pipeline_mode = #tpu.pipeline_mode<synchronous>, transform_indices = @transform_1, window_bounds = array<i64: 1, 1024>}, {pipeline_mode = #tpu.pipeline_mode<synchronous>, transform_indices = @transform_2, window_bounds = array<i64: 1, 1>}, {transform_indices = @transform_3, window_bounds = array<i64: 2, 1>}]} {
    %c0 = arith.constant 0 : index
    %c0_0 = arith.constant 0 : index
    %0 = vector.load %arg1[%c0, %c0_0] : memref<2x1024xbf16, #tpu.memory_space<vmem>>, vector<2x1024xbf16>
    %1 = arith.extf %0 : vector<2x1024xbf16> to vector<2x1024xf32>
    %c0_1 = arith.constant 0 : index
    %c0_2 = arith.constant 0 : index
    %2 = vector.load %arg2[%c0_1, %c0_2] : memref<1x1024xf32, #tpu.memory_space<vmem>>, vector<1x1024xf32>
    %3 = vector.broadcast %2 : vector<1x1024xf32> to vector<2x1024xf32>
    %4 = arith.mulf %1, %3 : vector<2x1024xf32>
    %cst = arith.constant dense<0.000000e+00> : vector<2xf32>
    %5 = vector.multi_reduction <add>, %4, %cst [1] : vector<2x1024xf32> to vector<2xf32>
    %6 = vector.shape_cast %5 : vector<2xf32> to vector<2x1xf32>
    %c0_3 = arith.constant 0 : index
    %c0_4 = arith.constant 0 : index
    %7 = vector.load %arg3[%c0_3, %c0_4] : memref<1x1xf32, #tpu.memory_space<vmem>>, vector<1x1xf32>
    %8 = vector.broadcast %7 : vector<1x1xf32> to vector<2x1xf32>
    %9 = arith.addf %6, %8 : vector<2x1xf32>
    %c0_5 = arith.constant 0 : index
    %c0_6 = arith.constant 0 : index
    %10 = vector.load %arg4[%c0_5, %c0_6] : memref<2x1xf32, #tpu.memory_space<vmem>>, vector<2x1xf32>
    tpu.vector_store %arg4[%c0_5, %c0_6], %9 {strides = array<i32>} : memref<2x1xf32, #tpu.memory_space<vmem>>, vector<2x1xf32>,
    return
  }
  func.func @transform_0(%arg0: i32) -> (i32, i32) {
    %c0_i32 = arith.constant 0 : i32
    %c0_i32_0 = arith.constant 0 : i32
    return %arg0, %c0_i32 : i32, i32
  }
  func.func @transform_1(%arg0: i32) -> (i32, i32) {
    %c0_i32 = arith.constant 0 : i32
    %c0_i32_0 = arith.constant 0 : i32
    %c0_i32_1 = arith.constant 0 : i32
    return %c0_i32, %c0_i32_0 : i32, i32
  }
  func.func @transform_2(%arg0: i32) -> (i32, i32) {
    %c0_i32 = arith.constant 0 : i32
    %c0_i32_0 = arith.constant 0 : i32
    %c0_i32_1 = arith.constant 0 : i32
    return %c0_i32, %c0_i32_0 : i32, i32
  }
  func.func @transform_3(%arg0: i32) -> (i32, i32) {
    %c0_i32 = arith.constant 0 : i32
    %c0_i32_0 = arith.constant 0 : i32
    return %arg0, %c0_i32 : i32, i32
  }
}

</mosaic_0001>

<llo_original>
// kernel: discriminator_forward.5
$region0: #{discriminator_forward.5}
  #allocation0 [shape = 'u32[]', space=smem, size = 0x4, offset = 0x4, fixed_abs, tag = 'smem constant byte address 0x4 - core index']
  #allocation1 [shape = 'u32[144,128]{1,0:T(1,128)}', space=vmem, size = 0x12000, scoped, tag = 'internal scratch']
  %s0 = inlined_call_operand.vmem [shape: bf16[2048,16], index: 0, kind: input, shape index: {}]
  %s1 = inlined_call_operand.vmem [shape: bf16[16,8], index: 1, kind: input, shape index: {}]
  %s2 = inlined_call_operand.vmem [shape: f32[1,8], index: 2, kind: input, shape index: {}]
  %s3 = inlined_call_operand.vmem [shape: bf16[2048,8], index: 3, kind: output, shape index: {}]
  %s4 = sld [smem:[#allocation0]]
  $region45: #{discriminator_forward.5} parent=0
    _
  %s6 = ssub.s32 1, %s4
  %s7 = scalar_select 0, %s6, %s4
  loop: start=0, step=1, limit=4
  $region2: #{discriminator_forward.5} parent=0 // loop_pre_header
    _
  $region3: #{discriminator_forward.5} parent=0 // loop_header
    %s9 = sphi 0, %s13
    %p10 = scmp.ge.s32.totalorder %s9, 4
    %s19 = sphi 0, %s21
    %s22 = sphi 0, %s19
    %s23 = sphi 0, %s22
    %s39 = sphi 0, %s23
    %s43 = sphi 0, %s43
    %s45 = sphi 0, %s43
    %s46 = sphi 0, %s45
    %s60 = sphi 0, %s46
    %s64 = sphi 0, %s64
    %s66 = sphi 0, %s64
    %s67 = sphi 0, %s66
    %s81 = sphi 0, %s67
    %s87 = sphi 0, %s89
    %s90 = sphi 0, %s87
    %s91 = sphi 0, %s90
    %s107 = sphi 0, %s91
  $region4: #{discriminator_forward.5} parent=0 // loop_header_branch
    %12 = sbr.rel (%p10) target = $region8
  $region5: #{discriminator_forward.5} parent=0 // loop_body
    %s14 = ssub.s32 %s9, 1
    %s15 = ssub.s32 %s9, 2
    %s16 = sadd.s32 %s9, 1
    %s17 = ssub.s32 %s9, %s16
    %p18 = scmp.eq.s32.totalorder %s17, 0
    %s20 = sadd.s32 %s19, 1
    %s21 = scalar_select %p18, %s19, %s20
    %p24 = pneg %p18
    %p25 = scmp.eq.s32.totalorder %s9, 1
    %p26 = por %p24, %p25
    %p27 = scmp.ne.s32.totalorder %s19, %s22
    %p28 = scmp.eq.s32.totalorder %s9, 0
    %p29 = por %p27, %p28
    %p30 = scmp.ne.s32.totalorder %s19, %s22
    %p31 = scmp.eq.s32.totalorder %s14, 1
    %p32 = por %p30, %p31
    %p33 = scmp.ne.s32.totalorder %s22, %s23
    %p34 = scmp.eq.s32.totalorder %s14, 0
    %p35 = por %p33, %p34
    %p36 = scmp.ne.s32.totalorder %s22, %s23
    %p37 = scmp.eq.s32.totalorder %s15, 1
    %p38 = por %p36, %p37
    %p40 = scmp.ne.s32.totalorder %s23, %s39
    %p41 = scmp.eq.s32.totalorder %s15, 0
    %p42 = por %p40, %p41
    %s44 = sadd.s32 %s43, 1
    %p47 = scmp.eq.s32.totalorder %s9, 1
    %p48 = scmp.ne.s32.totalorder %s43, %s45
    %p49 = scmp.eq.s32.totalorder %s9, 0
    %p50 = por %p48, %p49
    %p51 = scmp.ne.s32.totalorder %s43, %s45
    %p52 = scmp.eq.s32.totalorder %s14, 1
    %p53 = por %p51, %p52
    %p54 = scmp.ne.s32.totalorder %s45, %s46
    %p55 = scmp.eq.s32.totalorder %s14, 0
    %p56 = por %p54, %p55
    %p57 = scmp.ne.s32.totalorder %s45, %s46
    %p58 = scmp.eq.s32.totalorder %s15, 1
    %p59 = por %p57, %p58
    %p61 = scmp.ne.s32.totalorder %s46, %s60
    %p62 = scmp.eq.s32.totalorder %s15, 0
    %p63 = por %p61, %p62
    %s65 = sadd.s32 %s64, 1
    %p68 = scmp.eq.s32.totalorder %s9, 1
    %p69 = scmp.ne.s32.totalorder %s64, %s66
    %p70 = scmp.eq.s32.totalorder %s9, 0
    %p71 = por %p69, %p70
    %p72 = scmp.ne.s32.totalorder %s64, %s66
    %p73 = scmp.eq.s32.totalorder %s14, 1
    %p74 = por %p72, %p73
    %p75 = scmp.ne.s32.totalorder %s66, %s67
    %p76 = scmp.eq.s32.totalorder %s14, 0
    %p77 = por %p75, %p76
    %p78 = scmp.ne.s32.totalorder %s66, %s67
    %p79 = scmp.eq.s32.totalorder %s15, 1
    %p80 = por %p78, %p79
    %p82 = scmp.ne.s32.totalorder %s67, %s81
    %p83 = scmp.eq.s32.totalorder %s15, 0
    %p84 = por %p82, %p83
    %s85 = ssub.s32 %s9, %s16
    %p86 = scmp.eq.s32.totalorder %s85, 0
    %s88 = sadd.s32 %s87, 1
    %s89 = scalar_select %p86, %s87, %s88
    %p92 = pneg %p86
    %p93 = scmp.eq.s32.totalorder %s9, 1
    %p94 = por %p92, %p93
    %p95 = scmp.ne.s32.totalorder %s87, %s90
    %p96 = scmp.eq.s32.totalorder %s9, 0
    %p97 = por %p95, %p96
    %p98 = scmp.ne.s32.totalorder %s87, %s90
    %p99 = scmp.eq.s32.totalorder %s14, 1
    %p100 = por %p98, %p99
    %p101 = scmp.ne.s32.totalorder %s90, %s91
    %p102 = scmp.eq.s32.totalorder %s14, 0
    %p103 = por %p101, %p102
    %p104 = scmp.ne.s32.totalorder %s90, %s91
    %p105 = scmp.eq.s32.totalorder %s15, 1
    %p106 = por %p104, %p105
    %p108 = scmp.ne.s32.totalorder %s91, %s107
    %p109 = scmp.eq.s32.totalorder %s15, 0
    %p110 = por %p108, %p109
    %p111 = scmp.le.s32.totalorder 1, %s9
    %p112 = scmp.lt.s32.totalorder %s9, 3
    %p113 = pnand %p111, %p112
    %p114 = pneg %p113
    // Predicated region
    $region9: #{discriminator_forward.5} parent=5 // pred_check
      _
    $region10: #{discriminator_forward.5} parent=5 // pred_check_branch
      %116 = sbr.rel (%p113) target = $region12
    $region11: #{discriminator_forward.5} parent=5 // pred_region
      %s117 = ssub.s32 %s9, 1
      // Predicated region
      $region13: #{discriminator_forward.5} parent=11 // pred_check
        %p118 = pneg %p56
      $region14: #{discriminator_forward.5} parent=11 // pred_check_branch
        %120 = sbr.rel (%p118) target = $region16
      $region15: #{discriminator_forward.5} parent=11 // pred_region
        _
      $region16: #{discriminator_forward.5} parent=11 // pred_fallthru
        _
      // Predicated region
      $region17: #{discriminator_forward.5} parent=11 // pred_check
        %p121 = pneg %p77
      $region18: #{discriminator_forward.5} parent=11 // pred_check_branch
        %123 = sbr.rel (%p121) target = $region20
      $region19: #{discriminator_forward.5} parent=11 // pred_region
        _
      $region20: #{discriminator_forward.5} parent=11 // pred_fallthru
        _
    $region12: #{discriminator_forward.5} parent=5 // pred_fallthru
      _
    %p124 = scmp.lt.s32.totalorder %s9, 2
    // Predicated region
    $region21: #{discriminator_forward.5} parent=5 // pred_check
      %p125 = pneg %p124
    $region22: #{discriminator_forward.5} parent=5 // pred_check_branch
      %127 = sbr.rel (%p125) target = $region24
    $region23: #{discriminator_forward.5} parent=5 // pred_region
      // Predicated region
      $region25: #{discriminator_forward.5} parent=23 // pred_check
        %p128 = pneg %p29
      $region26: #{discriminator_forward.5} parent=23 // pred_check_branch
        %130 = sbr.rel (%p128) target = $region28
      $region27: #{discriminator_forward.5} parent=23 // pred_region
        %s131 = smul.u32 128, %s9
        %p132 = scmp.lt.s32.totalorder %s131, 255
        %s133 = scalar_select %p132, %s131, 255
        %s134 = smul.addr %s133, 4
        %s135 = scalar_lea.vmem %s0, %s134
        %s136 = smul.u32 128, %s9
      $region28: #{discriminator_forward.5} parent=23 // pred_fallthru
        _
    $region24: #{discriminator_forward.5} parent=5 // pred_fallthru
      _
    %p137 = scmp.le.s32.totalorder 1, %s9
    %p138 = scmp.lt.s32.totalorder %s9, 3
    %p139 = pnand %p137, %p138
    %p140 = pneg %p139
    // Predicated region
    $region29: #{discriminator_forward.5} parent=5 // pred_check
      _
    $region30: #{discriminator_forward.5} parent=5 // pred_check_branch
      %142 = sbr.rel (%p139) target = $region32
    $region31: #{discriminator_forward.5} parent=5 // pred_region
      %s143 = ssub.s32 %s9, 1
      %s144 = smul.u32 128, %s14
      %p145 = scmp.lt.s32.totalorder %s144, 255
      %s146 = scalar_select %p145, %s144, 255
      %s147 = smul.addr %s146, 4
      %s148 = scalar_lea.vmem %s0, %s147
      %p149 = pneg %p35
      %p150 = pneg %p32
      %p151 = pneg %p56
      %p152 = pneg %p53
      %p153 = pneg %p77
      %p154 = pneg %p74
      %p155 = pneg %p103
      %p156 = pneg %p100
      %s157 = smul.u32 128, %s14
      %p158 = scmp.lt.s32.totalorder %s157, 255
      %s159 = scalar_select %p158, %s157, 255
      %s160 = smul.addr %s159, 4
      %s161 = scalar_lea.vmem %s3, %s160
      %s162 = smul.u32 128, %s14
      %p163 = scmp.lt.s32.totalorder %s162, 255
      %s164 = scalar_select %p163, %s162, 255
      %s165 = smul.addr %s164, 4
      %s166 = scalar_lea.vmem %s0, %s165
      %s167 = smul.u32 128, %s14
      %s168 = smul.u32 128, %s14
      %p169 = scmp.lt.s32.totalorder %s168, 255
      %s170 = scalar_select %p169, %s168, 255
      %s171 = smul.addr %s170, 4
      %s172 = scalar_lea.vmem %s3, %s171
      %s173 = smul.u32 128, %s14
      %v175 = vld [vmem:[%s166] sm:$0xf]
      %v176 = vld [vmem:[%s166 + $0x4] sm:$0xf]
      %v177 = vld [vmem:[%s166 + $0x8] sm:$0xf]
      %v178 = vld [vmem:[%s166 + $0xc] sm:$0xf]
      %v179 = vld [vmem:[%s166 + $0x10] sm:$0xf]
      %v180 = vld [vmem:[%s166 + $0x14] sm:$0xf]
      %v181 = vld [vmem:[%s166 + $0x18] sm:$0xf]
      %v182 = vld [vmem:[%s166 + $0x1c] sm:$0xf]
      %v183 = vld [vmem:[%s166 + $0x20] sm:$0xf]
      %v184 = vld [vmem:[%s166 + $0x24] sm:$0xf]
      %v185 = vld [vmem:[%s166 + $0x28] sm:$0xf]
      %v186 = vld [vmem:[%s166 + $0x2c] sm:$0xf]
      %v187 = vld [vmem:[%s166 + $0x30] sm:$0xf]
      %v188 = vld [vmem:[%s166 + $0x34] sm:$0xf]
      %v189 = vld [vmem:[%s166 + $0x38] sm:$0xf]
      %v190 = vld [vmem:[%s166 + $0x3c] sm:$0xf]
      %v191 = vld [vmem:[%s166 + $0x40] sm:$0xf]
      %v192 = vld [vmem:[%s166 + $0x44] sm:$0xf]
      %v193 = vld [vmem:[%s166 + $0x48] sm:$0xf]
      %v194 = vld [vmem:[%s166 + $0x4c] sm:$0xf]
      %v195 = vld [vmem:[%s166 + $0x50] sm:$0xf]
      %v196 = vld [vmem:[%s166 + $0x54] sm:$0xf]
      %v197 = vld [vmem:[%s166 + $0x58] sm:$0xf]
      %v198 = vld [vmem:[%s166 + $0x5c] sm:$0xf]
      %v199 = vld [vmem:[%s166 + $0x60] sm:$0xf]
      %v200 = vld [vmem:[%s166 + $0x64] sm:$0xf]
      %v201 = vld [vmem:[%s166 + $0x68] sm:$0xf]
      %v202 = vld [vmem:[%s166 + $0x6c] sm:$0xf]
      %v203 = vld [vmem:[%s166 + $0x70] sm:$0xf]
      %v204 = vld [vmem:[%s166 + $0x74] sm:$0xf]
      %v205 = vld [vmem:[%s166 + $0x78] sm:$0xf]
      %v206 = vld [vmem:[%s166 + $0x7c] sm:$0xf]
      %v207 = vld [vmem:[%s166 + $0x80] sm:$0xf]
      %v208 = vld [vmem:[%s166 + $0x84] sm:$0xf]
      %v209 = vld [vmem:[%s166 + $0x88] sm:$0xf]
      %v210 = vld [vmem:[%s166 + $0x8c] sm:$0xf]
      %v211 = vld [vmem:[%s166 + $0x90] sm:$0xf]
      %v212 = vld [vmem:[%s166 + $0x94] sm:$0xf]
      %v213 = vld [vmem:[%s166 + $0x98] sm:$0xf]
      %v214 = vld [vmem:[%s166 + $0x9c] sm:$0xf]
      %v215 = vld [vmem:[%s166 + $0xa0] sm:$0xf]
      %v216 = vld [vmem:[%s166 + $0xa4] sm:$0xf]
      %v217 = vld [vmem:[%s166 + $0xa8] sm:$0xf]
      %v218 = vld [vmem:[%s166 + $0xac] sm:$0xf]
      %v219 = vld [vmem:[%s166 + $0xb0] sm:$0xf]
      %v220 = vld [vmem:[%s166 + $0xb4] sm:$0xf]
      %v221 = vld [vmem:[%s166 + $0xb8] sm:$0xf]
      %v222 = vld [vmem:[%s166 + $0xbc] sm:$0xf]
      %v223 = vld [vmem:[%s166 + $0xc0] sm:$0xf]
      %v224 = vld [vmem:[%s166 + $0xc4] sm:$0xf]
      %v225 = vld [vmem:[%s166 + $0xc8] sm:$0xf]
      %v226 = vld [vmem:[%s166 + $0xcc] sm:$0xf]
      %v227 = vld [vmem:[%s166 + $0xd0] sm:$0xf]
      %v228 = vld [vmem:[%s166 + $0xd4] sm:$0xf]
      %v229 = vld [vmem:[%s166 + $0xd8] sm:$0xf]
      %v230 = vld [vmem:[%s166 + $0xdc] sm:$0xf]
      %v231 = vld [vmem:[%s166 + $0xe0] sm:$0xf]
      %v232 = vld [vmem:[%s166 + $0xe4] sm:$0xf]
      %v233 = vld [vmem:[%s166 + $0xe8] sm:$0xf]
      %v234 = vld [vmem:[%s166 + $0xec] sm:$0xf]
      %v235 = vld [vmem:[%s166 + $0xf0] sm:$0xf]
      %v236 = vld [vmem:[%s166 + $0xf4] sm:$0xf]
      %v237 = vld [vmem:[%s166 + $0xf8] sm:$0xf]
      %v238 = vld [vmem:[%s166 + $0xfc] sm:$0xf]
      %v239 = vld [vmem:[%s166 + $0x100] sm:$0xf]
      %v240 = vld [vmem:[%s166 + $0x104] sm:$0xf]
      %v241 = vld [vmem:[%s166 + $0x108] sm:$0xf]
      %v242 = vld [vmem:[%s166 + $0x10c] sm:$0xf]
      %v243 = vld [vmem:[%s166 + $0x110] sm:$0xf]
      %v244 = vld [vmem:[%s166 + $0x114] sm:$0xf]
      %v245 = vld [vmem:[%s166 + $0x118] sm:$0xf]
      %v246 = vld [vmem:[%s166 + $0x11c] sm:$0xf]
      %v247 = vld [vmem:[%s166 + $0x120] sm:$0xf]
      %v248 = vld [vmem:[%s166 + $0x124] sm:$0xf]
      %v249 = vld [vmem:[%s166 + $0x128] sm:$0xf]
      %v250 = vld [vmem:[%s166 + $0x12c] sm:$0xf]
      %v251 = vld [vmem:[%s166 + $0x130] sm:$0xf]
      %v252 = vld [vmem:[%s166 + $0x134] sm:$0xf]
      %v253 = vld [vmem:[%s166 + $0x138] sm:$0xf]
      %v254 = vld [vmem:[%s166 + $0x13c] sm:$0xf]
      %v255 = vld [vmem:[%s166 + $0x140] sm:$0xf]
      %v256 = vld [vmem:[%s166 + $0x144] sm:$0xf]
      %v257 = vld [vmem:[%s166 + $0x148] sm:$0xf]
      %v258 = vld [vmem:[%s166 + $0x14c] sm:$0xf]
      %v259 = vld [vmem:[%s166 + $0x150] sm:$0xf]
      %v260 = vld [vmem:[%s166 + $0x154] sm:$0xf]
      %v261 = vld [vmem:[%s166 + $0x158] sm:$0xf]
      %v262 = vld [vmem:[%s166 + $0x15c] sm:$0xf]
      %v263 = vld [vmem:[%s166 + $0x160] sm:$0xf]
      %v264 = vld [vmem:[%s166 + $0x164] sm:$0xf]
      %v265 = vld [vmem:[%s166 + $0x168] sm:$0xf]
      %v266 = vld [vmem:[%s166 + $0x16c] sm:$0xf]
      %v267 = vld [vmem:[%s166 + $0x170] sm:$0xf]
      %v268 = vld [vmem:[%s166 + $0x174] sm:$0xf]
      %v269 = vld [vmem:[%s166 + $0x178] sm:$0xf]
      %v270 = vld [vmem:[%s166 + $0x17c] sm:$0xf]
      %v271 = vld [vmem:[%s166 + $0x180] sm:$0xf]
      %v272 = vld [vmem:[%s166 + $0x184] sm:$0xf]
      %v273 = vld [vmem:[%s166 + $0x188] sm:$0xf]
      %v274 = vld [vmem:[%s166 + $0x18c] sm:$0xf]
      %v275 = vld [vmem:[%s166 + $0x190] sm:$0xf]
      %v276 = vld [vmem:[%s166 + $0x194] sm:$0xf]
      %v277 = vld [vmem:[%s166 + $0x198] sm:$0xf]
      %v278 = vld [vmem:[%s166 + $0x19c] sm:$0xf]
      %v279 = vld [vmem:[%s166 + $0x1a0] sm:$0xf]
      %v280 = vld [vmem:[%s166 + $0x1a4] sm:$0xf]
      %v281 = vld [vmem:[%s166 + $0x1a8] sm:$0xf]
      %v282 = vld [vmem:[%s166 + $0x1ac] sm:$0xf]
      %v283 = vld [vmem:[%s166 + $0x1b0] sm:$0xf]
      %v284 = vld [vmem:[%s166 + $0x1b4] sm:$0xf]
      %v285 = vld [vmem:[%s166 + $0x1b8] sm:$0xf]
      %v286 = vld [vmem:[%s166 + $0x1bc] sm:$0xf]
      %v287 = vld [vmem:[%s166 + $0x1c0] sm:$0xf]
      %v288 = vld [vmem:[%s166 + $0x1c4] sm:$0xf]
      %v289 = vld [vmem:[%s166 + $0x1c8] sm:$0xf]
      %v290 = vld [vmem:[%s166 + $0x1cc] sm:$0xf]
      %v291 = vld [vmem:[%s166 + $0x1d0] sm:$0xf]
      %v292 = vld [vmem:[%s166 + $0x1d4] sm:$0xf]
      %v293 = vld [vmem:[%s166 + $0x1d8] sm:$0xf]
      %v294 = vld [vmem:[%s166 + $0x1dc] sm:$0xf]
      %v295 = vld [vmem:[%s166 + $0x1e0] sm:$0xf]
      %v296 = vld [vmem:[%s166 + $0x1e4] sm:$0xf]
      %v297 = vld [vmem:[%s166 + $0x1e8] sm:$0xf]
      %v298 = vld [vmem:[%s166 + $0x1ec] sm:$0xf]
      %v299 = vld [vmem:[%s166 + $0x1f0] sm:$0xf]
      %v300 = vld [vmem:[%s166 + $0x1f4] sm:$0xf]
      %v301 = vld [vmem:[%s166 + $0x1f8] sm:$0xf]
      %v302 = vld [vmem:[%s166 + $0x1fc] sm:$0xf]
      %v303 = vld [vmem:[%s1] sm:$0xf]
      %v304 = vld [vmem:[%s1 + $0x4] sm:$0xf]
      %v305 = vld [vmem:[%s2] sm:$0x1]
      %v307 = vlaneseq
      %v308 = vshrl.u32 %v307, 7
      %v309 = vsub.s32 0, %v308
      %v310 = vrot.slane %v305, %v309
      %v440 = vunpack.c.l.b16 %v175
      %v441 = vunpack.c.l.b16 %v176
      %v442 = vunpack.c.l.b16 %v177
      %v443 = vunpack.c.l.b16 %v178
      %v444 = vunpack.c.l.b16 %v179
      %v445 = vunpack.c.l.b16 %v180
      %v446 = vunpack.c.l.b16 %v181
      %v447 = vunpack.c.l.b16 %v182
      %v448 = vunpack.c.l.b16 %v183
      %v449 = vunpack.c.l.b16 %v184
      %v450 = vunpack.c.l.b16 %v185
      %v451 = vunpack.c.l.b16 %v186
      %v452 = vunpack.c.l.b16 %v187
      %v453 = vunpack.c.l.b16 %v188
      %v454 = vunpack.c.l.b16 %v189
      %v455 = vunpack.c.l.b16 %v190
      %v456 = vunpack.c.l.b16 %v191
      %v457 = vunpack.c.l.b16 %v192
      %v458 = vunpack.c.l.b16 %v193
      %v459 = vunpack.c.l.b16 %v194
      %v460 = vunpack.c.l.b16 %v195
      %v461 = vunpack.c.l.b16 %v196
      %v462 = vunpack.c.l.b16 %v197
      %v463 = vunpack.c.l.b16 %v198
      %v464 = vunpack.c.l.b16 %v199
      %v465 = vunpack.c.l.b16 %v200
      %v466 = vunpack.c.l.b16 %v201
      %v467 = vunpack.c.l.b16 %v202
      %v468 = vunpack.c.l.b16 %v203
      %v469 = vunpack.c.l.b16 %v204
      %v470 = vunpack.c.l.b16 %v205
      %v471 = vunpack.c.l.b16 %v206
      %v472 = vunpack.c.l.b16 %v207
      %v473 = vunpack.c.l.b16 %v208
      %v474 = vunpack.c.l.b16 %v209
      %v475 = vunpack.c.l.b16 %v210
      %v476 = vunpack.c.l.b16 %v211
      %v477 = vunpack.c.l.b16 %v212
      %v478 = vunpack.c.l.b16 %v213
      %v479 = vunpack.c.l.b16 %v214
      %v480 = vunpack.c.l.b16 %v215
      %v481 = vunpack.c.l.b16 %v216
      %v482 = vunpack.c.l.b16 %v217
      %v483 = vunpack.c.l.b16 %v218
      %v484 = vunpack.c.l.b16 %v219
      %v485 = vunpack.c.l.b16 %v220
      %v486 = vunpack.c.l.b16 %v221
      %v487 = vunpack.c.l.b16 %v222
      %v488 = vunpack.c.l.b16 %v223
      %v489 = vunpack.c.l.b16 %v224
      %v490 = vunpack.c.l.b16 %v225
      %v491 = vunpack.c.l.b16 %v226
      %v492 = vunpack.c.l.b16 %v227
      %v493 = vunpack.c.l.b16 %v228
      %v494 = vunpack.c.l.b16 %v229
      %v495 = vunpack.c.l.b16 %v230
      %v496 = vunpack.c.l.b16 %v231
      %v497 = vunpack.c.l.b16 %v232
      %v498 = vunpack.c.l.b16 %v233
      %v499 = vunpack.c.l.b16 %v234
      %v500 = vunpack.c.l.b16 %v235
      %v501 = vunpack.c.l.b16 %v236
      %v502 = vunpack.c.l.b16 %v237
      %v503 = vunpack.c.l.b16 %v238
      %v504 = vunpack.c.l.b16 %v239
      %v505 = vunpack.c.l.b16 %v240
      %v506 = vunpack.c.l.b16 %v241
      %v507 = vunpack.c.l.b16 %v242
      %v508 = vunpack.c.l.b16 %v243
      %v509 = vunpack.c.l.b16 %v244
      %v510 = vunpack.c.l.b16 %v245
      %v511 = vunpack.c.l.b16 %v246
      %v512 = vunpack.c.l.b16 %v247
      %v513 = vunpack.c.l.b16 %v248
      %v514 = vunpack.c.l.b16 %v249
      %v515 = vunpack.c.l.b16 %v250
      %v516 = vunpack.c.l.b16 %v251
      %v517 = vunpack.c.l.b16 %v252
      %v518 = vunpack.c.l.b16 %v253
      %v519 = vunpack.c.l.b16 %v254
      %v520 = vunpack.c.l.b16 %v255
      %v521 = vunpack.c.l.b16 %v256
      %v522 = vunpack.c.l.b16 %v257
      %v523 = vunpack.c.l.b16 %v258
      %v524 = vunpack.c.l.b16 %v259
      %v525 = vunpack.c.l.b16 %v260
      %v526 = vunpack.c.l.b16 %v261
      %v527 = vunpack.c.l.b16 %v262
      %v528 = vunpack.c.l.b16 %v263
      %v529 = vunpack.c.l.b16 %v264
      %v530 = vunpack.c.l.b16 %v265
      %v531 = vunpack.c.l.b16 %v266
      %v532 = vunpack.c.l.b16 %v267
      %v533 = vunpack.c.l.b16 %v268
      %v534 = vunpack.c.l.b16 %v269
      %v535 = vunpack.c.l.b16 %v270
      %v536 = vunpack.c.l.b16 %v271
      %v537 = vunpack.c.l.b16 %v272
      %v538 = vunpack.c.l.b16 %v273
      %v539 = vunpack.c.l.b16 %v274
      %v540 = vunpack.c.l.b16 %v275
      %v541 = vunpack.c.l.b16 %v276
      %v542 = vunpack.c.l.b16 %v277
      %v543 = vunpack.c.l.b16 %v278
      %v544 = vunpack.c.l.b16 %v279
      %v545 = vunpack.c.l.b16 %v280
      %v546 = vunpack.c.l.b16 %v281
      %v547 = vunpack.c.l.b16 %v282
      %v548 = vunpack.c.l.b16 %v283
      %v549 = vunpack.c.l.b16 %v284
      %v550 = vunpack.c.l.b16 %v285
      %v551 = vunpack.c.l.b16 %v286
      %v552 = vunpack.c.l.b16 %v287
      %v553 = vunpack.c.l.b16 %v288
      %v554 = vunpack.c.l.b16 %v289
      %v555 = vunpack.c.l.b16 %v290
      %v556 = vunpack.c.l.b16 %v291
      %v557 = vunpack.c.l.b16 %v292
      %v558 = vunpack.c.l.b16 %v293
      %v559 = vunpack.c.l.b16 %v294
      %v560 = vunpack.c.l.b16 %v295
      %v561 = vunpack.c.l.b16 %v296
      %v562 = vunpack.c.l.b16 %v297
      %v563 = vunpack.c.l.b16 %v298
      %v564 = vunpack.c.l.b16 %v299
      %v565 = vunpack.c.l.b16 %v300
      %v566 = vunpack.c.l.b16 %v301
      %v567 = vunpack.c.l.b16 %v302
      %v568 = vpack.c.b16 %v441, %v440
      %v569 = vpack.c.b16 %v443, %v442
      %v570 = vpack.c.b16 %v445, %v444
      %v571 = vpack.c.b16 %v447, %v446
      %v572 = vpack.c.b16 %v449, %v448
      %v573 = vpack.c.b16 %v451, %v450
      %v574 = vpack.c.b16 %v453, %v452
      %v575 = vpack.c.b16 %v455, %v454
      %v576 = vpack.c.b16 %v457, %v456
      %v577 = vpack.c.b16 %v459, %v458
      %v578 = vpack.c.b16 %v461, %v460
      %v579 = vpack.c.b16 %v463, %v462
      %v580 = vpack.c.b16 %v465, %v464
      %v581 = vpack.c.b16 %v467, %v466
      %v582 = vpack.c.b16 %v469, %v468
      %v583 = vpack.c.b16 %v471, %v470
      %v584 = vpack.c.b16 %v473, %v472
      %v585 = vpack.c.b16 %v475, %v474
      %v586 = vpack.c.b16 %v477, %v476
      %v587 = vpack.c.b16 %v479, %v478
      %v588 = vpack.c.b16 %v481, %v480
      %v589 = vpack.c.b16 %v483, %v482
      %v590 = vpack.c.b16 %v485, %v484
      %v591 = vpack.c.b16 %v487, %v486
      %v592 = vpack.c.b16 %v489, %v488
      %v593 = vpack.c.b16 %v491, %v490
      %v594 = vpack.c.b16 %v493, %v492
      %v595 = vpack.c.b16 %v495, %v494
      %v596 = vpack.c.b16 %v497, %v496
      %v597 = vpack.c.b16 %v499, %v498
      %v598 = vpack.c.b16 %v501, %v500
      %v599 = vpack.c.b16 %v503, %v502
      %v600 = vpack.c.b16 %v505, %v504
      %v601 = vpack.c.b16 %v507, %v506
      %v602 = vpack.c.b16 %v509, %v508
      %v603 = vpack.c.b16 %v511, %v510
      %v604 = vpack.c.b16 %v513, %v512
      %v605 = vpack.c.b16 %v515, %v514
      %v606 = vpack.c.b16 %v517, %v516
      %v607 = vpack.c.b16 %v519, %v518
      %v608 = vpack.c.b16 %v521, %v520
      %v609 = vpack.c.b16 %v523, %v522
      %v610 = vpack.c.b16 %v525, %v524
      %v611 = vpack.c.b16 %v527, %v526
      %v612 = vpack.c.b16 %v529, %v528
      %v613 = vpack.c.b16 %v531, %v530
      %v614 = vpack.c.b16 %v533, %v532
      %v615 = vpack.c.b16 %v535, %v534
      %v616 = vpack.c.b16 %v537, %v536
      %v617 = vpack.c.b16 %v539, %v538
      %v618 = vpack.c.b16 %v541, %v540
      %v619 = vpack.c.b16 %v543, %v542
      %v620 = vpack.c.b16 %v545, %v544
      %v621 = vpack.c.b16 %v547, %v546
      %v622 = vpack.c.b16 %v549, %v548
      %v623 = vpack.c.b16 %v551, %v550
      %v624 = vpack.c.b16 %v553, %v552
      %v625 = vpack.c.b16 %v555, %v554
      %v626 = vpack.c.b16 %v557, %v556
      %v627 = vpack.c.b16 %v559, %v558
      %v628 = vpack.c.b16 %v561, %v560
      %v629 = vpack.c.b16 %v563, %v562
      %v630 = vpack.c.b16 %v565, %v564
      %v631 = vpack.c.b16 %v567, %v566
      %v634 = vunpack.c.l.b16 %v303
      %v635 = vunpack.c.l.b16 %v304
      %v636 = vpack.c.b16 %v635, %v634
      %vm638 = vcmask 130048
      %v640 = vsel %vm638, %v568, 0
      %v643 = vsel %vm638, %v569, 0
      %v646 = vsel %vm638, %v570, 0
      %v649 = vsel %vm638, %v571, 0
      %v652 = vsel %vm638, %v572, 0
      %v655 = vsel %vm638, %v573, 0
      %v658 = vsel %vm638, %v574, 0
      %v661 = vsel %vm638, %v575, 0
      %v664 = vsel %vm638, %v576, 0
      %v667 = vsel %vm638, %v577, 0
      %v670 = vsel %vm638, %v578, 0
      %v673 = vsel %vm638, %v579, 0
      %v676 = vsel %vm638, %v580, 0
      %v679 = vsel %vm638, %v581, 0
      %v682 = vsel %vm638, %v582, 0
      %v685 = vsel %vm638, %v583, 0
      %v688 = vsel %vm638, %v584, 0
      %v691 = vsel %vm638, %v585, 0
      %v694 = vsel %vm638, %v586, 0
      %v697 = vsel %vm638, %v587, 0
      %v700 = vsel %vm638, %v588, 0
      %v703 = vsel %vm638, %v589, 0
      %v706 = vsel %vm638, %v590, 0
      %v709 = vsel %vm638, %v591, 0
      %v712 = vsel %vm638, %v592, 0
      %v715 = vsel %vm638, %v593, 0
      %v718 = vsel %vm638, %v594, 0
      %v721 = vsel %vm638, %v595, 0
      %v724 = vsel %vm638, %v596, 0
      %v727 = vsel %vm638, %v597, 0
      %v730 = vsel %vm638, %v598, 0
      %v733 = vsel %vm638, %v599, 0
      %v736 = vsel %vm638, %v600, 0
      %v739 = vsel %vm638, %v601, 0
      %v742 = vsel %vm638, %v602, 0
      %v745 = vsel %vm638, %v603, 0
      %v748 = vsel %vm638, %v604, 0
      %v751 = vsel %vm638, %v605, 0
      %v754 = vsel %vm638, %v606, 0
      %v757 = vsel %vm638, %v607, 0
      %v760 = vsel %vm638, %v608, 0
      %v763 = vsel %vm638, %v609, 0
      %v766 = vsel %vm638, %v610, 0
      %v769 = vsel %vm638, %v611, 0
      %v772 = vsel %vm638, %v612, 0
      %v775 = vsel %vm638, %v613, 0
      %v778 = vsel %vm638, %v614, 0
      %v781 = vsel %vm638, %v615, 0
      %v784 = vsel %vm638, %v616, 0
      %v787 = vsel %vm638, %v617, 0
      %v790 = vsel %vm638, %v618, 0
      %v793 = vsel %vm638, %v619, 0
      %v796 = vsel %vm638, %v620, 0
      %v799 = vsel %vm638, %v621, 0
      %v802 = vsel %vm638, %v622, 0
      %v805 = vsel %vm638, %v623, 0
      %v808 = vsel %vm638, %v624, 0
      %v811 = vsel %vm638, %v625, 0
      %v814 = vsel %vm638, %v626, 0
      %v817 = vsel %vm638, %v627, 0
      %v820 = vsel %vm638, %v628, 0
      %v823 = vsel %vm638, %v629, 0
      %v826 = vsel %vm638, %v630, 0
      %v829 = vsel %vm638, %v631, 0
      %831 = vmatprep.subr.bf16.mxu0 0
      %832 = vmatpush1.bf16.msra.mxu0 0
      %833 = vmatprep.subr.bf16.mxu0 0
      %834 = vmatpush1.bf16.msra.mxu0 0
      %835 = vmatprep.subr.bf16.mxu0 0
      %836 = vmatpush1.bf16.msra.mxu0 0
      %837 = vmatprep.subr.bf16.mxu0 0
      %838 = vmatpush1.bf16.msra.mxu0 0
      %839 = vmatprep.subr.bf16.mxu0 0
      %840 = vmatpush1.bf16.msra.mxu0 0
      %841 = vmatprep.subr.bf16.mxu0 0
      %842 = vmatpush1.bf16.msra.mxu0 0
      %843 = vmatprep.subr.bf16.mxu0 0
      %844 = vmatpush1.bf16.msra.mxu0 0
      %845 = vmatprep.subr.bf16.mxu0 0
      %846 = vmatpush1.bf16.msra.mxu0 %v636
      %847 = vmatprep.subr.bf16.mxu0 0
      %848 = vmatpush2.bf16.msra.mxu0 0
      %849 = vmatprep.subr.bf16.mxu0 0
      %850 = vmatpush2.bf16.msra.mxu0 0
      %851 = vmatprep.subr.bf16.mxu0 0
      %852 = vmatpush2.bf16.msra.mxu0 0
      %853 = vmatprep.subr.bf16.mxu0 0
      %854 = vmatpush2.bf16.msra.mxu0 0
      %855 = vmatprep.subr.bf16.mxu0 0
      %856 = vmatpush2.bf16.msra.mxu0 0
      %857 = vmatprep.subr.bf16.mxu0 0
      %858 = vmatpush2.bf16.msra.mxu0 0
      %859 = vmatprep.subr.bf16.mxu0 0
      %860 = vmatpush2.bf16.msra.mxu0 0
      %861 = vmatprep.subr.bf16.mxu0 0
      %862 = vmatpush2.bf16.msra.mxu0 0
      %863 = vmatprep.mubr.bf16.mxu0 0
      %864 = vmatmul.mubr.bf16.gmra.mxu0 %v640
      %v865 = vpop.f32.mrf.mxu0
      %v866 = vadd.f32 %v310, %v865
      %v867 = vpop.f32.mrf.mxu0
      %v868 = vpop.f32.mrf.mxu0
      %v869 = vadd.f32 %v310, %v868
      %v870 = vpop.f32.mrf.mxu0
      %871 = vmatprep.mubr.bf16.mxu0 0
      %872 = vmatmul.mubr.bf16.gmra.mxu0 %v643
      %v873 = vpop.f32.mrf.mxu0
      %v874 = vadd.f32 %v310, %v873
      %v875 = vpop.f32.mrf.mxu0
      %v876 = vpop.f32.mrf.mxu0
      %v877 = vadd.f32 %v310, %v876
      %v878 = vpop.f32.mrf.mxu0
      %879 = vmatprep.mubr.bf16.mxu0 0
      %880 = vmatmul.mubr.bf16.gmra.mxu0 %v646
      %v881 = vpop.f32.mrf.mxu0
      %v882 = vadd.f32 %v310, %v881
      %v883 = vpop.f32.mrf.mxu0
      %v884 = vpop.f32.mrf.mxu0
      %v885 = vadd.f32 %v310, %v884
      %v886 = vpop.f32.mrf.mxu0
      %887 = vmatprep.mubr.bf16.mxu0 0
      %888 = vmatmul.mubr.bf16.gmra.mxu0 %v649
      %v889 = vpop.f32.mrf.mxu0
      %v890 = vadd.f32 %v310, %v889
      %v891 = vpop.f32.mrf.mxu0
      %v892 = vpop.f32.mrf.mxu0
      %v893 = vadd.f32 %v310, %v892
      %v894 = vpop.f32.mrf.mxu0
      %895 = vmatprep.mubr.bf16.mxu0 0
      %896 = vmatmul.mubr.bf16.gmra.mxu0 %v652
      %v897 = vpop.f32.mrf.mxu0
      %v898 = vadd.f32 %v310, %v897
      %v899 = vpop.f32.mrf.mxu0
      %v900 = vpop.f32.mrf.mxu0
      %v901 = vadd.f32 %v310, %v900
      %v902 = vpop.f32.mrf.mxu0
      %903 = vmatprep.mubr.bf16.mxu0 0
      %904 = vmatmul.mubr.bf16.gmra.mxu0 %v655
      %v905 = vpop.f32.mrf.mxu0
      %v906 = vadd.f32 %v310, %v905
      %v907 = vpop.f32.mrf.mxu0
      %v908 = vpop.f32.mrf.mxu0
      %v909 = vadd.f32 %v310, %v908
      %v910 = vpop.f32.mrf.mxu0
      %911 = vmatprep.mubr.bf16.mxu0 0
      %912 = vmatmul.mubr.bf16.gmra.mxu0 %v658
      %v913 = vpop.f32.mrf.mxu0
      %v914 = vadd.f32 %v310, %v913
      %v915 = vpop.f32.mrf.mxu0
      %v916 = vpop.f32.mrf.mxu0
      %v917 = vadd.f32 %v310, %v916
      %v918 = vpop.f32.mrf.mxu0
      %919 = vmatprep.mubr.bf16.mxu0 0
      %920 = vmatmul.mubr.bf16.gmra.mxu0 %v661
      %v921 = vpop.f32.mrf.mxu0
      %v922 = vadd.f32 %v310, %v921
      %v923 = vpop.f32.mrf.mxu0
      %v924 = vpop.f32.mrf.mxu0
      %v925 = vadd.f32 %v310, %v924
      %v926 = vpop.f32.mrf.mxu0
      %927 = vmatprep.mubr.bf16.mxu0 0
      %928 = vmatmul.mubr.bf16.gmra.mxu0 %v664
      %v929 = vpop.f32.mrf.mxu0
      %v930 = vadd.f32 %v310, %v929
      %v931 = vpop.f32.mrf.mxu0
      %v932 = vpop.f32.mrf.mxu0
      %v933 = vadd.f32 %v310, %v932
      %v934 = vpop.f32.mrf.mxu0
      %935 = vmatprep.mubr.bf16.mxu0 0
      %936 = vmatmul.mubr.bf16.gmra.mxu0 %v667
      %v937 = vpop.f32.mrf.mxu0
      %v938 = vadd.f32 %v310, %v937
      %v939 = vpop.f32.mrf.mxu0
      %v940 = vpop.f32.mrf.mxu0
      %v941 = vadd.f32 %v310, %v940
      %v942 = vpop.f32.mrf.mxu0
      %943 = vmatprep.mubr.bf16.mxu0 0
      %944 = vmatmul.mubr.bf16.gmra.mxu0 %v670
      %v945 = vpop.f32.mrf.mxu0
      %v946 = vadd.f32 %v310, %v945
      %v947 = vpop.f32.mrf.mxu0
      %v948 = vpop.f32.mrf.mxu0
      %v949 = vadd.f32 %v310, %v948
      %v950 = vpop.f32.mrf.mxu0
      %951 = vmatprep.mubr.bf16.mxu0 0
      %952 = vmatmul.mubr.bf16.gmra.mxu0 %v673
      %v953 = vpop.f32.mrf.mxu0
      %v954 = vadd.f32 %v310, %v953
      %v955 = vpop.f32.mrf.mxu0
      %v956 = vpop.f32.mrf.mxu0
      %v957 = vadd.f32 %v310, %v956
      %v958 = vpop.f32.mrf.mxu0
      %959 = vmatprep.mubr.bf16.mxu0 0
      %960 = vmatmul.mubr.bf16.gmra.mxu0 %v676
      %v961 = vpop.f32.mrf.mxu0
      %v962 = vadd.f32 %v310, %v961
      %v963 = vpop.f32.mrf.mxu0
      %v964 = vpop.f32.mrf.mxu0
      %v965 = vadd.f32 %v310, %v964
      %v966 = vpop.f32.mrf.mxu0
      %967 = vmatprep.mubr.bf16.mxu0 0
      %968 = vmatmul.mubr.bf16.gmra.mxu0 %v679
      %v969 = vpop.f32.mrf.mxu0
      %v970 = vadd.f32 %v310, %v969
      %v971 = vpop.f32.mrf.mxu0
      %v972 = vpop.f32.mrf.mxu0
      %v973 = vadd.f32 %v310, %v972
      %v974 = vpop.f32.mrf.mxu0
      %975 = vmatprep.mubr.bf16.mxu0 0
      %976 = vmatmul.mubr.bf16.gmra.mxu0 %v682
      %v977 = vpop.f32.mrf.mxu0
      %v978 = vadd.f32 %v310, %v977
      %v979 = vpop.f32.mrf.mxu0
      %v980 = vpop.f32.mrf.mxu0
      %v981 = vadd.f32 %v310, %v980
      %v982 = vpop.f32.mrf.mxu0
      %983 = vmatprep.mubr.bf16.mxu0 0
      %984 = vmatmul.mubr.bf16.gmra.mxu0 %v685
      %v985 = vpop.f32.mrf.mxu0
      %v986 = vadd.f32 %v310, %v985
      %v987 = vpop.f32.mrf.mxu0
      %v988 = vpop.f32.mrf.mxu0
      %v989 = vadd.f32 %v310, %v988
      %v990 = vpop.f32.mrf.mxu0
      %991 = vmatprep.mubr.bf16.mxu0 0
      %992 = vmatmul.mubr.bf16.gmra.mxu0 %v688
      %v993 = vpop.f32.mrf.mxu0
      %v994 = vadd.f32 %v310, %v993
      %v995 = vpop.f32.mrf.mxu0
      %v996 = vpop.f32.mrf.mxu0
      %v997 = vadd.f32 %v310, %v996
      %v998 = vpop.f32.mrf.mxu0
      %999 = vmatprep.mubr.bf16.mxu0 0
      %1000 = vmatmul.mubr.bf16.gmra.mxu0 %v691
      %v1001 = vpop.f32.mrf.mxu0
      %v1002 = vadd.f32 %v310, %v1001
      %v1003 = vpop.f32.mrf.mxu0
      %v1004 = vpop.f32.mrf.mxu0
      %v1005 = vadd.f32 %v310, %v1004
      %v1006 = vpop.f32.mrf.mxu0
      %1007 = vmatprep.mubr.bf16.mxu0 0
      %1008 = vmatmul.mubr.bf16.gmra.mxu0 %v694
      %v1009 = vpop.f32.mrf.mxu0
      %v1010 = vadd.f32 %v310, %v1009
      %v1011 = vpop.f32.mrf.mxu0
      %v1012 = vpop.f32.mrf.mxu0
      %v1013 = vadd.f32 %v310, %v1012
      %v1014 = vpop.f32.mrf.mxu0
      %1015 = vmatprep.mubr.bf16.mxu0 0
      %1016 = vmatmul.mubr.bf16.gmra.mxu0 %v697
      %v1017 = vpop.f32.mrf.mxu0
      %v1018 = vadd.f32 %v310, %v1017
      %v1019 = vpop.f32.mrf.mxu0
      %v1020 = vpop.f32.mrf.mxu0
      %v1021 = vadd.f32 %v310, %v1020
      %v1022 = vpop.f32.mrf.mxu0
      %1023 = vmatprep.mubr.bf16.mxu0 0
      %1024 = vmatmul.mubr.bf16.gmra.mxu0 %v700
      %v1025 = vpop.f32.mrf.mxu0
      %v1026 = vadd.f32 %v310, %v1025
      %v1027 = vpop.f32.mrf.mxu0
      %v1028 = vpop.f32.mrf.mxu0
      %v1029 = vadd.f32 %v310, %v1028
      %v1030 = vpop.f32.mrf.mxu0
      %1031 = vmatprep.mubr.bf16.mxu0 0
      %1032 = vmatmul.mubr.bf16.gmra.mxu0 %v703
      %v1033 = vpop.f32.mrf.mxu0
      %v1034 = vadd.f32 %v310, %v1033
      %v1035 = vpop.f32.mrf.mxu0
      %v1036 = vpop.f32.mrf.mxu0
      %v1037 = vadd.f32 %v310, %v1036
      %v1038 = vpop.f32.mrf.mxu0
      %1039 = vmatprep.mubr.bf16.mxu0 0
      %1040 = vmatmul.mubr.bf16.gmra.mxu0 %v706
      %v1041 = vpop.f32.mrf.mxu0
      %v1042 = vadd.f32 %v310, %v1041
      %v1043 = vpop.f32.mrf.mxu0
      %v1044 = vpop.f32.mrf.mxu0
      %v1045 = vadd.f32 %v310, %v1044
      %v1046 = vpop.f32.mrf.mxu0
      %1047 = vmatprep.mubr.bf16.mxu0 0
      %1048 = vmatmul.mubr.bf16.gmra.mxu0 %v709
      %v1049 = vpop.f32.mrf.mxu0
      %v1050 = vadd.f32 %v310, %v1049
      %v1051 = vpop.f32.mrf.mxu0
      %v1052 = vpop.f32.mrf.mxu0
      %v1053 = vadd.f32 %v310, %v1052
      %v1054 = vpop.f32.mrf.mxu0
      %1055 = vmatprep.mubr.bf16.mxu0 0
      %1056 = vmatmul.mubr.bf16.gmra.mxu0 %v712
      %v1057 = vpop.f32.mrf.mxu0
      %v1058 = vadd.f32 %v310, %v1057
      %v1059 = vpop.f32.mrf.mxu0
      %v1060 = vpop.f32.mrf.mxu0
      %v1061 = vadd.f32 %v310, %v1060
      %v1062 = vpop.f32.mrf.mxu0
      %1063 = vmatprep.mubr.bf16.mxu0 0
      %1064 = vmatmul.mubr.bf16.gmra.mxu0 %v715
      %v1065 = vpop.f32.mrf.mxu0
      %v1066 = vadd.f32 %v310, %v1065
      %v1067 = vpop.f32.mrf.mxu0
      %v1068 = vpop.f32.mrf.mxu0
      %v1069 = vadd.f32 %v310, %v1068
      %v1070 = vpop.f32.mrf.mxu0
      %1071 = vmatprep.mubr.bf16.mxu0 0
      %1072 = vmatmul.mubr.bf16.gmra.mxu0 %v718
      %v1073 = vpop.f32.mrf.mxu0
      %v1074 = vadd.f32 %v310, %v1073
      %v1075 = vpop.f32.mrf.mxu0
      %v1076 = vpop.f32.mrf.mxu0
      %v1077 = vadd.f32 %v310, %v1076
      %v1078 = vpop.f32.mrf.mxu0
      %1079 = vmatprep.mubr.bf16.mxu0 0
      %1080 = vmatmul.mubr.bf16.gmra.mxu0 %v721
      %v1081 = vpop.f32.mrf.mxu0
      %v1082 = vadd.f32 %v310, %v1081
      %v1083 = vpop.f32.mrf.mxu0
      %v1084 = vpop.f32.mrf.mxu0
      %v1085 = vadd.f32 %v310, %v1084
      %v1086 = vpop.f32.mrf.mxu0
      %1087 = vmatprep.mubr.bf16.mxu0 0
      %1088 = vmatmul.mubr.bf16.gmra.mxu0 %v724
      %v1089 = vpop.f32.mrf.mxu0
      %v1090 = vadd.f32 %v310, %v1089
      %v1091 = vpop.f32.mrf.mxu0
      %v1092 = vpop.f32.mrf.mxu0
      %v1093 = vadd.f32 %v310, %v1092
      %v1094 = vpop.f32.mrf.mxu0
      %1095 = vmatprep.mubr.bf16.mxu0 0
      %1096 = vmatmul.mubr.bf16.gmra.mxu0 %v727
      %v1097 = vpop.f32.mrf.mxu0
      %v1098 = vadd.f32 %v310, %v1097
      %v1099 = vpop.f32.mrf.mxu0
      %v1100 = vpop.f32.mrf.mxu0
      %v1101 = vadd.f32 %v310, %v1100
      %v1102 = vpop.f32.mrf.mxu0
      %1103 = vmatprep.mubr.bf16.mxu0 0
      %1104 = vmatmul.mubr.bf16.gmra.mxu0 %v730
      %v1105 = vpop.f32.mrf.mxu0
      %v1106 = vadd.f32 %v310, %v1105
      %v1107 = vpop.f32.mrf.mxu0
      %v1108 = vpop.f32.mrf.mxu0
      %v1109 = vadd.f32 %v310, %v1108
      %v1110 = vpop.f32.mrf.mxu0
      %1111 = vmatprep.mubr.bf16.mxu0 0
      %1112 = vmatmul.mubr.bf16.gmra.mxu0 %v733
      %v1113 = vpop.f32.mrf.mxu0
      %v1114 = vadd.f32 %v310, %v1113
      %v1115 = vpop.f32.mrf.mxu0
      %v1116 = vpop.f32.mrf.mxu0
      %v1117 = vadd.f32 %v310, %v1116
      %v1118 = vpop.f32.mrf.mxu0
      %1119 = vmatprep.mubr.bf16.mxu0 0
      %1120 = vmatmul.mubr.bf16.gmra.mxu0 %v736
      %v1121 = vpop.f32.mrf.mxu0
      %v1122 = vadd.f32 %v310, %v1121
      %v1123 = vpop.f32.mrf.mxu0
      %v1124 = vpop.f32.mrf.mxu0
      %v1125 = vadd.f32 %v310, %v1124
      %v1126 = vpop.f32.mrf.mxu0
      %1127 = vmatprep.mubr.bf16.mxu0 0
      %1128 = vmatmul.mubr.bf16.gmra.mxu0 %v739
      %v1129 = vpop.f32.mrf.mxu0
      %v1130 = vadd.f32 %v310, %v1129
      %v1131 = vpop.f32.mrf.mxu0
      %v1132 = vpop.f32.mrf.mxu0
      %v1133 = vadd.f32 %v310, %v1132
      %v1134 = vpop.f32.mrf.mxu0
      %1135 = vmatprep.mubr.bf16.mxu0 0
      %1136 = vmatmul.mubr.bf16.gmra.mxu0 %v742
      %v1137 = vpop.f32.mrf.mxu0
      %v1138 = vadd.f32 %v310, %v1137
      %v1139 = vpop.f32.mrf.mxu0
      %v1140 = vpop.f32.mrf.mxu0
      %v1141 = vadd.f32 %v310, %v1140
      %v1142 = vpop.f32.mrf.mxu0
      %1143 = vmatprep.mubr.bf16.mxu0 0
      %1144 = vmatmul.mubr.bf16.gmra.mxu0 %v745
      %v1145 = vpop.f32.mrf.mxu0
      %v1146 = vadd.f32 %v310, %v1145
      %v1147 = vpop.f32.mrf.mxu0
      %v1148 = vpop.f32.mrf.mxu0
      %v1149 = vadd.f32 %v310, %v1148
      %v1150 = vpop.f32.mrf.mxu0
      %1151 = vmatprep.mubr.bf16.mxu0 0
      %1152 = vmatmul.mubr.bf16.gmra.mxu0 %v748
      %v1153 = vpop.f32.mrf.mxu0
      %v1154 = vadd.f32 %v310, %v1153
      %v1155 = vpop.f32.mrf.mxu0
      %v1156 = vpop.f32.mrf.mxu0
      %v1157 = vadd.f32 %v310, %v1156
      %v1158 = vpop.f32.mrf.mxu0
      %1159 = vmatprep.mubr.bf16.mxu0 0
      %1160 = vmatmul.mubr.bf16.gmra.mxu0 %v751
      %v1161 = vpop.f32.mrf.mxu0
      %v1162 = vadd.f32 %v310, %v1161
      %v1163 = vpop.f32.mrf.mxu0
      %v1164 = vpop.f32.mrf.mxu0
      %v1165 = vadd.f32 %v310, %v1164
      %v1166 = vpop.f32.mrf.mxu0
      %1167 = vmatprep.mubr.bf16.mxu0 0
      %1168 = vmatmul.mubr.bf16.gmra.mxu0 %v754
      %v1169 = vpop.f32.mrf.mxu0
      %v1170 = vadd.f32 %v310, %v1169
      %v1171 = vpop.f32.mrf.mxu0
      %v1172 = vpop.f32.mrf.mxu0
      %v1173 = vadd.f32 %v310, %v1172
      %v1174 = vpop.f32.mrf.mxu0
      %1175 = vmatprep.mubr.bf16.mxu0 0
      %1176 = vmatmul.mubr.bf16.gmra.mxu0 %v757
      %v1177 = vpop.f32.mrf.mxu0
      %v1178 = vadd.f32 %v310, %v1177
      %v1179 = vpop.f32.mrf.mxu0
      %v1180 = vpop.f32.mrf.mxu0
      %v1181 = vadd.f32 %v310, %v1180
      %v1182 = vpop.f32.mrf.mxu0
      %1183 = vmatprep.mubr.bf16.mxu0 0
      %1184 = vmatmul.mubr.bf16.gmra.mxu0 %v760
      %v1185 = vpop.f32.mrf.mxu0
      %v1186 = vadd.f32 %v310, %v1185
      %v1187 = vpop.f32.mrf.mxu0
      %v1188 = vpop.f32.mrf.mxu0
      %v1189 = vadd.f32 %v310, %v1188
      %v1190 = vpop.f32.mrf.mxu0
      %1191 = vmatprep.mubr.bf16.mxu0 0
      %1192 = vmatmul.mubr.bf16.gmra.mxu0 %v763
      %v1193 = vpop.f32.mrf.mxu0
      %v1194 = vadd.f32 %v310, %v1193
      %v1195 = vpop.f32.mrf.mxu0
      %v1196 = vpop.f32.mrf.mxu0
      %v1197 = vadd.f32 %v310, %v1196
      %v1198 = vpop.f32.mrf.mxu0
      %1199 = vmatprep.mubr.bf16.mxu0 0
      %1200 = vmatmul.mubr.bf16.gmra.mxu0 %v766
      %v1201 = vpop.f32.mrf.mxu0
      %v1202 = vadd.f32 %v310, %v1201
      %v1203 = vpop.f32.mrf.mxu0
      %v1204 = vpop.f32.mrf.mxu0
      %v1205 = vadd.f32 %v310, %v1204
      %v1206 = vpop.f32.mrf.mxu0
      %1207 = vmatprep.mubr.bf16.mxu0 0
      %1208 = vmatmul.mubr.bf16.gmra.mxu0 %v769
      %v1209 = vpop.f32.mrf.mxu0
      %v1210 = vadd.f32 %v310, %v1209
      %v1211 = vpop.f32.mrf.mxu0
      %v1212 = vpop.f32.mrf.mxu0
      %v1213 = vadd.f32 %v310, %v1212
      %v1214 = vpop.f32.mrf.mxu0
      %1215 = vmatprep.mubr.bf16.mxu0 0
      %1216 = vmatmul.mubr.bf16.gmra.mxu0 %v772
      %v1217 = vpop.f32.mrf.mxu0
      %v1218 = vadd.f32 %v310, %v1217
      %v1219 = vpop.f32.mrf.mxu0
      %v1220 = vpop.f32.mrf.mxu0
      %v1221 = vadd.f32 %v310, %v1220
      %v1222 = vpop.f32.mrf.mxu0
      %1223 = vmatprep.mubr.bf16.mxu0 0
      %1224 = vmatmul.mubr.bf16.gmra.mxu0 %v775
      %v1225 = vpop.f32.mrf.mxu0
      %v1226 = vadd.f32 %v310, %v1225
      %v1227 = vpop.f32.mrf.mxu0
      %v1228 = vpop.f32.mrf.mxu0
      %v1229 = vadd.f32 %v310, %v1228
      %v1230 = vpop.f32.mrf.mxu0
      %1231 = vmatprep.mubr.bf16.mxu0 0
      %1232 = vmatmul.mubr.bf16.gmra.mxu0 %v778
      %v1233 = vpop.f32.mrf.mxu0
      %v1234 = vadd.f32 %v310, %v1233
      %v1235 = vpop.f32.mrf.mxu0
      %v1236 = vpop.f32.mrf.mxu0
      %v1237 = vadd.f32 %v310, %v1236
      %v1238 = vpop.f32.mrf.mxu0
      %1239 = vmatprep.mubr.bf16.mxu0 0
      %1240 = vmatmul.mubr.bf16.gmra.mxu0 %v781
      %v1241 = vpop.f32.mrf.mxu0
      %v1242 = vadd.f32 %v310, %v1241
      %v1243 = vpop.f32.mrf.mxu0
      %v1244 = vpop.f32.mrf.mxu0
      %v1245 = vadd.f32 %v310, %v1244
      %v1246 = vpop.f32.mrf.mxu0
      %1247 = vmatprep.mubr.bf16.mxu0 0
      %1248 = vmatmul.mubr.bf16.gmra.mxu0 %v784
      %v1249 = vpop.f32.mrf.mxu0
      %v1250 = vadd.f32 %v310, %v1249
      %v1251 = vpop.f32.mrf.mxu0
      %v1252 = vpop.f32.mrf.mxu0
      %v1253 = vadd.f32 %v310, %v1252
      %v1254 = vpop.f32.mrf.mxu0
      %1255 = vmatprep.mubr.bf16.mxu0 0
      %1256 = vmatmul.mubr.bf16.gmra.mxu0 %v787
      %v1257 = vpop.f32.mrf.mxu0
      %v1258 = vadd.f32 %v310, %v1257
      %v1259 = vpop.f32.mrf.mxu0
      %v1260 = vpop.f32.mrf.mxu0
      %v1261 = vadd.f32 %v310, %v1260
      %v1262 = vpop.f32.mrf.mxu0
      %1263 = vmatprep.mubr.bf16.mxu0 0
      %1264 = vmatmul.mubr.bf16.gmra.mxu0 %v790
      %v1265 = vpop.f32.mrf.mxu0
      %v1266 = vadd.f32 %v310, %v1265
      %v1267 = vpop.f32.mrf.mxu0
      %v1268 = vpop.f32.mrf.mxu0
      %v1269 = vadd.f32 %v310, %v1268
      %v1270 = vpop.f32.mrf.mxu0
      %1271 = vmatprep.mubr.bf16.mxu0 0
      %1272 = vmatmul.mubr.bf16.gmra.mxu0 %v793
      %v1273 = vpop.f32.mrf.mxu0
      %v1274 = vadd.f32 %v310, %v1273
      %v1275 = vpop.f32.mrf.mxu0
      %v1276 = vpop.f32.mrf.mxu0
      %v1277 = vadd.f32 %v310, %v1276
      %v1278 = vpop.f32.mrf.mxu0
      %1279 = vmatprep.mubr.bf16.mxu0 0
      %1280 = vmatmul.mubr.bf16.gmra.mxu0 %v796
      %v1281 = vpop.f32.mrf.mxu0
      %v1282 = vadd.f32 %v310, %v1281
      %v1283 = vpop.f32.mrf.mxu0
      %v1284 = vpop.f32.mrf.mxu0
      %v1285 = vadd.f32 %v310, %v1284
      %v1286 = vpop.f32.mrf.mxu0
      %1287 = vmatprep.mubr.bf16.mxu0 0
      %1288 = vmatmul.mubr.bf16.gmra.mxu0 %v799
      %v1289 = vpop.f32.mrf.mxu0
      %v1290 = vadd.f32 %v310, %v1289
      %v1291 = vpop.f32.mrf.mxu0
      %v1292 = vpop.f32.mrf.mxu0
      %v1293 = vadd.f32 %v310, %v1292
      %v1294 = vpop.f32.mrf.mxu0
      %1295 = vmatprep.mubr.bf16.mxu0 0
      %1296 = vmatmul.mubr.bf16.gmra.mxu0 %v802
      %v1297 = vpop.f32.mrf.mxu0
      %v1298 = vadd.f32 %v310, %v1297
      %v1299 = vpop.f32.mrf.mxu0
      %v1300 = vpop.f32.mrf.mxu0
      %v1301 = vadd.f32 %v310, %v1300
      %v1302 = vpop.f32.mrf.mxu0
      %1303 = vmatprep.mubr.bf16.mxu0 0
      %1304 = vmatmul.mubr.bf16.gmra.mxu0 %v805
      %v1305 = vpop.f32.mrf.mxu0
      %v1306 = vadd.f32 %v310, %v1305
      %v1307 = vpop.f32.mrf.mxu0
      %v1308 = vpop.f32.mrf.mxu0
      %v1309 = vadd.f32 %v310, %v1308
      %v1310 = vpop.f32.mrf.mxu0
      %1311 = vmatprep.mubr.bf16.mxu0 0
      %1312 = vmatmul.mubr.bf16.gmra.mxu0 %v808
      %v1313 = vpop.f32.mrf.mxu0
      %v1314 = vadd.f32 %v310, %v1313
      %v1315 = vpop.f32.mrf.mxu0
      %v1316 = vpop.f32.mrf.mxu0
      %v1317 = vadd.f32 %v310, %v1316
      %v1318 = vpop.f32.mrf.mxu0
      %1319 = vmatprep.mubr.bf16.mxu0 0
      %1320 = vmatmul.mubr.bf16.gmra.mxu0 %v811
      %v1321 = vpop.f32.mrf.mxu0
      %v1322 = vadd.f32 %v310, %v1321
      %v1323 = vpop.f32.mrf.mxu0
      %v1324 = vpop.f32.mrf.mxu0
      %v1325 = vadd.f32 %v310, %v1324
      %v1326 = vpop.f32.mrf.mxu0
      %1327 = vmatprep.mubr.bf16.mxu0 0
      %1328 = vmatmul.mubr.bf16.gmra.mxu0 %v814
      %v1329 = vpop.f32.mrf.mxu0
      %v1330 = vadd.f32 %v310, %v1329
      %v1331 = vpop.f32.mrf.mxu0
      %v1332 = vpop.f32.mrf.mxu0
      %v1333 = vadd.f32 %v310, %v1332
      %v1334 = vpop.f32.mrf.mxu0
      %1335 = vmatprep.mubr.bf16.mxu0 0
      %1336 = vmatmul.mubr.bf16.gmra.mxu0 %v817
      %v1337 = vpop.f32.mrf.mxu0
      %v1338 = vadd.f32 %v310, %v1337
      %v1339 = vpop.f32.mrf.mxu0
      %v1340 = vpop.f32.mrf.mxu0
      %v1341 = vadd.f32 %v310, %v1340
      %v1342 = vpop.f32.mrf.mxu0
      %1343 = vmatprep.mubr.bf16.mxu0 0
      %1344 = vmatmul.mubr.bf16.gmra.mxu0 %v820
      %v1345 = vpop.f32.mrf.mxu0
      %v1346 = vadd.f32 %v310, %v1345
      %v1347 = vpop.f32.mrf.mxu0
      %v1348 = vpop.f32.mrf.mxu0
      %v1349 = vadd.f32 %v310, %v1348
      %v1350 = vpop.f32.mrf.mxu0
      %1351 = vmatprep.mubr.bf16.mxu0 0
      %1352 = vmatmul.mubr.bf16.gmra.mxu0 %v823
      %v1353 = vpop.f32.mrf.mxu0
      %v1354 = vadd.f32 %v310, %v1353
      %v1355 = vpop.f32.mrf.mxu0
      %v1356 = vpop.f32.mrf.mxu0
      %v1357 = vadd.f32 %v310, %v1356
      %v1358 = vpop.f32.mrf.mxu0
      %1359 = vmatprep.mubr.bf16.mxu0 0
      %1360 = vmatmul.mubr.bf16.gmra.mxu0 %v826
      %v1361 = vpop.f32.mrf.mxu0
      %v1362 = vadd.f32 %v310, %v1361
      %v1363 = vpop.f32.mrf.mxu0
      %v1364 = vpop.f32.mrf.mxu0
      %v1365 = vadd.f32 %v310, %v1364
      %v1366 = vpop.f32.mrf.mxu0
      %1367 = vmatprep.mubr.bf16.mxu0 0
      %1368 = vmatmul.mubr.bf16.gmra.mxu0 %v829
      %v1369 = vpop.f32.mrf.mxu0
      %v1370 = vadd.f32 %v310, %v1369
      %v1371 = vpop.f32.mrf.mxu0
      %v1372 = vpop.f32.mrf.mxu0
      %v1373 = vadd.f32 %v310, %v1372
      %v1374 = vpop.f32.mrf.mxu0
      %1375 = vdwg.mxu0
      %vm1376 = vcmp.gt.f32.partialorder %v866, 0.0
      %vm1377 = vcmp.gt.f32.partialorder %v869, 0.0
      %vm1378 = vcmp.gt.f32.partialorder %v874, 0.0
      %vm1379 = vcmp.gt.f32.partialorder %v877, 0.0
      %vm1380 = vcmp.gt.f32.partialorder %v882, 0.0
      %vm1381 = vcmp.gt.f32.partialorder %v885, 0.0
      %vm1382 = vcmp.gt.f32.partialorder %v890, 0.0
      %vm1383 = vcmp.gt.f32.partialorder %v893, 0.0
      %vm1384 = vcmp.gt.f32.partialorder %v898, 0.0
      %vm1385 = vcmp.gt.f32.partialorder %v901, 0.0
      %vm1386 = vcmp.gt.f32.partialorder %v906, 0.0
      %vm1387 = vcmp.gt.f32.partialorder %v909, 0.0
      %vm1388 = vcmp.gt.f32.partialorder %v914, 0.0
      %vm1389 = vcmp.gt.f32.partialorder %v917, 0.0
      %vm1390 = vcmp.gt.f32.partialorder %v922, 0.0
      %vm1391 = vcmp.gt.f32.partialorder %v925, 0.0
      %vm1392 = vcmp.gt.f32.partialorder %v930, 0.0
      %vm1393 = vcmp.gt.f32.partialorder %v933, 0.0
      %vm1394 = vcmp.gt.f32.partialorder %v938, 0.0
      %vm1395 = vcmp.gt.f32.partialorder %v941, 0.0
      %vm1396 = vcmp.gt.f32.partialorder %v946, 0.0
      %vm1397 = vcmp.gt.f32.partialorder %v949, 0.0
      %vm1398 = vcmp.gt.f32.partialorder %v954, 0.0
      %vm1399 = vcmp.gt.f32.partialorder %v957, 0.0
      %vm1400 = vcmp.gt.f32.partialorder %v962, 0.0
      %vm1401 = vcmp.gt.f32.partialorder %v965, 0.0
      %vm1402 = vcmp.gt.f32.partialorder %v970, 0.0
      %vm1403 = vcmp.gt.f32.partialorder %v973, 0.0
      %vm1404 = vcmp.gt.f32.partialorder %v978, 0.0
      %vm1405 = vcmp.gt.f32.partialorder %v981, 0.0
      %vm1406 = vcmp.gt.f32.partialorder %v986, 0.0
      %vm1407 = vcmp.gt.f32.partialorder %v989, 0.0
      %vm1408 = vcmp.gt.f32.partialorder %v994, 0.0
      %vm1409 = vcmp.gt.f32.partialorder %v997, 0.0
      %vm1410 = vcmp.gt.f32.partialorder %v1002, 0.0
      %vm1411 = vcmp.gt.f32.partialorder %v1005, 0.0
      %vm1412 = vcmp.gt.f32.partialorder %v1010, 0.0
      %vm1413 = vcmp.gt.f32.partialorder %v1013, 0.0
      %vm1414 = vcmp.gt.f32.partialorder %v1018, 0.0
      %vm1415 = vcmp.gt.f32.partialorder %v1021, 0.0
      %vm1416 = vcmp.gt.f32.partialorder %v1026, 0.0
      %vm1417 = vcmp.gt.f32.partialorder %v1029, 0.0
      %vm1418 = vcmp.gt.f32.partialorder %v1034, 0.0
      %vm1419 = vcmp.gt.f32.partialorder %v1037, 0.0
      %vm1420 = vcmp.gt.f32.partialorder %v1042, 0.0
      %vm1421 = vcmp.gt.f32.partialorder %v1045, 0.0
      %vm1422 = vcmp.gt.f32.partialorder %v1050, 0.0
      %vm1423 = vcmp.gt.f32.partialorder %v1053, 0.0
      %vm1424 = vcmp.gt.f32.partialorder %v1058, 0.0
      %vm1425 = vcmp.gt.f32.partialorder %v1061, 0.0
      %vm1426 = vcmp.gt.f32.partialorder %v1066, 0.0
      %vm1427 = vcmp.gt.f32.partialorder %v1069, 0.0
      %vm1428 = vcmp.gt.f32.partialorder %v1074, 0.0
      %vm1429 = vcmp.gt.f32.partialorder %v1077, 0.0
      %vm1430 = vcmp.gt.f32.partialorder %v1082, 0.0
      %vm1431 = vcmp.gt.f32.partialorder %v1085, 0.0
      %vm1432 = vcmp.gt.f32.partialorder %v1090, 0.0
      %vm1433 = vcmp.gt.f32.partialorder %v1093, 0.0
      %vm1434 = vcmp.gt.f32.partialorder %v1098, 0.0
      %vm1435 = vcmp.gt.f32.partialorder %v1101, 0.0
      %vm1436 = vcmp.gt.f32.partialorder %v1106, 0.0
      %vm1437 = vcmp.gt.f32.partialorder %v1109, 0.0
      %vm1438 = vcmp.gt.f32.partialorder %v1114, 0.0
      %vm1439 = vcmp.gt.f32.partialorder %v1117, 0.0
      %vm1440 = vcmp.gt.f32.partialorder %v1122, 0.0
      %vm1441 = vcmp.gt.f32.partialorder %v1125, 0.0
      %vm1442 = vcmp.gt.f32.partialorder %v1130, 0.0
      %vm1443 = vcmp.gt.f32.partialorder %v1133, 0.0
      %vm1444 = vcmp.gt.f32.partialorder %v1138, 0.0
      %vm1445 = vcmp.gt.f32.partialorder %v1141, 0.0
      %vm1446 = vcmp.gt.f32.partialorder %v1146, 0.0
      %vm1447 = vcmp.gt.f32.partialorder %v1149, 0.0
      %vm1448 = vcmp.gt.f32.partialorder %v1154, 0.0
      %vm1449 = vcmp.gt.f32.partialorder %v1157, 0.0
      %vm1450 = vcmp.gt.f32.partialorder %v1162, 0.0
      %vm1451 = vcmp.gt.f32.partialorder %v1165, 0.0
      %vm1452 = vcmp.gt.f32.partialorder %v1170, 0.0
      %vm1453 = vcmp.gt.f32.partialorder %v1173, 0.0
      %vm1454 = vcmp.gt.f32.partialorder %v1178, 0.0
      %vm1455 = vcmp.gt.f32.partialorder %v1181, 0.0
      %vm1456 = vcmp.gt.f32.partialorder %v1186, 0.0
      %vm1457 = vcmp.gt.f32.partialorder %v1189, 0.0
      %vm1458 = vcmp.gt.f32.partialorder %v1194, 0.0
      %vm1459 = vcmp.gt.f32.partialorder %v1197, 0.0
      %vm1460 = vcmp.gt.f32.partialorder %v1202, 0.0
      %vm1461 = vcmp.gt.f32.partialorder %v1205, 0.0
      %vm1462 = vcmp.gt.f32.partialorder %v1210, 0.0
      %vm1463 = vcmp.gt.f32.partialorder %v1213, 0.0
      %vm1464 = vcmp.gt.f32.partialorder %v1218, 0.0
      %vm1465 = vcmp.gt.f32.partialorder %v1221, 0.0
      %vm1466 = vcmp.gt.f32.partialorder %v1226, 0.0
      %vm1467 = vcmp.gt.f32.partialorder %v1229, 0.0
      %vm1468 = vcmp.gt.f32.partialorder %v1234, 0.0
      %vm1469 = vcmp.gt.f32.partialorder %v1237, 0.0
      %vm1470 = vcmp.gt.f32.partialorder %v1242, 0.0
      %vm1471 = vcmp.gt.f32.partialorder %v1245, 0.0
      %vm1472 = vcmp.gt.f32.partialorder %v1250, 0.0
      %vm1473 = vcmp.gt.f32.partialorder %v1253, 0.0
      %vm1474 = vcmp.gt.f32.partialorder %v1258, 0.0
      %vm1475 = vcmp.gt.f32.partialorder %v1261, 0.0
      %vm1476 = vcmp.gt.f32.partialorder %v1266, 0.0
      %vm1477 = vcmp.gt.f32.partialorder %v1269, 0.0
      %vm1478 = vcmp.gt.f32.partialorder %v1274, 0.0
      %vm1479 = vcmp.gt.f32.partialorder %v1277, 0.0
      %vm1480 = vcmp.gt.f32.partialorder %v1282, 0.0
      %vm1481 = vcmp.gt.f32.partialorder %v1285, 0.0
      %vm1482 = vcmp.gt.f32.partialorder %v1290, 0.0
      %vm1483 = vcmp.gt.f32.partialorder %v1293, 0.0
      %vm1484 = vcmp.gt.f32.partialorder %v1298, 0.0
      %vm1485 = vcmp.gt.f32.partialorder %v1301, 0.0
      %vm1486 = vcmp.gt.f32.partialorder %v1306, 0.0
      %vm1487 = vcmp.gt.f32.partialorder %v1309, 0.0
      %vm1488 = vcmp.gt.f32.partialorder %v1314, 0.0
      %vm1489 = vcmp.gt.f32.partialorder %v1317, 0.0
      %vm1490 = vcmp.gt.f32.partialorder %v1322, 0.0
      %vm1491 = vcmp.gt.f32.partialorder %v1325, 0.0
      %vm1492 = vcmp.gt.f32.partialorder %v1330, 0.0
      %vm1493 = vcmp.gt.f32.partialorder %v1333, 0.0
      %vm1494 = vcmp.gt.f32.partialorder %v1338, 0.0
      %vm1495 = vcmp.gt.f32.partialorder %v1341, 0.0
      %vm1496 = vcmp.gt.f32.partialorder %v1346, 0.0
      %vm1497 = vcmp.gt.f32.partialorder %v1349, 0.0
      %vm1498 = vcmp.gt.f32.partialorder %v1354, 0.0
      %vm1499 = vcmp.gt.f32.partialorder %v1357, 0.0
      %vm1500 = vcmp.gt.f32.partialorder %v1362, 0.0
      %vm1501 = vcmp.gt.f32.partialorder %v1365, 0.0
      %vm1502 = vcmp.gt.f32.partialorder %v1370, 0.0
      %vm1503 = vcmp.gt.f32.partialorder %v1373, 0.0
      %v1504 = vmul.f32 %v866, 0.1
      %v1505 = vmul.f32 %v869, 0.1
      %v1506 = vmul.f32 %v874, 0.1
      %v1507 = vmul.f32 %v877, 0.1
      %v1508 = vmul.f32 %v882, 0.1
      %v1509 = vmul.f32 %v885, 0.1
      %v1510 = vmul.f32 %v890, 0.1
      %v1511 = vmul.f32 %v893, 0.1
      %v1512 = vmul.f32 %v898, 0.1
      %v1513 = vmul.f32 %v901, 0.1
      %v1514 = vmul.f32 %v906, 0.1
      %v1515 = vmul.f32 %v909, 0.1
      %v1516 = vmul.f32 %v914, 0.1
      %v1517 = vmul.f32 %v917, 0.1
      %v1518 = vmul.f32 %v922, 0.1
      %v1519 = vmul.f32 %v925, 0.1
      %v1520 = vmul.f32 %v930, 0.1
      %v1521 = vmul.f32 %v933, 0.1
      %v1522 = vmul.f32 %v938, 0.1
      %v1523 = vmul.f32 %v941, 0.1
      %v1524 = vmul.f32 %v946, 0.1
      %v1525 = vmul.f32 %v949, 0.1
      %v1526 = vmul.f32 %v954, 0.1
      %v1527 = vmul.f32 %v957, 0.1
      %v1528 = vmul.f32 %v962, 0.1
      %v1529 = vmul.f32 %v965, 0.1
      %v1530 = vmul.f32 %v970, 0.1
      %v1531 = vmul.f32 %v973, 0.1
      %v1532 = vmul.f32 %v978, 0.1
      %v1533 = vmul.f32 %v981, 0.1
      %v1534 = vmul.f32 %v986, 0.1
      %v1535 = vmul.f32 %v989, 0.1
      %v1536 = vmul.f32 %v994, 0.1
      %v1537 = vmul.f32 %v997, 0.1
      %v1538 = vmul.f32 %v1002, 0.1
      %v1539 = vmul.f32 %v1005, 0.1
      %v1540 = vmul.f32 %v1010, 0.1
      %v1541 = vmul.f32 %v1013, 0.1
      %v1542 = vmul.f32 %v1018, 0.1
      %v1543 = vmul.f32 %v1021, 0.1
      %v1544 = vmul.f32 %v1026, 0.1
      %v1545 = vmul.f32 %v1029, 0.1
      %v1546 = vmul.f32 %v1034, 0.1
      %v1547 = vmul.f32 %v1037, 0.1
      %v1548 = vmul.f32 %v1042, 0.1
      %v1549 = vmul.f32 %v1045, 0.1
      %v1550 = vmul.f32 %v1050, 0.1
      %v1551 = vmul.f32 %v1053, 0.1
      %v1552 = vmul.f32 %v1058, 0.1
      %v1553 = vmul.f32 %v1061, 0.1
      %v1554 = vmul.f32 %v1066, 0.1
      %v1555 = vmul.f32 %v1069, 0.1
      %v1556 = vmul.f32 %v1074, 0.1
      %v1557 = vmul.f32 %v1077, 0.1
      %v1558 = vmul.f32 %v1082, 0.1
      %v1559 = vmul.f32 %v1085, 0.1
      %v1560 = vmul.f32 %v1090, 0.1
      %v1561 = vmul.f32 %v1093, 0.1
      %v1562 = vmul.f32 %v1098, 0.1
      %v1563 = vmul.f32 %v1101, 0.1
      %v1564 = vmul.f32 %v1106, 0.1
      %v1565 = vmul.f32 %v1109, 0.1
      %v1566 = vmul.f32 %v1114, 0.1
      %v1567 = vmul.f32 %v1117, 0.1
      %v1568 = vmul.f32 %v1122, 0.1
      %v1569 = vmul.f32 %v1125, 0.1
      %v1570 = vmul.f32 %v1130, 0.1
      %v1571 = vmul.f32 %v1133, 0.1
      %v1572 = vmul.f32 %v1138, 0.1
      %v1573 = vmul.f32 %v1141, 0.1
      %v1574 = vmul.f32 %v1146, 0.1
      %v1575 = vmul.f32 %v1149, 0.1
      %v1576 = vmul.f32 %v1154, 0.1
      %v1577 = vmul.f32 %v1157, 0.1
      %v1578 = vmul.f32 %v1162, 0.1
      %v1579 = vmul.f32 %v1165, 0.1
      %v1580 = vmul.f32 %v1170, 0.1
      %v1581 = vmul.f32 %v1173, 0.1
      %v1582 = vmul.f32 %v1178, 0.1
      %v1583 = vmul.f32 %v1181, 0.1
      %v1584 = vmul.f32 %v1186, 0.1
      %v1585 = vmul.f32 %v1189, 0.1
      %v1586 = vmul.f32 %v1194, 0.1
      %v1587 = vmul.f32 %v1197, 0.1
      %v1588 = vmul.f32 %v1202, 0.1
      %v1589 = vmul.f32 %v1205, 0.1
      %v1590 = vmul.f32 %v1210, 0.1
      %v1591 = vmul.f32 %v1213, 0.1
      %v1592 = vmul.f32 %v1218, 0.1
      %v1593 = vmul.f32 %v1221, 0.1
      %v1594 = vmul.f32 %v1226, 0.1
      %v1595 = vmul.f32 %v1229, 0.1
      %v1596 = vmul.f32 %v1234, 0.1
      %v1597 = vmul.f32 %v1237, 0.1
      %v1598 = vmul.f32 %v1242, 0.1
      %v1599 = vmul.f32 %v1245, 0.1
      %v1600 = vmul.f32 %v1250, 0.1
      %v1601 = vmul.f32 %v1253, 0.1
      %v1602 = vmul.f32 %v1258, 0.1
      %v1603 = vmul.f32 %v1261, 0.1
      %v1604 = vmul.f32 %v1266, 0.1
      %v1605 = vmul.f32 %v1269, 0.1
      %v1606 = vmul.f32 %v1274, 0.1
      %v1607 = vmul.f32 %v1277, 0.1
      %v1608 = vmul.f32 %v1282, 0.1
      %v1609 = vmul.f32 %v1285, 0.1
      %v1610 = vmul.f32 %v1290, 0.1
      %v1611 = vmul.f32 %v1293, 0.1
      %v1612 = vmul.f32 %v1298, 0.1
      %v1613 = vmul.f32 %v1301, 0.1
      %v1614 = vmul.f32 %v1306, 0.1
      %v1615 = vmul.f32 %v1309, 0.1
      %v1616 = vmul.f32 %v1314, 0.1
      %v1617 = vmul.f32 %v1317, 0.1
      %v1618 = vmul.f32 %v1322, 0.1
      %v1619 = vmul.f32 %v1325, 0.1
      %v1620 = vmul.f32 %v1330, 0.1
      %v1621 = vmul.f32 %v1333, 0.1
      %v1622 = vmul.f32 %v1338, 0.1
      %v1623 = vmul.f32 %v1341, 0.1
      %v1624 = vmul.f32 %v1346, 0.1
      %v1625 = vmul.f32 %v1349, 0.1
      %v1626 = vmul.f32 %v1354, 0.1
      %v1627 = vmul.f32 %v1357, 0.1
      %v1628 = vmul.f32 %v1362, 0.1
      %v1629 = vmul.f32 %v1365, 0.1
      %v1630 = vmul.f32 %v1370, 0.1
      %v1631 = vmul.f32 %v1373, 0.1
      %v1632 = vsel %vm1376, %v866, %v1504
      %v1633 = vsel %vm1377, %v869, %v1505
      %v1634 = vsel %vm1378, %v874, %v1506
      %v1635 = vsel %vm1379, %v877, %v1507
      %v1636 = vsel %vm1380, %v882, %v1508
      %v1637 = vsel %vm1381, %v885, %v1509
      %v1638 = vsel %vm1382, %v890, %v1510
      %v1639 = vsel %vm1383, %v893, %v1511
      %v1640 = vsel %vm1384, %v898, %v1512
      %v1641 = vsel %vm1385, %v901, %v1513
      %v1642 = vsel %vm1386, %v906, %v1514
      %v1643 = vsel %vm1387, %v909, %v1515
      %v1644 = vsel %vm1388, %v914, %v1516
      %v1645 = vsel %vm1389, %v917, %v1517
      %v1646 = vsel %vm1390, %v922, %v1518
      %v1647 = vsel %vm1391, %v925, %v1519
      %v1648 = vsel %vm1392, %v930, %v1520
      %v1649 = vsel %vm1393, %v933, %v1521
      %v1650 = vsel %vm1394, %v938, %v1522
      %v1651 = vsel %vm1395, %v941, %v1523
      %v1652 = vsel %vm1396, %v946, %v1524
      %v1653 = vsel %vm1397, %v949, %v1525
      %v1654 = vsel %vm1398, %v954, %v1526
      %v1655 = vsel %vm1399, %v957, %v1527
      %v1656 = vsel %vm1400, %v962, %v1528
      %v1657 = vsel %vm1401, %v965, %v1529
      %v1658 = vsel %vm1402, %v970, %v1530
      %v1659 = vsel %vm1403, %v973, %v1531
      %v1660 = vsel %vm1404, %v978, %v1532
      %v1661 = vsel %vm1405, %v981, %v1533
      %v1662 = vsel %vm1406, %v986, %v1534
      %v1663 = vsel %vm1407, %v989, %v1535
      %v1664 = vsel %vm1408, %v994, %v1536
      %v1665 = vsel %vm1409, %v997, %v1537
      %v1666 = vsel %vm1410, %v1002, %v1538
      %v1667 = vsel %vm1411, %v1005, %v1539
      %v1668 = vsel %vm1412, %v1010, %v1540
      %v1669 = vsel %vm1413, %v1013, %v1541
      %v1670 = vsel %vm1414, %v1018, %v1542
      %v1671 = vsel %vm1415, %v1021, %v1543
      %v1672 = vsel %vm1416, %v1026, %v1544
      %v1673 = vsel %vm1417, %v1029, %v1545
      %v1674 = vsel %vm1418, %v1034, %v1546
      %v1675 = vsel %vm1419, %v1037, %v1547
      %v1676 = vsel %vm1420, %v1042, %v1548
      %v1677 = vsel %vm1421, %v1045, %v1549
      %v1678 = vsel %vm1422, %v1050, %v1550
      %v1679 = vsel %vm1423, %v1053, %v1551
      %v1680 = vsel %vm1424, %v1058, %v1552
      %v1681 = vsel %vm1425, %v1061, %v1553
      %v1682 = vsel %vm1426, %v1066, %v1554
      %v1683 = vsel %vm1427, %v1069, %v1555
      %v1684 = vsel %vm1428, %v1074, %v1556
      %v1685 = vsel %vm1429, %v1077, %v1557
      %v1686 = vsel %vm1430, %v1082, %v1558
      %v1687 = vsel %vm1431, %v1085, %v1559
      %v1688 = vsel %vm1432, %v1090, %v1560
      %v1689 = vsel %vm1433, %v1093, %v1561
      %v1690 = vsel %vm1434, %v1098, %v1562
      %v1691 = vsel %vm1435, %v1101, %v1563
      %v1692 = vsel %vm1436, %v1106, %v1564
      %v1693 = vsel %vm1437, %v1109, %v1565
      %v1694 = vsel %vm1438, %v1114, %v1566
      %v1695 = vsel %vm1439, %v1117, %v1567
      %v1696 = vsel %vm1440, %v1122, %v1568
      %v1697 = vsel %vm1441, %v1125, %v1569
      %v1698 = vsel %vm1442, %v1130, %v1570
      %v1699 = vsel %vm1443, %v1133, %v1571
      %v1700 = vsel %vm1444, %v1138, %v1572
      %v1701 = vsel %vm1445, %v1141, %v1573
      %v1702 = vsel %vm1446, %v1146, %v1574
      %v1703 = vsel %vm1447, %v1149, %v1575
      %v1704 = vsel %vm1448, %v1154, %v1576
      %v1705 = vsel %vm1449, %v1157, %v1577
      %v1706 = vsel %vm1450, %v1162, %v1578
      %v1707 = vsel %vm1451, %v1165, %v1579
      %v1708 = vsel %vm1452, %v1170, %v1580
      %v1709 = vsel %vm1453, %v1173, %v1581
      %v1710 = vsel %vm1454, %v1178, %v1582
      %v1711 = vsel %vm1455, %v1181, %v1583
      %v1712 = vsel %vm1456, %v1186, %v1584
      %v1713 = vsel %vm1457, %v1189, %v1585
      %v1714 = vsel %vm1458, %v1194, %v1586
      %v1715 = vsel %vm1459, %v1197, %v1587
      %v1716 = vsel %vm1460, %v1202, %v1588
      %v1717 = vsel %vm1461, %v1205, %v1589
      %v1718 = vsel %vm1462, %v1210, %v1590
      %v1719 = vsel %vm1463, %v1213, %v1591
      %v1720 = vsel %vm1464, %v1218, %v1592
      %v1721 = vsel %vm1465, %v1221, %v1593
      %v1722 = vsel %vm1466, %v1226, %v1594
      %v1723 = vsel %vm1467, %v1229, %v1595
      %v1724 = vsel %vm1468, %v1234, %v1596
      %v1725 = vsel %vm1469, %v1237, %v1597
      %v1726 = vsel %vm1470, %v1242, %v1598
      %v1727 = vsel %vm1471, %v1245, %v1599
      %v1728 = vsel %vm1472, %v1250, %v1600
      %v1729 = vsel %vm1473, %v1253, %v1601
      %v1730 = vsel %vm1474, %v1258, %v1602
      %v1731 = vsel %vm1475, %v1261, %v1603
      %v1732 = vsel %vm1476, %v1266, %v1604
      %v1733 = vsel %vm1477, %v1269, %v1605
      %v1734 = vsel %vm1478, %v1274, %v1606
      %v1735 = vsel %vm1479, %v1277, %v1607
      %v1736 = vsel %vm1480, %v1282, %v1608
      %v1737 = vsel %vm1481, %v1285, %v1609
      %v1738 = vsel %vm1482, %v1290, %v1610
      %v1739 = vsel %vm1483, %v1293, %v1611
      %v1740 = vsel %vm1484, %v1298, %v1612
      %v1741 = vsel %vm1485, %v1301, %v1613
      %v1742 = vsel %vm1486, %v1306, %v1614
      %v1743 = vsel %vm1487, %v1309, %v1615
      %v1744 = vsel %vm1488, %v1314, %v1616
      %v1745 = vsel %vm1489, %v1317, %v1617
      %v1746 = vsel %vm1490, %v1322, %v1618
      %v1747 = vsel %vm1491, %v1325, %v1619
      %v1748 = vsel %vm1492, %v1330, %v1620
      %v1749 = vsel %vm1493, %v1333, %v1621
      %v1750 = vsel %vm1494, %v1338, %v1622
      %v1751 = vsel %vm1495, %v1341, %v1623
      %v1752 = vsel %vm1496, %v1346, %v1624
      %v1753 = vsel %vm1497, %v1349, %v1625
      %v1754 = vsel %vm1498, %v1354, %v1626
      %v1755 = vsel %vm1499, %v1357, %v1627
      %v1756 = vsel %vm1500, %v1362, %v1628
      %v1757 = vsel %vm1501, %v1365, %v1629
      %v1758 = vsel %vm1502, %v1370, %v1630
      %v1759 = vsel %vm1503, %v1373, %v1631
      %v1760 = vpack.c.bf16 %v1633, %v1632
      %v1761 = vpack.c.bf16 %v1635, %v1634
      %v1762 = vpack.c.bf16 %v1637, %v1636
      %v1763 = vpack.c.bf16 %v1639, %v1638
      %v1764 = vpack.c.bf16 %v1641, %v1640
      %v1765 = vpack.c.bf16 %v1643, %v1642
      %v1766 = vpack.c.bf16 %v1645, %v1644
      %v1767 = vpack.c.bf16 %v1647, %v1646
      %v1768 = vpack.c.bf16 %v1649, %v1648
      %v1769 = vpack.c.bf16 %v1651, %v1650
      %v1770 = vpack.c.bf16 %v1653, %v1652
      %v1771 = vpack.c.bf16 %v1655, %v1654
      %v1772 = vpack.c.bf16 %v1657, %v1656
      %v1773 = vpack.c.bf16 %v1659, %v1658
      %v1774 = vpack.c.bf16 %v1661, %v1660
      %v1775 = vpack.c.bf16 %v1663, %v1662
      %v1776 = vpack.c.bf16 %v1665, %v1664
      %v1777 = vpack.c.bf16 %v1667, %v1666
      %v1778 = vpack.c.bf16 %v1669, %v1668
      %v1779 = vpack.c.bf16 %v1671, %v1670
      %v1780 = vpack.c.bf16 %v1673, %v1672
      %v1781 = vpack.c.bf16 %v1675, %v1674
      %v1782 = vpack.c.bf16 %v1677, %v1676
      %v1783 = vpack.c.bf16 %v1679, %v1678
      %v1784 = vpack.c.bf16 %v1681, %v1680
      %v1785 = vpack.c.bf16 %v1683, %v1682
      %v1786 = vpack.c.bf16 %v1685, %v1684
      %v1787 = vpack.c.bf16 %v1687, %v1686
      %v1788 = vpack.c.bf16 %v1689, %v1688
      %v1789 = vpack.c.bf16 %v1691, %v1690
      %v1790 = vpack.c.bf16 %v1693, %v1692
      %v1791 = vpack.c.bf16 %v1695, %v1694
      %v1792 = vpack.c.bf16 %v1697, %v1696
      %v1793 = vpack.c.bf16 %v1699, %v1698
      %v1794 = vpack.c.bf16 %v1701, %v1700
      %v1795 = vpack.c.bf16 %v1703, %v1702
      %v1796 = vpack.c.bf16 %v1705, %v1704
      %v1797 = vpack.c.bf16 %v1707, %v1706
      %v1798 = vpack.c.bf16 %v1709, %v1708
      %v1799 = vpack.c.bf16 %v1711, %v1710
      %v1800 = vpack.c.bf16 %v1713, %v1712
      %v1801 = vpack.c.bf16 %v1715, %v1714
      %v1802 = vpack.c.bf16 %v1717, %v1716
      %v1803 = vpack.c.bf16 %v1719, %v1718
      %v1804 = vpack.c.bf16 %v1721, %v1720
      %v1805 = vpack.c.bf16 %v1723, %v1722
      %v1806 = vpack.c.bf16 %v1725, %v1724
      %v1807 = vpack.c.bf16 %v1727, %v1726
      %v1808 = vpack.c.bf16 %v1729, %v1728
      %v1809 = vpack.c.bf16 %v1731, %v1730
      %v1810 = vpack.c.bf16 %v1733, %v1732
      %v1811 = vpack.c.bf16 %v1735, %v1734
      %v1812 = vpack.c.bf16 %v1737, %v1736
      %v1813 = vpack.c.bf16 %v1739, %v1738
      %v1814 = vpack.c.bf16 %v1741, %v1740
      %v1815 = vpack.c.bf16 %v1743, %v1742
      %v1816 = vpack.c.bf16 %v1745, %v1744
      %v1817 = vpack.c.bf16 %v1747, %v1746
      %v1818 = vpack.c.bf16 %v1749, %v1748
      %v1819 = vpack.c.bf16 %v1751, %v1750
      %v1820 = vpack.c.bf16 %v1753, %v1752
      %v1821 = vpack.c.bf16 %v1755, %v1754
      %v1822 = vpack.c.bf16 %v1757, %v1756
      %v1823 = vpack.c.bf16 %v1759, %v1758
      %v1888 = vunpack.c.l.b16 %v1760
      %v1889 = vunpack.c.h.b16 %v1760
      %v1890 = vunpack.c.l.b16 %v1761
      %v1891 = vunpack.c.h.b16 %v1761
      %v1892 = vunpack.c.l.b16 %v1762
      %v1893 = vunpack.c.h.b16 %v1762
      %v1894 = vunpack.c.l.b16 %v1763
      %v1895 = vunpack.c.h.b16 %v1763
      %v1896 = vunpack.c.l.b16 %v1764
      %v1897 = vunpack.c.h.b16 %v1764
      %v1898 = vunpack.c.l.b16 %v1765
      %v1899 = vunpack.c.h.b16 %v1765
      %v1900 = vunpack.c.l.b16 %v1766
      %v1901 = vunpack.c.h.b16 %v1766
      %v1902 = vunpack.c.l.b16 %v1767
      %v1903 = vunpack.c.h.b16 %v1767
      %v1904 = vunpack.c.l.b16 %v1768
      %v1905 = vunpack.c.h.b16 %v1768
      %v1906 = vunpack.c.l.b16 %v1769
      %v1907 = vunpack.c.h.b16 %v1769
      %v1908 = vunpack.c.l.b16 %v1770
      %v1909 = vunpack.c.h.b16 %v1770
      %v1910 = vunpack.c.l.b16 %v1771
      %v1911 = vunpack.c.h.b16 %v1771
      %v1912 = vunpack.c.l.b16 %v1772
      %v1913 = vunpack.c.h.b16 %v1772
      %v1914 = vunpack.c.l.b16 %v1773
      %v1915 = vunpack.c.h.b16 %v1773
      %v1916 = vunpack.c.l.b16 %v1774
      %v1917 = vunpack.c.h.b16 %v1774
      %v1918 = vunpack.c.l.b16 %v1775
      %v1919 = vunpack.c.h.b16 %v1775
      %v1920 = vunpack.c.l.b16 %v1776
      %v1921 = vunpack.c.h.b16 %v1776
      %v1922 = vunpack.c.l.b16 %v1777
      %v1923 = vunpack.c.h.b16 %v1777
      %v1924 = vunpack.c.l.b16 %v1778
      %v1925 = vunpack.c.h.b16 %v1778
      %v1926 = vunpack.c.l.b16 %v1779
      %v1927 = vunpack.c.h.b16 %v1779
      %v1928 = vunpack.c.l.b16 %v1780
      %v1929 = vunpack.c.h.b16 %v1780
      %v1930 = vunpack.c.l.b16 %v1781
      %v1931 = vunpack.c.h.b16 %v1781
      %v1932 = vunpack.c.l.b16 %v1782
      %v1933 = vunpack.c.h.b16 %v1782
      %v1934 = vunpack.c.l.b16 %v1783
      %v1935 = vunpack.c.h.b16 %v1783
      %v1936 = vunpack.c.l.b16 %v1784
      %v1937 = vunpack.c.h.b16 %v1784
      %v1938 = vunpack.c.l.b16 %v1785
      %v1939 = vunpack.c.h.b16 %v1785
      %v1940 = vunpack.c.l.b16 %v1786
      %v1941 = vunpack.c.h.b16 %v1786
      %v1942 = vunpack.c.l.b16 %v1787
      %v1943 = vunpack.c.h.b16 %v1787
      %v1944 = vunpack.c.l.b16 %v1788
      %v1945 = vunpack.c.h.b16 %v1788
      %v1946 = vunpack.c.l.b16 %v1789
      %v1947 = vunpack.c.h.b16 %v1789
      %v1948 = vunpack.c.l.b16 %v1790
      %v1949 = vunpack.c.h.b16 %v1790
      %v1950 = vunpack.c.l.b16 %v1791
      %v1951 = vunpack.c.h.b16 %v1791
      %v1952 = vunpack.c.l.b16 %v1792
      %v1953 = vunpack.c.h.b16 %v1792
      %v1954 = vunpack.c.l.b16 %v1793
      %v1955 = vunpack.c.h.b16 %v1793
      %v1956 = vunpack.c.l.b16 %v1794
      %v1957 = vunpack.c.h.b16 %v1794
      %v1958 = vunpack.c.l.b16 %v1795
      %v1959 = vunpack.c.h.b16 %v1795
      %v1960 = vunpack.c.l.b16 %v1796
      %v1961 = vunpack.c.h.b16 %v1796
      %v1962 = vunpack.c.l.b16 %v1797
      %v1963 = vunpack.c.h.b16 %v1797
      %v1964 = vunpack.c.l.b16 %v1798
      %v1965 = vunpack.c.h.b16 %v1798
      %v1966 = vunpack.c.l.b16 %v1799
      %v1967 = vunpack.c.h.b16 %v1799
      %v1968 = vunpack.c.l.b16 %v1800
      %v1969 = vunpack.c.h.b16 %v1800
      %v1970 = vunpack.c.l.b16 %v1801
      %v1971 = vunpack.c.h.b16 %v1801
      %v1972 = vunpack.c.l.b16 %v1802
      %v1973 = vunpack.c.h.b16 %v1802
      %v1974 = vunpack.c.l.b16 %v1803
      %v1975 = vunpack.c.h.b16 %v1803
      %v1976 = vunpack.c.l.b16 %v1804
      %v1977 = vunpack.c.h.b16 %v1804
      %v1978 = vunpack.c.l.b16 %v1805
      %v1979 = vunpack.c.h.b16 %v1805
      %v1980 = vunpack.c.l.b16 %v1806
      %v1981 = vunpack.c.h.b16 %v1806
      %v1982 = vunpack.c.l.b16 %v1807
      %v1983 = vunpack.c.h.b16 %v1807
      %v1984 = vunpack.c.l.b16 %v1808
      %v1985 = vunpack.c.h.b16 %v1808
      %v1986 = vunpack.c.l.b16 %v1809
      %v1987 = vunpack.c.h.b16 %v1809
      %v1988 = vunpack.c.l.b16 %v1810
      %v1989 = vunpack.c.h.b16 %v1810
      %v1990 = vunpack.c.l.b16 %v1811
      %v1991 = vunpack.c.h.b16 %v1811
      %v1992 = vunpack.c.l.b16 %v1812
      %v1993 = vunpack.c.h.b16 %v1812
      %v1994 = vunpack.c.l.b16 %v1813
      %v1995 = vunpack.c.h.b16 %v1813
      %v1996 = vunpack.c.l.b16 %v1814
      %v1997 = vunpack.c.h.b16 %v1814
      %v1998 = vunpack.c.l.b16 %v1815
      %v1999 = vunpack.c.h.b16 %v1815
      %v2000 = vunpack.c.l.b16 %v1816
      %v2001 = vunpack.c.h.b16 %v1816
      %v2002 = vunpack.c.l.b16 %v1817
      %v2003 = vunpack.c.h.b16 %v1817
      %v2004 = vunpack.c.l.b16 %v1818
      %v2005 = vunpack.c.h.b16 %v1818
      %v2006 = vunpack.c.l.b16 %v1819
      %v2007 = vunpack.c.h.b16 %v1819
      %v2008 = vunpack.c.l.b16 %v1820
      %v2009 = vunpack.c.h.b16 %v1820
      %v2010 = vunpack.c.l.b16 %v1821
      %v2011 = vunpack.c.h.b16 %v1821
      %v2012 = vunpack.c.l.b16 %v1822
      %v2013 = vunpack.c.h.b16 %v1822
      %v2014 = vunpack.c.l.b16 %v1823
      %v2015 = vunpack.c.h.b16 %v1823
      %v2016 = vpack.c.b16 %v1888, %v1888
      %v2017 = vpack.c.b16 %v1889, %v1889
      %v2018 = vpack.c.b16 %v1890, %v1890
      %v2019 = vpack.c.b16 %v1891, %v1891
      %v2020 = vpack.c.b16 %v1892, %v1892
      %v2021 = vpack.c.b16 %v1893, %v1893
      %v2022 = vpack.c.b16 %v1894, %v1894
      %v2023 = vpack.c.b16 %v1895, %v1895
      %v2024 = vpack.c.b16 %v1896, %v1896
      %v2025 = vpack.c.b16 %v1897, %v1897
      %v2026 = vpack.c.b16 %v1898, %v1898
      %v2027 = vpack.c.b16 %v1899, %v1899
      %v2028 = vpack.c.b16 %v1900, %v1900
      %v2029 = vpack.c.b16 %v1901, %v1901
      %v2030 = vpack.c.b16 %v1902, %v1902
      %v2031 = vpack.c.b16 %v1903, %v1903
      %v2032 = vpack.c.b16 %v1904, %v1904
      %v2033 = vpack.c.b16 %v1905, %v1905
      %v2034 = vpack.c.b16 %v1906, %v1906
      %v2035 = vpack.c.b16 %v1907, %v1907
      %v2036 = vpack.c.b16 %v1908, %v1908
      %v2037 = vpack.c.b16 %v1909, %v1909
      %v2038 = vpack.c.b16 %v1910, %v1910
      %v2039 = vpack.c.b16 %v1911, %v1911
      %v2040 = vpack.c.b16 %v1912, %v1912
      %v2041 = vpack.c.b16 %v1913, %v1913
      %v2042 = vpack.c.b16 %v1914, %v1914
      %v2043 = vpack.c.b16 %v1915, %v1915
      %v2044 = vpack.c.b16 %v1916, %v1916
      %v2045 = vpack.c.b16 %v1917, %v1917
      %v2046 = vpack.c.b16 %v1918, %v1918
      %v2047 = vpack.c.b16 %v1919, %v1919
      %v2048 = vpack.c.b16 %v1920, %v1920
      %v2049 = vpack.c.b16 %v1921, %v1921
      %v2050 = vpack.c.b16 %v1922, %v1922
      %v2051 = vpack.c.b16 %v1923, %v1923
      %v2052 = vpack.c.b16 %v1924, %v1924
      %v2053 = vpack.c.b16 %v1925, %v1925
      %v2054 = vpack.c.b16 %v1926, %v1926
      %v2055 = vpack.c.b16 %v1927, %v1927
      %v2056 = vpack.c.b16 %v1928, %v1928
      %v2057 = vpack.c.b16 %v1929, %v1929
      %v2058 = vpack.c.b16 %v1930, %v1930
      %v2059 = vpack.c.b16 %v1931, %v1931
      %v2060 = vpack.c.b16 %v1932, %v1932
      %v2061 = vpack.c.b16 %v1933, %v1933
      %v2062 = vpack.c.b16 %v1934, %v1934
      %v2063 = vpack.c.b16 %v1935, %v1935
      %v2064 = vpack.c.b16 %v1936, %v1936
      %v2065 = vpack.c.b16 %v1937, %v1937
      %v2066 = vpack.c.b16 %v1938, %v1938
      %v2067 = vpack.c.b16 %v1939, %v1939
      %v2068 = vpack.c.b16 %v1940, %v1940
      %v2069 = vpack.c.b16 %v1941, %v1941
      %v2070 = vpack.c.b16 %v1942, %v1942
      %v2071 = vpack.c.b16 %v1943, %v1943
      %v2072 = vpack.c.b16 %v1944, %v1944
      %v2073 = vpack.c.b16 %v1945, %v1945
      %v2074 = vpack.c.b16 %v1946, %v1946
      %v2075 = vpack.c.b16 %v1947, %v1947
      %v2076 = vpack.c.b16 %v1948, %v1948
      %v2077 = vpack.c.b16 %v1949, %v1949
      %v2078 = vpack.c.b16 %v1950, %v1950
      %v2079 = vpack.c.b16 %v1951, %v1951
      %v2080 = vpack.c.b16 %v1952, %v1952
      %v2081 = vpack.c.b16 %v1953, %v1953
      %v2082 = vpack.c.b16 %v1954, %v1954
      %v2083 = vpack.c.b16 %v1955, %v1955
      %v2084 = vpack.c.b16 %v1956, %v1956
      %v2085 = vpack.c.b16 %v1957, %v1957
      %v2086 = vpack.c.b16 %v1958, %v1958
      %v2087 = vpack.c.b16 %v1959, %v1959
      %v2088 = vpack.c.b16 %v1960, %v1960
      %v2089 = vpack.c.b16 %v1961, %v1961
      %v2090 = vpack.c.b16 %v1962, %v1962
      %v2091 = vpack.c.b16 %v1963, %v1963
      %v2092 = vpack.c.b16 %v1964, %v1964
      %v2093 = vpack.c.b16 %v1965, %v1965
      %v2094 = vpack.c.b16 %v1966, %v1966
      %v2095 = vpack.c.b16 %v1967, %v1967
      %v2096 = vpack.c.b16 %v1968, %v1968
      %v2097 = vpack.c.b16 %v1969, %v1969
      %v2098 = vpack.c.b16 %v1970, %v1970
      %v2099 = vpack.c.b16 %v1971, %v1971
      %v2100 = vpack.c.b16 %v1972, %v1972
      %v2101 = vpack.c.b16 %v1973, %v1973
      %v2102 = vpack.c.b16 %v1974, %v1974
      %v2103 = vpack.c.b16 %v1975, %v1975
      %v2104 = vpack.c.b16 %v1976, %v1976
      %v2105 = vpack.c.b16 %v1977, %v1977
      %v2106 = vpack.c.b16 %v1978, %v1978
      %v2107 = vpack.c.b16 %v1979, %v1979
      %v2108 = vpack.c.b16 %v1980, %v1980
      %v2109 = vpack.c.b16 %v1981, %v1981
      %v2110 = vpack.c.b16 %v1982, %v1982
      %v2111 = vpack.c.b16 %v1983, %v1983
      %v2112 = vpack.c.b16 %v1984, %v1984
      %v2113 = vpack.c.b16 %v1985, %v1985
      %v2114 = vpack.c.b16 %v1986, %v1986
      %v2115 = vpack.c.b16 %v1987, %v1987
      %v2116 = vpack.c.b16 %v1988, %v1988
      %v2117 = vpack.c.b16 %v1989, %v1989
      %v2118 = vpack.c.b16 %v1990, %v1990
      %v2119 = vpack.c.b16 %v1991, %v1991
      %v2120 = vpack.c.b16 %v1992, %v1992
      %v2121 = vpack.c.b16 %v1993, %v1993
      %v2122 = vpack.c.b16 %v1994, %v1994
      %v2123 = vpack.c.b16 %v1995, %v1995
      %v2124 = vpack.c.b16 %v1996, %v1996
      %v2125 = vpack.c.b16 %v1997, %v1997
      %v2126 = vpack.c.b16 %v1998, %v1998
      %v2127 = vpack.c.b16 %v1999, %v1999
      %v2128 = vpack.c.b16 %v2000, %v2000
      %v2129 = vpack.c.b16 %v2001, %v2001
      %v2130 = vpack.c.b16 %v2002, %v2002
      %v2131 = vpack.c.b16 %v2003, %v2003
      %v2132 = vpack.c.b16 %v2004, %v2004
      %v2133 = vpack.c.b16 %v2005, %v2005
      %v2134 = vpack.c.b16 %v2006, %v2006
      %v2135 = vpack.c.b16 %v2007, %v2007
      %v2136 = vpack.c.b16 %v2008, %v2008
      %v2137 = vpack.c.b16 %v2009, %v2009
      %v2138 = vpack.c.b16 %v2010, %v2010
      %v2139 = vpack.c.b16 %v2011, %v2011
      %v2140 = vpack.c.b16 %v2012, %v2012
      %v2141 = vpack.c.b16 %v2013, %v2013
      %v2142 = vpack.c.b16 %v2014, %v2014
      %v2143 = vpack.c.b16 %v2015, %v2015
      %vm2272 = vcmask 60416
      %2273 = vst.msk [vmem:[%s172] sm:$0xf] %vm2272, %v2016
      %2274 = vst.msk [vmem:[%s172 + $0x4] sm:$0xf] %vm2272, %v2017
      %2275 = vst.msk [vmem:[%s172 + $0x8] sm:$0xf] %vm2272, %v2018
      %2276 = vst.msk [vmem:[%s172 + $0xc] sm:$0xf] %vm2272, %v2019
      %2277 = vst.msk [vmem:[%s172 + $0x10] sm:$0xf] %vm2272, %v2020
      %2278 = vst.msk [vmem:[%s172 + $0x14] sm:$0xf] %vm2272, %v2021
      %2279 = vst.msk [vmem:[%s172 + $0x18] sm:$0xf] %vm2272, %v2022
      %2280 = vst.msk [vmem:[%s172 + $0x1c] sm:$0xf] %vm2272, %v2023
      %2281 = vst.msk [vmem:[%s172 + $0x20] sm:$0xf] %vm2272, %v2024
      %2282 = vst.msk [vmem:[%s172 + $0x24] sm:$0xf] %vm2272, %v2025
      %2283 = vst.msk [vmem:[%s172 + $0x28] sm:$0xf] %vm2272, %v2026
      %2284 = vst.msk [vmem:[%s172 + $0x2c] sm:$0xf] %vm2272, %v2027
      %2285 = vst.msk [vmem:[%s172 + $0x30] sm:$0xf] %vm2272, %v2028
      %2286 = vst.msk [vmem:[%s172 + $0x34] sm:$0xf] %vm2272, %v2029
      %2287 = vst.msk [vmem:[%s172 + $0x38] sm:$0xf] %vm2272, %v2030
      %2288 = vst.msk [vmem:[%s172 + $0x3c] sm:$0xf] %vm2272, %v2031
      %2289 = vst.msk [vmem:[%s172 + $0x40] sm:$0xf] %vm2272, %v2032
      %2290 = vst.msk [vmem:[%s172 + $0x44] sm:$0xf] %vm2272, %v2033
      %2291 = vst.msk [vmem:[%s172 + $0x48] sm:$0xf] %vm2272, %v2034
      %2292 = vst.msk [vmem:[%s172 + $0x4c] sm:$0xf] %vm2272, %v2035
      %2293 = vst.msk [vmem:[%s172 + $0x50] sm:$0xf] %vm2272, %v2036
      %2294 = vst.msk [vmem:[%s172 + $0x54] sm:$0xf] %vm2272, %v2037
      %2295 = vst.msk [vmem:[%s172 + $0x58] sm:$0xf] %vm2272, %v2038
      %2296 = vst.msk [vmem:[%s172 + $0x5c] sm:$0xf] %vm2272, %v2039
      %2297 = vst.msk [vmem:[%s172 + $0x60] sm:$0xf] %vm2272, %v2040
      %2298 = vst.msk [vmem:[%s172 + $0x64] sm:$0xf] %vm2272, %v2041
      %2299 = vst.msk [vmem:[%s172 + $0x68] sm:$0xf] %vm2272, %v2042
      %2300 = vst.msk [vmem:[%s172 + $0x6c] sm:$0xf] %vm2272, %v2043
      %2301 = vst.msk [vmem:[%s172 + $0x70] sm:$0xf] %vm2272, %v2044
      %2302 = vst.msk [vmem:[%s172 + $0x74] sm:$0xf] %vm2272, %v2045
      %2303 = vst.msk [vmem:[%s172 + $0x78] sm:$0xf] %vm2272, %v2046
      %2304 = vst.msk [vmem:[%s172 + $0x7c] sm:$0xf] %vm2272, %v2047
      %2305 = vst.msk [vmem:[%s172 + $0x80] sm:$0xf] %vm2272, %v2048
      %2306 = vst.msk [vmem:[%s172 + $0x84] sm:$0xf] %vm2272, %v2049
      %2307 = vst.msk [vmem:[%s172 + $0x88] sm:$0xf] %vm2272, %v2050
      %2308 = vst.msk [vmem:[%s172 + $0x8c] sm:$0xf] %vm2272, %v2051
      %2309 = vst.msk [vmem:[%s172 + $0x90] sm:$0xf] %vm2272, %v2052
      %2310 = vst.msk [vmem:[%s172 + $0x94] sm:$0xf] %vm2272, %v2053
      %2311 = vst.msk [vmem:[%s172 + $0x98] sm:$0xf] %vm2272, %v2054
      %2312 = vst.msk [vmem:[%s172 + $0x9c] sm:$0xf] %vm2272, %v2055
      %2313 = vst.msk [vmem:[%s172 + $0xa0] sm:$0xf] %vm2272, %v2056
      %2314 = vst.msk [vmem:[%s172 + $0xa4] sm:$0xf] %vm2272, %v2057
      %2315 = vst.msk [vmem:[%s172 + $0xa8] sm:$0xf] %vm2272, %v2058
      %2316 = vst.msk [vmem:[%s172 + $0xac] sm:$0xf] %vm2272, %v2059
      %2317 = vst.msk [vmem:[%s172 + $0xb0] sm:$0xf] %vm2272, %v2060
      %2318 = vst.msk [vmem:[%s172 + $0xb4] sm:$0xf] %vm2272, %v2061
      %2319 = vst.msk [vmem:[%s172 + $0xb8] sm:$0xf] %vm2272, %v2062
      %2320 = vst.msk [vmem:[%s172 + $0xbc] sm:$0xf] %vm2272, %v2063
      %2321 = vst.msk [vmem:[%s172 + $0xc0] sm:$0xf] %vm2272, %v2064
      %2322 = vst.msk [vmem:[%s172 + $0xc4] sm:$0xf] %vm2272, %v2065
      %2323 = vst.msk [vmem:[%s172 + $0xc8] sm:$0xf] %vm2272, %v2066
      %2324 = vst.msk [vmem:[%s172 + $0xcc] sm:$0xf] %vm2272, %v2067
      %2325 = vst.msk [vmem:[%s172 + $0xd0] sm:$0xf] %vm2272, %v2068
      %2326 = vst.msk [vmem:[%s172 + $0xd4] sm:$0xf] %vm2272, %v2069
      %2327 = vst.msk [vmem:[%s172 + $0xd8] sm:$0xf] %vm2272, %v2070
      %2328 = vst.msk [vmem:[%s172 + $0xdc] sm:$0xf] %vm2272, %v2071
      %2329 = vst.msk [vmem:[%s172 + $0xe0] sm:$0xf] %vm2272, %v2072
      %2330 = vst.msk [vmem:[%s172 + $0xe4] sm:$0xf] %vm2272, %v2073
      %2331 = vst.msk [vmem:[%s172 + $0xe8] sm:$0xf] %vm2272, %v2074
      %2332 = vst.msk [vmem:[%s172 + $0xec] sm:$0xf] %vm2272, %v2075
      %2333 = vst.msk [vmem:[%s172 + $0xf0] sm:$0xf] %vm2272, %v2076
      %2334 = vst.msk [vmem:[%s172 + $0xf4] sm:$0xf] %vm2272, %v2077
      %2335 = vst.msk [vmem:[%s172 + $0xf8] sm:$0xf] %vm2272, %v2078
      %2336 = vst.msk [vmem:[%s172 + $0xfc] sm:$0xf] %vm2272, %v2079
      %2337 = vst.msk [vmem:[%s172 + $0x100] sm:$0xf] %vm2272, %v2080
      %2338 = vst.msk [vmem:[%s172 + $0x104] sm:$0xf] %vm2272, %v2081
      %2339 = vst.msk [vmem:[%s172 + $0x108] sm:$0xf] %vm2272, %v2082
      %2340 = vst.msk [vmem:[%s172 + $0x10c] sm:$0xf] %vm2272, %v2083
      %2341 = vst.msk [vmem:[%s172 + $0x110] sm:$0xf] %vm2272, %v2084
      %2342 = vst.msk [vmem:[%s172 + $0x114] sm:$0xf] %vm2272, %v2085
      %2343 = vst.msk [vmem:[%s172 + $0x118] sm:$0xf] %vm2272, %v2086
      %2344 = vst.msk [vmem:[%s172 + $0x11c] sm:$0xf] %vm2272, %v2087
      %2345 = vst.msk [vmem:[%s172 + $0x120] sm:$0xf] %vm2272, %v2088
      %2346 = vst.msk [vmem:[%s172 + $0x124] sm:$0xf] %vm2272, %v2089
      %2347 = vst.msk [vmem:[%s172 + $0x128] sm:$0xf] %vm2272, %v2090
      %2348 = vst.msk [vmem:[%s172 + $0x12c] sm:$0xf] %vm2272, %v2091
      %2349 = vst.msk [vmem:[%s172 + $0x130] sm:$0xf] %vm2272, %v2092
      %2350 = vst.msk [vmem:[%s172 + $0x134] sm:$0xf] %vm2272, %v2093
      %2351 = vst.msk [vmem:[%s172 + $0x138] sm:$0xf] %vm2272, %v2094
      %2352 = vst.msk [vmem:[%s172 + $0x13c] sm:$0xf] %vm2272, %v2095
      %2353 = vst.msk [vmem:[%s172 + $0x140] sm:$0xf] %vm2272, %v2096
      %2354 = vst.msk [vmem:[%s172 + $0x144] sm:$0xf] %vm2272, %v2097
      %2355 = vst.msk [vmem:[%s172 + $0x148] sm:$0xf] %vm2272, %v2098
      %2356 = vst.msk [vmem:[%s172 + $0x14c] sm:$0xf] %vm2272, %v2099
      %2357 = vst.msk [vmem:[%s172 + $0x150] sm:$0xf] %vm2272, %v2100
      %2358 = vst.msk [vmem:[%s172 + $0x154] sm:$0xf] %vm2272, %v2101
      %2359 = vst.msk [vmem:[%s172 + $0x158] sm:$0xf] %vm2272, %v2102
      %2360 = vst.msk [vmem:[%s172 + $0x15c] sm:$0xf] %vm2272, %v2103
      %2361 = vst.msk [vmem:[%s172 + $0x160] sm:$0xf] %vm2272, %v2104
      %2362 = vst.msk [vmem:[%s172 + $0x164] sm:$0xf] %vm2272, %v2105
      %2363 = vst.msk [vmem:[%s172 + $0x168] sm:$0xf] %vm2272, %v2106
      %2364 = vst.msk [vmem:[%s172 + $0x16c] sm:$0xf] %vm2272, %v2107
      %2365 = vst.msk [vmem:[%s172 + $0x170] sm:$0xf] %vm2272, %v2108
      %2366 = vst.msk [vmem:[%s172 + $0x174] sm:$0xf] %vm2272, %v2109
      %2367 = vst.msk [vmem:[%s172 + $0x178] sm:$0xf] %vm2272, %v2110
      %2368 = vst.msk [vmem:[%s172 + $0x17c] sm:$0xf] %vm2272, %v2111
      %2369 = vst.msk [vmem:[%s172 + $0x180] sm:$0xf] %vm2272, %v2112
      %2370 = vst.msk [vmem:[%s172 + $0x184] sm:$0xf] %vm2272, %v2113
      %2371 = vst.msk [vmem:[%s172 + $0x188] sm:$0xf] %vm2272, %v2114
      %2372 = vst.msk [vmem:[%s172 + $0x18c] sm:$0xf] %vm2272, %v2115
      %2373 = vst.msk [vmem:[%s172 + $0x190] sm:$0xf] %vm2272, %v2116
      %2374 = vst.msk [vmem:[%s172 + $0x194] sm:$0xf] %vm2272, %v2117
      %2375 = vst.msk [vmem:[%s172 + $0x198] sm:$0xf] %vm2272, %v2118
      %2376 = vst.msk [vmem:[%s172 + $0x19c] sm:$0xf] %vm2272, %v2119
      %2377 = vst.msk [vmem:[%s172 + $0x1a0] sm:$0xf] %vm2272, %v2120
      %2378 = vst.msk [vmem:[%s172 + $0x1a4] sm:$0xf] %vm2272, %v2121
      %2379 = vst.msk [vmem:[%s172 + $0x1a8] sm:$0xf] %vm2272, %v2122
      %2380 = vst.msk [vmem:[%s172 + $0x1ac] sm:$0xf] %vm2272, %v2123
      %2381 = vst.msk [vmem:[%s172 + $0x1b0] sm:$0xf] %vm2272, %v2124
      %2382 = vst.msk [vmem:[%s172 + $0x1b4] sm:$0xf] %vm2272, %v2125
      %2383 = vst.msk [vmem:[%s172 + $0x1b8] sm:$0xf] %vm2272, %v2126
      %2384 = vst.msk [vmem:[%s172 + $0x1bc] sm:$0xf] %vm2272, %v2127
      %2385 = vst.msk [vmem:[%s172 + $0x1c0] sm:$0xf] %vm2272, %v2128
      %2386 = vst.msk [vmem:[%s172 + $0x1c4] sm:$0xf] %vm2272, %v2129
      %2387 = vst.msk [vmem:[%s172 + $0x1c8] sm:$0xf] %vm2272, %v2130
      %2388 = vst.msk [vmem:[%s172 + $0x1cc] sm:$0xf] %vm2272, %v2131
      %2389 = vst.msk [vmem:[%s172 + $0x1d0] sm:$0xf] %vm2272, %v2132
      %2390 = vst.msk [vmem:[%s172 + $0x1d4] sm:$0xf] %vm2272, %v2133
      %2391 = vst.msk [vmem:[%s172 + $0x1d8] sm:$0xf] %vm2272, %v2134
      %2392 = vst.msk [vmem:[%s172 + $0x1dc] sm:$0xf] %vm2272, %v2135
      %2393 = vst.msk [vmem:[%s172 + $0x1e0] sm:$0xf] %vm2272, %v2136
      %2394 = vst.msk [vmem:[%s172 + $0x1e4] sm:$0xf] %vm2272, %v2137
      %2395 = vst.msk [vmem:[%s172 + $0x1e8] sm:$0xf] %vm2272, %v2138
      %2396 = vst.msk [vmem:[%s172 + $0x1ec] sm:$0xf] %vm2272, %v2139
      %2397 = vst.msk [vmem:[%s172 + $0x1f0] sm:$0xf] %vm2272, %v2140
      %2398 = vst.msk [vmem:[%s172 + $0x1f4] sm:$0xf] %vm2272, %v2141
      %2399 = vst.msk [vmem:[%s172 + $0x1f8] sm:$0xf] %vm2272, %v2142
      %2400 = vst.msk [vmem:[%s172 + $0x1fc] sm:$0xf] %vm2272, %v2143
      %s2401 = smul.u32 128, %s14
      %p2402 = scmp.lt.s32.totalorder %s2401, 255
      %s2403 = scalar_select %p2402, %s2401, 255
      %s2404 = smul.addr %s2403, 4
      %s2405 = scalar_lea.vmem %s3, %s2404
      // Predicated region
      $region33: #{discriminator_forward.5} parent=31 // pred_check
        %p2406 = pneg %p100
      $region34: #{discriminator_forward.5} parent=31 // pred_check_branch
        %2408 = sbr.rel (%p2406) target = $region36
      $region35: #{discriminator_forward.5} parent=31 // pred_region
        %s2409 = smul.u32 128, %s14
      $region36: #{discriminator_forward.5} parent=31 // pred_fallthru
        _
    $region32: #{discriminator_forward.5} parent=5 // pred_fallthru
      _
    %p2410 = scmp.le.s32.totalorder 2, %s9
    // Predicated region
    $region37: #{discriminator_forward.5} parent=5 // pred_check
      %p2411 = pneg %p2410
    $region38: #{discriminator_forward.5} parent=5 // pred_check_branch
      %2413 = sbr.rel (%p2411) target = $region40
    $region39: #{discriminator_forward.5} parent=5 // pred_region
      %s2414 = ssub.s32 %s9, 2
      // Predicated region
      $region41: #{discriminator_forward.5} parent=39 // pred_check
        %p2415 = pneg %p106
      $region42: #{discriminator_forward.5} parent=39 // pred_check_branch
        %2417 = sbr.rel (%p2415) target = $region44
      $region43: #{discriminator_forward.5} parent=39 // pred_region
        %s2418 = smul.u32 128, %s15
        %p2419 = scmp.lt.s32.totalorder %s2418, 255
        %s2420 = scalar_select %p2419, %s2418, 255
        %s2421 = smul.addr %s2420, 4
        %s2422 = scalar_lea.vmem %s3, %s2421
      $region44: #{discriminator_forward.5} parent=39 // pred_fallthru
        _
    $region40: #{discriminator_forward.5} parent=5 // pred_fallthru
      _
  $region6: #{discriminator_forward.5} parent=0 // loop_footer
    %s13 = sadd.s32 1, %s9
  $region7: #{discriminator_forward.5} parent=0 // loop_footer_branch
    %8 = sbr.rel target = $region3
  $region8: #{discriminator_forward.5} parent=0 // loop_exit
    _

// kernel: discriminator_forward.6
$region0: #{discriminator_forward.6}
  #allocation0 [shape = 'u32[]', space=smem, size = 0x4, offset = 0x4, fixed_abs, tag = 'smem constant byte address 0x4 - core index']
  #allocation1 [shape = 'u32[144,128]{1,0:T(1,128)}', space=vmem, size = 0x12000, scoped, tag = 'internal scratch']
  %s0 = inlined_call_operand.vmem [shape: bf16[512,128], index: 0, kind: input, shape index: {}]
  %s1 = inlined_call_operand.vmem [shape: bf16[128,16], index: 1, kind: input, shape index: {}]
  %s2 = inlined_call_operand.vmem [shape: f32[1,16], index: 2, kind: input, shape index: {}]
  %s3 = inlined_call_operand.vmem [shape: bf16[512,16], index: 3, kind: output, shape index: {}]
  %s4 = sld [smem:[#allocation0]]
  $region22: #{discriminator_forward.6} parent=0
    _
  %s6 = ssub.s32 1, %s4
  %s7 = scalar_select 0, %s6, %s4
  // Predicated region
  $region2: #{discriminator_forward.6} parent=0 // pred_check
    _
  $region3: #{discriminator_forward.6} parent=0 // pred_check_branch
    %9 = sbr.rel (0) target = $region5
  $region4: #{discriminator_forward.6} parent=0 // pred_region
    _
  $region5: #{discriminator_forward.6} parent=0 // pred_fallthru
    _
  // Predicated region
  $region6: #{discriminator_forward.6} parent=0 // pred_check
    _
  $region7: #{discriminator_forward.6} parent=0 // pred_check_branch
    %11 = sbr.rel (0) target = $region9
  $region8: #{discriminator_forward.6} parent=0 // pred_region
    _
  $region9: #{discriminator_forward.6} parent=0 // pred_fallthru
    _
  // Predicated region
  $region10: #{discriminator_forward.6} parent=0 // pred_check
    _
  $region11: #{discriminator_forward.6} parent=0 // pred_check_branch
    %13 = sbr.rel (0) target = $region13
  $region12: #{discriminator_forward.6} parent=0 // pred_region
    _
  $region13: #{discriminator_forward.6} parent=0 // pred_fallthru
    _
  %v15 = vld [vmem:[%s0] sm:$0xf]
  %v16 = vld [vmem:[%s0 + $0x4] sm:$0xf]
  %v17 = vld [vmem:[%s0 + $0x8] sm:$0xf]
  %v18 = vld [vmem:[%s0 + $0xc] sm:$0xf]
  %v19 = vld [vmem:[%s0 + $0x10] sm:$0xf]
  %v20 = vld [vmem:[%s0 + $0x14] sm:$0xf]
  %v21 = vld [vmem:[%s0 + $0x18] sm:$0xf]
  %v22 = vld [vmem:[%s0 + $0x1c] sm:$0xf]
  %v23 = vld [vmem:[%s0 + $0x20] sm:$0xf]
  %v24 = vld [vmem:[%s0 + $0x24] sm:$0xf]
  %v25 = vld [vmem:[%s0 + $0x28] sm:$0xf]
  %v26 = vld [vmem:[%s0 + $0x2c] sm:$0xf]
  %v27 = vld [vmem:[%s0 + $0x30] sm:$0xf]
  %v28 = vld [vmem:[%s0 + $0x34] sm:$0xf]
  %v29 = vld [vmem:[%s0 + $0x38] sm:$0xf]
  %v30 = vld [vmem:[%s0 + $0x3c] sm:$0xf]
  %v31 = vld [vmem:[%s0 + $0x40] sm:$0xf]
  %v32 = vld [vmem:[%s0 + $0x44] sm:$0xf]
  %v33 = vld [vmem:[%s0 + $0x48] sm:$0xf]
  %v34 = vld [vmem:[%s0 + $0x4c] sm:$0xf]
  %v35 = vld [vmem:[%s0 + $0x50] sm:$0xf]
  %v36 = vld [vmem:[%s0 + $0x54] sm:$0xf]
  %v37 = vld [vmem:[%s0 + $0x58] sm:$0xf]
  %v38 = vld [vmem:[%s0 + $0x5c] sm:$0xf]
  %v39 = vld [vmem:[%s0 + $0x60] sm:$0xf]
  %v40 = vld [vmem:[%s0 + $0x64] sm:$0xf]
  %v41 = vld [vmem:[%s0 + $0x68] sm:$0xf]
  %v42 = vld [vmem:[%s0 + $0x6c] sm:$0xf]
  %v43 = vld [vmem:[%s0 + $0x70] sm:$0xf]
  %v44 = vld [vmem:[%s0 + $0x74] sm:$0xf]
  %v45 = vld [vmem:[%s0 + $0x78] sm:$0xf]
  %v46 = vld [vmem:[%s0 + $0x7c] sm:$0xf]
  %v47 = vld [vmem:[%s0 + $0x80] sm:$0xf]
  %v48 = vld [vmem:[%s0 + $0x84] sm:$0xf]
  %v49 = vld [vmem:[%s0 + $0x88] sm:$0xf]
  %v50 = vld [vmem:[%s0 + $0x8c] sm:$0xf]
  %v51 = vld [vmem:[%s0 + $0x90] sm:$0xf]
  %v52 = vld [vmem:[%s0 + $0x94] sm:$0xf]
  %v53 = vld [vmem:[%s0 + $0x98] sm:$0xf]
  %v54 = vld [vmem:[%s0 + $0x9c] sm:$0xf]
  %v55 = vld [vmem:[%s0 + $0xa0] sm:$0xf]
  %v56 = vld [vmem:[%s0 + $0xa4] sm:$0xf]
  %v57 = vld [vmem:[%s0 + $0xa8] sm:$0xf]
  %v58 = vld [vmem:[%s0 + $0xac] sm:$0xf]
  %v59 = vld [vmem:[%s0 + $0xb0] sm:$0xf]
  %v60 = vld [vmem:[%s0 + $0xb4] sm:$0xf]
  %v61 = vld [vmem:[%s0 + $0xb8] sm:$0xf]
  %v62 = vld [vmem:[%s0 + $0xbc] sm:$0xf]
  %v63 = vld [vmem:[%s0 + $0xc0] sm:$0xf]
  %v64 = vld [vmem:[%s0 + $0xc4] sm:$0xf]
  %v65 = vld [vmem:[%s0 + $0xc8] sm:$0xf]
  %v66 = vld [vmem:[%s0 + $0xcc] sm:$0xf]
  %v67 = vld [vmem:[%s0 + $0xd0] sm:$0xf]
  %v68 = vld [vmem:[%s0 + $0xd4] sm:$0xf]
  %v69 = vld [vmem:[%s0 + $0xd8] sm:$0xf]
  %v70 = vld [vmem:[%s0 + $0xdc] sm:$0xf]
  %v71 = vld [vmem:[%s0 + $0xe0] sm:$0xf]
  %v72 = vld [vmem:[%s0 + $0xe4] sm:$0xf]
  %v73 = vld [vmem:[%s0 + $0xe8] sm:$0xf]
  %v74 = vld [vmem:[%s0 + $0xec] sm:$0xf]
  %v75 = vld [vmem:[%s0 + $0xf0] sm:$0xf]
  %v76 = vld [vmem:[%s0 + $0xf4] sm:$0xf]
  %v77 = vld [vmem:[%s0 + $0xf8] sm:$0xf]
  %v78 = vld [vmem:[%s0 + $0xfc] sm:$0xf]
  %v79 = vld [vmem:[%s1] sm:$0xf]
  %v80 = vld [vmem:[%s1 + $0x4] sm:$0xf]
  %v81 = vld [vmem:[%s1 + $0x8] sm:$0xf]
  %v82 = vld [vmem:[%s1 + $0xc] sm:$0xf]
  %v83 = vld [vmem:[%s1 + $0x10] sm:$0xf]
  %v84 = vld [vmem:[%s1 + $0x14] sm:$0xf]
  %v85 = vld [vmem:[%s1 + $0x18] sm:$0xf]
  %v86 = vld [vmem:[%s1 + $0x1c] sm:$0xf]
  %v87 = vld [vmem:[%s1 + $0x20] sm:$0xf]
  %v88 = vld [vmem:[%s1 + $0x24] sm:$0xf]
  %v89 = vld [vmem:[%s1 + $0x28] sm:$0xf]
  %v90 = vld [vmem:[%s1 + $0x2c] sm:$0xf]
  %v91 = vld [vmem:[%s1 + $0x30] sm:$0xf]
  %v92 = vld [vmem:[%s1 + $0x34] sm:$0xf]
  %v93 = vld [vmem:[%s1 + $0x38] sm:$0xf]
  %v94 = vld [vmem:[%s1 + $0x3c] sm:$0xf]
  %v95 = vld [vmem:[%s2] sm:$0x1]
  %v97 = vlaneseq
  %v98 = vshrl.u32 %v97, 7
  %v99 = vsub.s32 0, %v98
  %v100 = vrot.slane %v95, %v99
  %v166 = vunpack.c.l.b16 %v15
  %v167 = vunpack.c.l.b16 %v16
  %v168 = vunpack.c.l.b16 %v17
  %v169 = vunpack.c.l.b16 %v18
  %v170 = vunpack.c.l.b16 %v19
  %v171 = vunpack.c.l.b16 %v20
  %v172 = vunpack.c.l.b16 %v21
  %v173 = vunpack.c.l.b16 %v22
  %v174 = vunpack.c.l.b16 %v23
  %v175 = vunpack.c.l.b16 %v24
  %v176 = vunpack.c.l.b16 %v25
  %v177 = vunpack.c.l.b16 %v26
  %v178 = vunpack.c.l.b16 %v27
  %v179 = vunpack.c.l.b16 %v28
  %v180 = vunpack.c.l.b16 %v29
  %v181 = vunpack.c.l.b16 %v30
  %v182 = vunpack.c.l.b16 %v31
  %v183 = vunpack.c.l.b16 %v32
  %v184 = vunpack.c.l.b16 %v33
  %v185 = vunpack.c.l.b16 %v34
  %v186 = vunpack.c.l.b16 %v35
  %v187 = vunpack.c.l.b16 %v36
  %v188 = vunpack.c.l.b16 %v37
  %v189 = vunpack.c.l.b16 %v38
  %v190 = vunpack.c.l.b16 %v39
  %v191 = vunpack.c.l.b16 %v40
  %v192 = vunpack.c.l.b16 %v41
  %v193 = vunpack.c.l.b16 %v42
  %v194 = vunpack.c.l.b16 %v43
  %v195 = vunpack.c.l.b16 %v44
  %v196 = vunpack.c.l.b16 %v45
  %v197 = vunpack.c.l.b16 %v46
  %v198 = vunpack.c.l.b16 %v47
  %v199 = vunpack.c.l.b16 %v48
  %v200 = vunpack.c.l.b16 %v49
  %v201 = vunpack.c.l.b16 %v50
  %v202 = vunpack.c.l.b16 %v51
  %v203 = vunpack.c.l.b16 %v52
  %v204 = vunpack.c.l.b16 %v53
  %v205 = vunpack.c.l.b16 %v54
  %v206 = vunpack.c.l.b16 %v55
  %v207 = vunpack.c.l.b16 %v56
  %v208 = vunpack.c.l.b16 %v57
  %v209 = vunpack.c.l.b16 %v58
  %v210 = vunpack.c.l.b16 %v59
  %v211 = vunpack.c.l.b16 %v60
  %v212 = vunpack.c.l.b16 %v61
  %v213 = vunpack.c.l.b16 %v62
  %v214 = vunpack.c.l.b16 %v63
  %v215 = vunpack.c.l.b16 %v64
  %v216 = vunpack.c.l.b16 %v65
  %v217 = vunpack.c.l.b16 %v66
  %v218 = vunpack.c.l.b16 %v67
  %v219 = vunpack.c.l.b16 %v68
  %v220 = vunpack.c.l.b16 %v69
  %v221 = vunpack.c.l.b16 %v70
  %v222 = vunpack.c.l.b16 %v71
  %v223 = vunpack.c.l.b16 %v72
  %v224 = vunpack.c.l.b16 %v73
  %v225 = vunpack.c.l.b16 %v74
  %v226 = vunpack.c.l.b16 %v75
  %v227 = vunpack.c.l.b16 %v76
  %v228 = vunpack.c.l.b16 %v77
  %v229 = vunpack.c.l.b16 %v78
  %v230 = vpack.c.b16 %v167, %v166
  %v231 = vpack.c.b16 %v169, %v168
  %v232 = vpack.c.b16 %v171, %v170
  %v233 = vpack.c.b16 %v173, %v172
  %v234 = vpack.c.b16 %v175, %v174
  %v235 = vpack.c.b16 %v177, %v176
  %v236 = vpack.c.b16 %v179, %v178
  %v237 = vpack.c.b16 %v181, %v180
  %v238 = vpack.c.b16 %v183, %v182
  %v239 = vpack.c.b16 %v185, %v184
  %v240 = vpack.c.b16 %v187, %v186
  %v241 = vpack.c.b16 %v189, %v188
  %v242 = vpack.c.b16 %v191, %v190
  %v243 = vpack.c.b16 %v193, %v192
  %v244 = vpack.c.b16 %v195, %v194
  %v245 = vpack.c.b16 %v197, %v196
  %v246 = vpack.c.b16 %v199, %v198
  %v247 = vpack.c.b16 %v201, %v200
  %v248 = vpack.c.b16 %v203, %v202
  %v249 = vpack.c.b16 %v205, %v204
  %v250 = vpack.c.b16 %v207, %v206
  %v251 = vpack.c.b16 %v209, %v208
  %v252 = vpack.c.b16 %v211, %v210
  %v253 = vpack.c.b16 %v213, %v212
  %v254 = vpack.c.b16 %v215, %v214
  %v255 = vpack.c.b16 %v217, %v216
  %v256 = vpack.c.b16 %v219, %v218
  %v257 = vpack.c.b16 %v221, %v220
  %v258 = vpack.c.b16 %v223, %v222
  %v259 = vpack.c.b16 %v225, %v224
  %v260 = vpack.c.b16 %v227, %v226
  %v261 = vpack.c.b16 %v229, %v228
  %v310 = vunpack.c.l.b16 %v79
  %v311 = vunpack.c.l.b16 %v80
  %v312 = vunpack.c.l.b16 %v81
  %v313 = vunpack.c.l.b16 %v82
  %v314 = vunpack.c.l.b16 %v83
  %v315 = vunpack.c.l.b16 %v84
  %v316 = vunpack.c.l.b16 %v85
  %v317 = vunpack.c.l.b16 %v86
  %v318 = vunpack.c.l.b16 %v87
  %v319 = vunpack.c.l.b16 %v88
  %v320 = vunpack.c.l.b16 %v89
  %v321 = vunpack.c.l.b16 %v90
  %v322 = vunpack.c.l.b16 %v91
  %v323 = vunpack.c.l.b16 %v92
  %v324 = vunpack.c.l.b16 %v93
  %v325 = vunpack.c.l.b16 %v94
  %v326 = vpack.c.b16 %v311, %v310
  %v327 = vpack.c.b16 %v313, %v312
  %v328 = vpack.c.b16 %v315, %v314
  %v329 = vpack.c.b16 %v317, %v316
  %v330 = vpack.c.b16 %v319, %v318
  %v331 = vpack.c.b16 %v321, %v320
  %v332 = vpack.c.b16 %v323, %v322
  %v333 = vpack.c.b16 %v325, %v324
  %342 = vmatprep.subr.bf16.mxu0 0
  %343 = vmatpush1.bf16.msra.mxu0 %v333
  %344 = vmatprep.subr.bf16.mxu0 0
  %345 = vmatpush1.bf16.msra.mxu0 %v332
  %346 = vmatprep.subr.bf16.mxu0 0
  %347 = vmatpush1.bf16.msra.mxu0 %v331
  %348 = vmatprep.subr.bf16.mxu0 0
  %349 = vmatpush1.bf16.msra.mxu0 %v330
  %350 = vmatprep.subr.bf16.mxu0 0
  %351 = vmatpush1.bf16.msra.mxu0 %v329
  %352 = vmatprep.subr.bf16.mxu0 0
  %353 = vmatpush1.bf16.msra.mxu0 %v328
  %354 = vmatprep.subr.bf16.mxu0 0
  %355 = vmatpush1.bf16.msra.mxu0 %v327
  %356 = vmatprep.subr.bf16.mxu0 0
  %357 = vmatpush1.bf16.msra.mxu0 %v326
  %358 = vmatprep.subr.bf16.mxu0 0
  %359 = vmatpush2.bf16.msra.mxu0 0
  %360 = vmatprep.subr.bf16.mxu0 0
  %361 = vmatpush2.bf16.msra.mxu0 0
  %362 = vmatprep.subr.bf16.mxu0 0
  %363 = vmatpush2.bf16.msra.mxu0 0
  %364 = vmatprep.subr.bf16.mxu0 0
  %365 = vmatpush2.bf16.msra.mxu0 0
  %366 = vmatprep.subr.bf16.mxu0 0
  %367 = vmatpush2.bf16.msra.mxu0 0
  %368 = vmatprep.subr.bf16.mxu0 0
  %369 = vmatpush2.bf16.msra.mxu0 0
  %370 = vmatprep.subr.bf16.mxu0 0
  %371 = vmatpush2.bf16.msra.mxu0 0
  %372 = vmatprep.subr.bf16.mxu0 0
  %373 = vmatpush2.bf16.msra.mxu0 0
  %374 = vmatprep.mubr.bf16.mxu0 0
  %375 = vmatmul.mubr.bf16.gmra.mxu0 %v230
  %v376 = vpop.f32.mrf.mxu0
  %v377 = vadd.f32 %v100, %v376
  %v378 = vpop.f32.mrf.mxu0
  %v379 = vpop.f32.mrf.mxu0
  %v380 = vadd.f32 %v100, %v379
  %v381 = vpop.f32.mrf.mxu0
  %382 = vmatprep.mubr.bf16.mxu0 0
  %383 = vmatmul.mubr.bf16.gmra.mxu0 %v231
  %v384 = vpop.f32.mrf.mxu0
  %v385 = vadd.f32 %v100, %v384
  %v386 = vpop.f32.mrf.mxu0
  %v387 = vpop.f32.mrf.mxu0
  %v388 = vadd.f32 %v100, %v387
  %v389 = vpop.f32.mrf.mxu0
  %390 = vmatprep.mubr.bf16.mxu0 0
  %391 = vmatmul.mubr.bf16.gmra.mxu0 %v232
  %v392 = vpop.f32.mrf.mxu0
  %v393 = vadd.f32 %v100, %v392
  %v394 = vpop.f32.mrf.mxu0
  %v395 = vpop.f32.mrf.mxu0
  %v396 = vadd.f32 %v100, %v395
  %v397 = vpop.f32.mrf.mxu0
  %398 = vmatprep.mubr.bf16.mxu0 0
  %399 = vmatmul.mubr.bf16.gmra.mxu0 %v233
  %v400 = vpop.f32.mrf.mxu0
  %v401 = vadd.f32 %v100, %v400
  %v402 = vpop.f32.mrf.mxu0
  %v403 = vpop.f32.mrf.mxu0
  %v404 = vadd.f32 %v100, %v403
  %v405 = vpop.f32.mrf.mxu0
  %406 = vmatprep.mubr.bf16.mxu0 0
  %407 = vmatmul.mubr.bf16.gmra.mxu0 %v234
  %v408 = vpop.f32.mrf.mxu0
  %v409 = vadd.f32 %v100, %v408
  %v410 = vpop.f32.mrf.mxu0
  %v411 = vpop.f32.mrf.mxu0
  %v412 = vadd.f32 %v100, %v411
  %v413 = vpop.f32.mrf.mxu0
  %414 = vmatprep.mubr.bf16.mxu0 0
  %415 = vmatmul.mubr.bf16.gmra.mxu0 %v235
  %v416 = vpop.f32.mrf.mxu0
  %v417 = vadd.f32 %v100, %v416
  %v418 = vpop.f32.mrf.mxu0
  %v419 = vpop.f32.mrf.mxu0
  %v420 = vadd.f32 %v100, %v419
  %v421 = vpop.f32.mrf.mxu0
  %422 = vmatprep.mubr.bf16.mxu0 0
  %423 = vmatmul.mubr.bf16.gmra.mxu0 %v236
  %v424 = vpop.f32.mrf.mxu0
  %v425 = vadd.f32 %v100, %v424
  %v426 = vpop.f32.mrf.mxu0
  %v427 = vpop.f32.mrf.mxu0
  %v428 = vadd.f32 %v100, %v427
  %v429 = vpop.f32.mrf.mxu0
  %430 = vmatprep.mubr.bf16.mxu0 0
  %431 = vmatmul.mubr.bf16.gmra.mxu0 %v237
  %v432 = vpop.f32.mrf.mxu0
  %v433 = vadd.f32 %v100, %v432
  %v434 = vpop.f32.mrf.mxu0
  %v435 = vpop.f32.mrf.mxu0
  %v436 = vadd.f32 %v100, %v435
  %v437 = vpop.f32.mrf.mxu0
  %438 = vmatprep.mubr.bf16.mxu0 0
  %439 = vmatmul.mubr.bf16.gmra.mxu0 %v238
  %v440 = vpop.f32.mrf.mxu0
  %v441 = vadd.f32 %v100, %v440
  %v442 = vpop.f32.mrf.mxu0
  %v443 = vpop.f32.mrf.mxu0
  %v444 = vadd.f32 %v100, %v443
  %v445 = vpop.f32.mrf.mxu0
  %446 = vmatprep.mubr.bf16.mxu0 0
  %447 = vmatmul.mubr.bf16.gmra.mxu0 %v239
  %v448 = vpop.f32.mrf.mxu0
  %v449 = vadd.f32 %v100, %v448
  %v450 = vpop.f32.mrf.mxu0
  %v451 = vpop.f32.mrf.mxu0
  %v452 = vadd.f32 %v100, %v451
  %v453 = vpop.f32.mrf.mxu0
  %454 = vmatprep.mubr.bf16.mxu0 0
  %455 = vmatmul.mubr.bf16.gmra.mxu0 %v240
  %v456 = vpop.f32.mrf.mxu0
  %v457 = vadd.f32 %v100, %v456
  %v458 = vpop.f32.mrf.mxu0
  %v459 = vpop.f32.mrf.mxu0
  %v460 = vadd.f32 %v100, %v459
  %v461 = vpop.f32.mrf.mxu0
  %462 = vmatprep.mubr.bf16.mxu0 0
  %463 = vmatmul.mubr.bf16.gmra.mxu0 %v241
  %v464 = vpop.f32.mrf.mxu0
  %v465 = vadd.f32 %v100, %v464
  %v466 = vpop.f32.mrf.mxu0
  %v467 = vpop.f32.mrf.mxu0
  %v468 = vadd.f32 %v100, %v467
  %v469 = vpop.f32.mrf.mxu0
  %470 = vmatprep.mubr.bf16.mxu0 0
  %471 = vmatmul.mubr.bf16.gmra.mxu0 %v242
  %v472 = vpop.f32.mrf.mxu0
  %v473 = vadd.f32 %v100, %v472
  %v474 = vpop.f32.mrf.mxu0
  %v475 = vpop.f32.mrf.mxu0
  %v476 = vadd.f32 %v100, %v475
  %v477 = vpop.f32.mrf.mxu0
  %478 = vmatprep.mubr.bf16.mxu0 0
  %479 = vmatmul.mubr.bf16.gmra.mxu0 %v243
  %v480 = vpop.f32.mrf.mxu0
  %v481 = vadd.f32 %v100, %v480
  %v482 = vpop.f32.mrf.mxu0
  %v483 = vpop.f32.mrf.mxu0
  %v484 = vadd.f32 %v100, %v483
  %v485 = vpop.f32.mrf.mxu0
  %486 = vmatprep.mubr.bf16.mxu0 0
  %487 = vmatmul.mubr.bf16.gmra.mxu0 %v244
  %v488 = vpop.f32.mrf.mxu0
  %v489 = vadd.f32 %v100, %v488
  %v490 = vpop.f32.mrf.mxu0
  %v491 = vpop.f32.mrf.mxu0
  %v492 = vadd.f32 %v100, %v491
  %v493 = vpop.f32.mrf.mxu0
  %494 = vmatprep.mubr.bf16.mxu0 0
  %495 = vmatmul.mubr.bf16.gmra.mxu0 %v245
  %v496 = vpop.f32.mrf.mxu0
  %v497 = vadd.f32 %v100, %v496
  %v498 = vpop.f32.mrf.mxu0
  %v499 = vpop.f32.mrf.mxu0
  %v500 = vadd.f32 %v100, %v499
  %v501 = vpop.f32.mrf.mxu0
  %502 = vmatprep.mubr.bf16.mxu0 0
  %503 = vmatmul.mubr.bf16.gmra.mxu0 %v246
  %v504 = vpop.f32.mrf.mxu0
  %v505 = vadd.f32 %v100, %v504
  %v506 = vpop.f32.mrf.mxu0
  %v507 = vpop.f32.mrf.mxu0
  %v508 = vadd.f32 %v100, %v507
  %v509 = vpop.f32.mrf.mxu0
  %510 = vmatprep.mubr.bf16.mxu0 0
  %511 = vmatmul.mubr.bf16.gmra.mxu0 %v247
  %v512 = vpop.f32.mrf.mxu0
  %v513 = vadd.f32 %v100, %v512
  %v514 = vpop.f32.mrf.mxu0
  %v515 = vpop.f32.mrf.mxu0
  %v516 = vadd.f32 %v100, %v515
  %v517 = vpop.f32.mrf.mxu0
  %518 = vmatprep.mubr.bf16.mxu0 0
  %519 = vmatmul.mubr.bf16.gmra.mxu0 %v248
  %v520 = vpop.f32.mrf.mxu0
  %v521 = vadd.f32 %v100, %v520
  %v522 = vpop.f32.mrf.mxu0
  %v523 = vpop.f32.mrf.mxu0
  %v524 = vadd.f32 %v100, %v523
  %v525 = vpop.f32.mrf.mxu0
  %526 = vmatprep.mubr.bf16.mxu0 0
  %527 = vmatmul.mubr.bf16.gmra.mxu0 %v249
  %v528 = vpop.f32.mrf.mxu0
  %v529 = vadd.f32 %v100, %v528
  %v530 = vpop.f32.mrf.mxu0
  %v531 = vpop.f32.mrf.mxu0
  %v532 = vadd.f32 %v100, %v531
  %v533 = vpop.f32.mrf.mxu0
  %534 = vmatprep.mubr.bf16.mxu0 0
  %535 = vmatmul.mubr.bf16.gmra.mxu0 %v250
  %v536 = vpop.f32.mrf.mxu0
  %v537 = vadd.f32 %v100, %v536
  %v538 = vpop.f32.mrf.mxu0
  %v539 = vpop.f32.mrf.mxu0
  %v540 = vadd.f32 %v100, %v539
  %v541 = vpop.f32.mrf.mxu0
  %542 = vmatprep.mubr.bf16.mxu0 0
  %543 = vmatmul.mubr.bf16.gmra.mxu0 %v251
  %v544 = vpop.f32.mrf.mxu0
  %v545 = vadd.f32 %v100, %v544
  %v546 = vpop.f32.mrf.mxu0
  %v547 = vpop.f32.mrf.mxu0
  %v548 = vadd.f32 %v100, %v547
  %v549 = vpop.f32.mrf.mxu0
  %550 = vmatprep.mubr.bf16.mxu0 0
  %551 = vmatmul.mubr.bf16.gmra.mxu0 %v252
  %v552 = vpop.f32.mrf.mxu0
  %v553 = vadd.f32 %v100, %v552
  %v554 = vpop.f32.mrf.mxu0
  %v555 = vpop.f32.mrf.mxu0
  %v556 = vadd.f32 %v100, %v555
  %v557 = vpop.f32.mrf.mxu0
  %558 = vmatprep.mubr.bf16.mxu0 0
  %559 = vmatmul.mubr.bf16.gmra.mxu0 %v253
  %v560 = vpop.f32.mrf.mxu0
  %v561 = vadd.f32 %v100, %v560
  %v562 = vpop.f32.mrf.mxu0
  %v563 = vpop.f32.mrf.mxu0
  %v564 = vadd.f32 %v100, %v563
  %v565 = vpop.f32.mrf.mxu0
  %566 = vmatprep.mubr.bf16.mxu0 0
  %567 = vmatmul.mubr.bf16.gmra.mxu0 %v254
  %v568 = vpop.f32.mrf.mxu0
  %v569 = vadd.f32 %v100, %v568
  %v570 = vpop.f32.mrf.mxu0
  %v571 = vpop.f32.mrf.mxu0
  %v572 = vadd.f32 %v100, %v571
  %v573 = vpop.f32.mrf.mxu0
  %574 = vmatprep.mubr.bf16.mxu0 0
  %575 = vmatmul.mubr.bf16.gmra.mxu0 %v255
  %v576 = vpop.f32.mrf.mxu0
  %v577 = vadd.f32 %v100, %v576
  %v578 = vpop.f32.mrf.mxu0
  %v579 = vpop.f32.mrf.mxu0
  %v580 = vadd.f32 %v100, %v579
  %v581 = vpop.f32.mrf.mxu0
  %582 = vmatprep.mubr.bf16.mxu0 0
  %583 = vmatmul.mubr.bf16.gmra.mxu0 %v256
  %v584 = vpop.f32.mrf.mxu0
  %v585 = vadd.f32 %v100, %v584
  %v586 = vpop.f32.mrf.mxu0
  %v587 = vpop.f32.mrf.mxu0
  %v588 = vadd.f32 %v100, %v587
  %v589 = vpop.f32.mrf.mxu0
  %590 = vmatprep.mubr.bf16.mxu0 0
  %591 = vmatmul.mubr.bf16.gmra.mxu0 %v257
  %v592 = vpop.f32.mrf.mxu0
  %v593 = vadd.f32 %v100, %v592
  %v594 = vpop.f32.mrf.mxu0
  %v595 = vpop.f32.mrf.mxu0
  %v596 = vadd.f32 %v100, %v595
  %v597 = vpop.f32.mrf.mxu0
  %598 = vmatprep.mubr.bf16.mxu0 0
  %599 = vmatmul.mubr.bf16.gmra.mxu0 %v258
  %v600 = vpop.f32.mrf.mxu0
  %v601 = vadd.f32 %v100, %v600
  %v602 = vpop.f32.mrf.mxu0
  %v603 = vpop.f32.mrf.mxu0
  %v604 = vadd.f32 %v100, %v603
  %v605 = vpop.f32.mrf.mxu0
  %606 = vmatprep.mubr.bf16.mxu0 0
  %607 = vmatmul.mubr.bf16.gmra.mxu0 %v259
  %v608 = vpop.f32.mrf.mxu0
  %v609 = vadd.f32 %v100, %v608
  %v610 = vpop.f32.mrf.mxu0
  %v611 = vpop.f32.mrf.mxu0
  %v612 = vadd.f32 %v100, %v611
  %v613 = vpop.f32.mrf.mxu0
  %614 = vmatprep.mubr.bf16.mxu0 0
  %615 = vmatmul.mubr.bf16.gmra.mxu0 %v260
  %v616 = vpop.f32.mrf.mxu0
  %v617 = vadd.f32 %v100, %v616
  %v618 = vpop.f32.mrf.mxu0
  %v619 = vpop.f32.mrf.mxu0
  %v620 = vadd.f32 %v100, %v619
  %v621 = vpop.f32.mrf.mxu0
  %622 = vmatprep.mubr.bf16.mxu0 0
  %623 = vmatmul.mubr.bf16.gmra.mxu0 %v261
  %v624 = vpop.f32.mrf.mxu0
  %v625 = vadd.f32 %v100, %v624
  %v626 = vpop.f32.mrf.mxu0
  %v627 = vpop.f32.mrf.mxu0
  %v628 = vadd.f32 %v100, %v627
  %v629 = vpop.f32.mrf.mxu0
  %630 = vdwg.mxu0
  %vm631 = vcmp.gt.f32.partialorder %v377, 0.0
  %vm632 = vcmp.gt.f32.partialorder %v380, 0.0
  %vm633 = vcmp.gt.f32.partialorder %v385, 0.0
  %vm634 = vcmp.gt.f32.partialorder %v388, 0.0
  %vm635 = vcmp.gt.f32.partialorder %v393, 0.0
  %vm636 = vcmp.gt.f32.partialorder %v396, 0.0
  %vm637 = vcmp.gt.f32.partialorder %v401, 0.0
  %vm638 = vcmp.gt.f32.partialorder %v404, 0.0
  %vm639 = vcmp.gt.f32.partialorder %v409, 0.0
  %vm640 = vcmp.gt.f32.partialorder %v412, 0.0
  %vm641 = vcmp.gt.f32.partialorder %v417, 0.0
  %vm642 = vcmp.gt.f32.partialorder %v420, 0.0
  %vm643 = vcmp.gt.f32.partialorder %v425, 0.0
  %vm644 = vcmp.gt.f32.partialorder %v428, 0.0
  %vm645 = vcmp.gt.f32.partialorder %v433, 0.0
  %vm646 = vcmp.gt.f32.partialorder %v436, 0.0
  %vm647 = vcmp.gt.f32.partialorder %v441, 0.0
  %vm648 = vcmp.gt.f32.partialorder %v444, 0.0
  %vm649 = vcmp.gt.f32.partialorder %v449, 0.0
  %vm650 = vcmp.gt.f32.partialorder %v452, 0.0
  %vm651 = vcmp.gt.f32.partialorder %v457, 0.0
  %vm652 = vcmp.gt.f32.partialorder %v460, 0.0
  %vm653 = vcmp.gt.f32.partialorder %v465, 0.0
  %vm654 = vcmp.gt.f32.partialorder %v468, 0.0
  %vm655 = vcmp.gt.f32.partialorder %v473, 0.0
  %vm656 = vcmp.gt.f32.partialorder %v476, 0.0
  %vm657 = vcmp.gt.f32.partialorder %v481, 0.0
  %vm658 = vcmp.gt.f32.partialorder %v484, 0.0
  %vm659 = vcmp.gt.f32.partialorder %v489, 0.0
  %vm660 = vcmp.gt.f32.partialorder %v492, 0.0
  %vm661 = vcmp.gt.f32.partialorder %v497, 0.0
  %vm662 = vcmp.gt.f32.partialorder %v500, 0.0
  %vm663 = vcmp.gt.f32.partialorder %v505, 0.0
  %vm664 = vcmp.gt.f32.partialorder %v508, 0.0
  %vm665 = vcmp.gt.f32.partialorder %v513, 0.0
  %vm666 = vcmp.gt.f32.partialorder %v516, 0.0
  %vm667 = vcmp.gt.f32.partialorder %v521, 0.0
  %vm668 = vcmp.gt.f32.partialorder %v524, 0.0
  %vm669 = vcmp.gt.f32.partialorder %v529, 0.0
  %vm670 = vcmp.gt.f32.partialorder %v532, 0.0
  %vm671 = vcmp.gt.f32.partialorder %v537, 0.0
  %vm672 = vcmp.gt.f32.partialorder %v540, 0.0
  %vm673 = vcmp.gt.f32.partialorder %v545, 0.0
  %vm674 = vcmp.gt.f32.partialorder %v548, 0.0
  %vm675 = vcmp.gt.f32.partialorder %v553, 0.0
  %vm676 = vcmp.gt.f32.partialorder %v556, 0.0
  %vm677 = vcmp.gt.f32.partialorder %v561, 0.0
  %vm678 = vcmp.gt.f32.partialorder %v564, 0.0
  %vm679 = vcmp.gt.f32.partialorder %v569, 0.0
  %vm680 = vcmp.gt.f32.partialorder %v572, 0.0
  %vm681 = vcmp.gt.f32.partialorder %v577, 0.0
  %vm682 = vcmp.gt.f32.partialorder %v580, 0.0
  %vm683 = vcmp.gt.f32.partialorder %v585, 0.0
  %vm684 = vcmp.gt.f32.partialorder %v588, 0.0
  %vm685 = vcmp.gt.f32.partialorder %v593, 0.0
  %vm686 = vcmp.gt.f32.partialorder %v596, 0.0
  %vm687 = vcmp.gt.f32.partialorder %v601, 0.0
  %vm688 = vcmp.gt.f32.partialorder %v604, 0.0
  %vm689 = vcmp.gt.f32.partialorder %v609, 0.0
  %vm690 = vcmp.gt.f32.partialorder %v612, 0.0
  %vm691 = vcmp.gt.f32.partialorder %v617, 0.0
  %vm692 = vcmp.gt.f32.partialorder %v620, 0.0
  %vm693 = vcmp.gt.f32.partialorder %v625, 0.0
  %vm694 = vcmp.gt.f32.partialorder %v628, 0.0
  %v695 = vmul.f32 %v377, 0.1
  %v696 = vmul.f32 %v380, 0.1
  %v697 = vmul.f32 %v385, 0.1
  %v698 = vmul.f32 %v388, 0.1
  %v699 = vmul.f32 %v393, 0.1
  %v700 = vmul.f32 %v396, 0.1
  %v701 = vmul.f32 %v401, 0.1
  %v702 = vmul.f32 %v404, 0.1
  %v703 = vmul.f32 %v409, 0.1
  %v704 = vmul.f32 %v412, 0.1
  %v705 = vmul.f32 %v417, 0.1
  %v706 = vmul.f32 %v420, 0.1
  %v707 = vmul.f32 %v425, 0.1
  %v708 = vmul.f32 %v428, 0.1
  %v709 = vmul.f32 %v433, 0.1
  %v710 = vmul.f32 %v436, 0.1
  %v711 = vmul.f32 %v441, 0.1
  %v712 = vmul.f32 %v444, 0.1
  %v713 = vmul.f32 %v449, 0.1
  %v714 = vmul.f32 %v452, 0.1
  %v715 = vmul.f32 %v457, 0.1
  %v716 = vmul.f32 %v460, 0.1
  %v717 = vmul.f32 %v465, 0.1
  %v718 = vmul.f32 %v468, 0.1
  %v719 = vmul.f32 %v473, 0.1
  %v720 = vmul.f32 %v476, 0.1
  %v721 = vmul.f32 %v481, 0.1
  %v722 = vmul.f32 %v484, 0.1
  %v723 = vmul.f32 %v489, 0.1
  %v724 = vmul.f32 %v492, 0.1
  %v725 = vmul.f32 %v497, 0.1
  %v726 = vmul.f32 %v500, 0.1
  %v727 = vmul.f32 %v505, 0.1
  %v728 = vmul.f32 %v508, 0.1
  %v729 = vmul.f32 %v513, 0.1
  %v730 = vmul.f32 %v516, 0.1
  %v731 = vmul.f32 %v521, 0.1
  %v732 = vmul.f32 %v524, 0.1
  %v733 = vmul.f32 %v529, 0.1
  %v734 = vmul.f32 %v532, 0.1
  %v735 = vmul.f32 %v537, 0.1
  %v736 = vmul.f32 %v540, 0.1
  %v737 = vmul.f32 %v545, 0.1
  %v738 = vmul.f32 %v548, 0.1
  %v739 = vmul.f32 %v553, 0.1
  %v740 = vmul.f32 %v556, 0.1
  %v741 = vmul.f32 %v561, 0.1
  %v742 = vmul.f32 %v564, 0.1
  %v743 = vmul.f32 %v569, 0.1
  %v744 = vmul.f32 %v572, 0.1
  %v745 = vmul.f32 %v577, 0.1
  %v746 = vmul.f32 %v580, 0.1
  %v747 = vmul.f32 %v585, 0.1
  %v748 = vmul.f32 %v588, 0.1
  %v749 = vmul.f32 %v593, 0.1
  %v750 = vmul.f32 %v596, 0.1
  %v751 = vmul.f32 %v601, 0.1
  %v752 = vmul.f32 %v604, 0.1
  %v753 = vmul.f32 %v609, 0.1
  %v754 = vmul.f32 %v612, 0.1
  %v755 = vmul.f32 %v617, 0.1
  %v756 = vmul.f32 %v620, 0.1
  %v757 = vmul.f32 %v625, 0.1
  %v758 = vmul.f32 %v628, 0.1
  %v759 = vsel %vm631, %v377, %v695
  %v760 = vsel %vm632, %v380, %v696
  %v761 = vsel %vm633, %v385, %v697
  %v762 = vsel %vm634, %v388, %v698
  %v763 = vsel %vm635, %v393, %v699
  %v764 = vsel %vm636, %v396, %v700
  %v765 = vsel %vm637, %v401, %v701
  %v766 = vsel %vm638, %v404, %v702
  %v767 = vsel %vm639, %v409, %v703
  %v768 = vsel %vm640, %v412, %v704
  %v769 = vsel %vm641, %v417, %v705
  %v770 = vsel %vm642, %v420, %v706
  %v771 = vsel %vm643, %v425, %v707
  %v772 = vsel %vm644, %v428, %v708
  %v773 = vsel %vm645, %v433, %v709
  %v774 = vsel %vm646, %v436, %v710
  %v775 = vsel %vm647, %v441, %v711
  %v776 = vsel %vm648, %v444, %v712
  %v777 = vsel %vm649, %v449, %v713
  %v778 = vsel %vm650, %v452, %v714
  %v779 = vsel %vm651, %v457, %v715
  %v780 = vsel %vm652, %v460, %v716
  %v781 = vsel %vm653, %v465, %v717
  %v782 = vsel %vm654, %v468, %v718
  %v783 = vsel %vm655, %v473, %v719
  %v784 = vsel %vm656, %v476, %v720
  %v785 = vsel %vm657, %v481, %v721
  %v786 = vsel %vm658, %v484, %v722
  %v787 = vsel %vm659, %v489, %v723
  %v788 = vsel %vm660, %v492, %v724
  %v789 = vsel %vm661, %v497, %v725
  %v790 = vsel %vm662, %v500, %v726
  %v791 = vsel %vm663, %v505, %v727
  %v792 = vsel %vm664, %v508, %v728
  %v793 = vsel %vm665, %v513, %v729
  %v794 = vsel %vm666, %v516, %v730
  %v795 = vsel %vm667, %v521, %v731
  %v796 = vsel %vm668, %v524, %v732
  %v797 = vsel %vm669, %v529, %v733
  %v798 = vsel %vm670, %v532, %v734
  %v799 = vsel %vm671, %v537, %v735
  %v800 = vsel %vm672, %v540, %v736
  %v801 = vsel %vm673, %v545, %v737
  %v802 = vsel %vm674, %v548, %v738
  %v803 = vsel %vm675, %v553, %v739
  %v804 = vsel %vm676, %v556, %v740
  %v805 = vsel %vm677, %v561, %v741
  %v806 = vsel %vm678, %v564, %v742
  %v807 = vsel %vm679, %v569, %v743
  %v808 = vsel %vm680, %v572, %v744
  %v809 = vsel %vm681, %v577, %v745
  %v810 = vsel %vm682, %v580, %v746
  %v811 = vsel %vm683, %v585, %v747
  %v812 = vsel %vm684, %v588, %v748
  %v813 = vsel %vm685, %v593, %v749
  %v814 = vsel %vm686, %v596, %v750
  %v815 = vsel %vm687, %v601, %v751
  %v816 = vsel %vm688, %v604, %v752
  %v817 = vsel %vm689, %v609, %v753
  %v818 = vsel %vm690, %v612, %v754
  %v819 = vsel %vm691, %v617, %v755
  %v820 = vsel %vm692, %v620, %v756
  %v821 = vsel %vm693, %v625, %v757
  %v822 = vsel %vm694, %v628, %v758
  %v823 = vpack.c.bf16 %v760, %v759
  %v824 = vpack.c.bf16 %v762, %v761
  %v825 = vpack.c.bf16 %v764, %v763
  %v826 = vpack.c.bf16 %v766, %v765
  %v827 = vpack.c.bf16 %v768, %v767
  %v828 = vpack.c.bf16 %v770, %v769
  %v829 = vpack.c.bf16 %v772, %v771
  %v830 = vpack.c.bf16 %v774, %v773
  %v831 = vpack.c.bf16 %v776, %v775
  %v832 = vpack.c.bf16 %v778, %v777
  %v833 = vpack.c.bf16 %v780, %v779
  %v834 = vpack.c.bf16 %v782, %v781
  %v835 = vpack.c.bf16 %v784, %v783
  %v836 = vpack.c.bf16 %v786, %v785
  %v837 = vpack.c.bf16 %v788, %v787
  %v838 = vpack.c.bf16 %v790, %v789
  %v839 = vpack.c.bf16 %v792, %v791
  %v840 = vpack.c.bf16 %v794, %v793
  %v841 = vpack.c.bf16 %v796, %v795
  %v842 = vpack.c.bf16 %v798, %v797
  %v843 = vpack.c.bf16 %v800, %v799
  %v844 = vpack.c.bf16 %v802, %v801
  %v845 = vpack.c.bf16 %v804, %v803
  %v846 = vpack.c.bf16 %v806, %v805
  %v847 = vpack.c.bf16 %v808, %v807
  %v848 = vpack.c.bf16 %v810, %v809
  %v849 = vpack.c.bf16 %v812, %v811
  %v850 = vpack.c.bf16 %v814, %v813
  %v851 = vpack.c.bf16 %v816, %v815
  %v852 = vpack.c.bf16 %v818, %v817
  %v853 = vpack.c.bf16 %v820, %v819
  %v854 = vpack.c.bf16 %v822, %v821
  %v887 = vunpack.c.l.b16 %v823
  %v888 = vunpack.c.h.b16 %v823
  %v889 = vunpack.c.l.b16 %v824
  %v890 = vunpack.c.h.b16 %v824
  %v891 = vunpack.c.l.b16 %v825
  %v892 = vunpack.c.h.b16 %v825
  %v893 = vunpack.c.l.b16 %v826
  %v894 = vunpack.c.h.b16 %v826
  %v895 = vunpack.c.l.b16 %v827
  %v896 = vunpack.c.h.b16 %v827
  %v897 = vunpack.c.l.b16 %v828
  %v898 = vunpack.c.h.b16 %v828
  %v899 = vunpack.c.l.b16 %v829
  %v900 = vunpack.c.h.b16 %v829
  %v901 = vunpack.c.l.b16 %v830
  %v902 = vunpack.c.h.b16 %v830
  %v903 = vunpack.c.l.b16 %v831
  %v904 = vunpack.c.h.b16 %v831
  %v905 = vunpack.c.l.b16 %v832
  %v906 = vunpack.c.h.b16 %v832
  %v907 = vunpack.c.l.b16 %v833
  %v908 = vunpack.c.h.b16 %v833
  %v909 = vunpack.c.l.b16 %v834
  %v910 = vunpack.c.h.b16 %v834
  %v911 = vunpack.c.l.b16 %v835
  %v912 = vunpack.c.h.b16 %v835
  %v913 = vunpack.c.l.b16 %v836
  %v914 = vunpack.c.h.b16 %v836
  %v915 = vunpack.c.l.b16 %v837
  %v916 = vunpack.c.h.b16 %v837
  %v917 = vunpack.c.l.b16 %v838
  %v918 = vunpack.c.h.b16 %v838
  %v919 = vunpack.c.l.b16 %v839
  %v920 = vunpack.c.h.b16 %v839
  %v921 = vunpack.c.l.b16 %v840
  %v922 = vunpack.c.h.b16 %v840
  %v923 = vunpack.c.l.b16 %v841
  %v924 = vunpack.c.h.b16 %v841
  %v925 = vunpack.c.l.b16 %v842
  %v926 = vunpack.c.h.b16 %v842
  %v927 = vunpack.c.l.b16 %v843
  %v928 = vunpack.c.h.b16 %v843
  %v929 = vunpack.c.l.b16 %v844
  %v930 = vunpack.c.h.b16 %v844
  %v931 = vunpack.c.l.b16 %v845
  %v932 = vunpack.c.h.b16 %v845
  %v933 = vunpack.c.l.b16 %v846
  %v934 = vunpack.c.h.b16 %v846
  %v935 = vunpack.c.l.b16 %v847
  %v936 = vunpack.c.h.b16 %v847
  %v937 = vunpack.c.l.b16 %v848
  %v938 = vunpack.c.h.b16 %v848
  %v939 = vunpack.c.l.b16 %v849
  %v940 = vunpack.c.h.b16 %v849
  %v941 = vunpack.c.l.b16 %v850
  %v942 = vunpack.c.h.b16 %v850
  %v943 = vunpack.c.l.b16 %v851
  %v944 = vunpack.c.h.b16 %v851
  %v945 = vunpack.c.l.b16 %v852
  %v946 = vunpack.c.h.b16 %v852
  %v947 = vunpack.c.l.b16 %v853
  %v948 = vunpack.c.h.b16 %v853
  %v949 = vunpack.c.l.b16 %v854
  %v950 = vunpack.c.h.b16 %v854
  %v951 = vpack.c.b16 %v887, %v887
  %v952 = vpack.c.b16 %v888, %v888
  %v953 = vpack.c.b16 %v889, %v889
  %v954 = vpack.c.b16 %v890, %v890
  %v955 = vpack.c.b16 %v891, %v891
  %v956 = vpack.c.b16 %v892, %v892
  %v957 = vpack.c.b16 %v893, %v893
  %v958 = vpack.c.b16 %v894, %v894
  %v959 = vpack.c.b16 %v895, %v895
  %v960 = vpack.c.b16 %v896, %v896
  %v961 = vpack.c.b16 %v897, %v897
  %v962 = vpack.c.b16 %v898, %v898
  %v963 = vpack.c.b16 %v899, %v899
  %v964 = vpack.c.b16 %v900, %v900
  %v965 = vpack.c.b16 %v901, %v901
  %v966 = vpack.c.b16 %v902, %v902
  %v967 = vpack.c.b16 %v903, %v903
  %v968 = vpack.c.b16 %v904, %v904
  %v969 = vpack.c.b16 %v905, %v905
  %v970 = vpack.c.b16 %v906, %v906
  %v971 = vpack.c.b16 %v907, %v907
  %v972 = vpack.c.b16 %v908, %v908
  %v973 = vpack.c.b16 %v909, %v909
  %v974 = vpack.c.b16 %v910, %v910
  %v975 = vpack.c.b16 %v911, %v911
  %v976 = vpack.c.b16 %v912, %v912
  %v977 = vpack.c.b16 %v913, %v913
  %v978 = vpack.c.b16 %v914, %v914
  %v979 = vpack.c.b16 %v915, %v915
  %v980 = vpack.c.b16 %v916, %v916
  %v981 = vpack.c.b16 %v917, %v917
  %v982 = vpack.c.b16 %v918, %v918
  %v983 = vpack.c.b16 %v919, %v919
  %v984 = vpack.c.b16 %v920, %v920
  %v985 = vpack.c.b16 %v921, %v921
  %v986 = vpack.c.b16 %v922, %v922
  %v987 = vpack.c.b16 %v923, %v923
  %v988 = vpack.c.b16 %v924, %v924
  %v989 = vpack.c.b16 %v925, %v925
  %v990 = vpack.c.b16 %v926, %v926
  %v991 = vpack.c.b16 %v927, %v927
  %v992 = vpack.c.b16 %v928, %v928
  %v993 = vpack.c.b16 %v929, %v929
  %v994 = vpack.c.b16 %v930, %v930
  %v995 = vpack.c.b16 %v931, %v931
  %v996 = vpack.c.b16 %v932, %v932
  %v997 = vpack.c.b16 %v933, %v933
  %v998 = vpack.c.b16 %v934, %v934
  %v999 = vpack.c.b16 %v935, %v935
  %v1000 = vpack.c.b16 %v936, %v936
  %v1001 = vpack.c.b16 %v937, %v937
  %v1002 = vpack.c.b16 %v938, %v938
  %v1003 = vpack.c.b16 %v939, %v939
  %v1004 = vpack.c.b16 %v940, %v940
  %v1005 = vpack.c.b16 %v941, %v941
  %v1006 = vpack.c.b16 %v942, %v942
  %v1007 = vpack.c.b16 %v943, %v943
  %v1008 = vpack.c.b16 %v944, %v944
  %v1009 = vpack.c.b16 %v945, %v945
  %v1010 = vpack.c.b16 %v946, %v946
  %v1011 = vpack.c.b16 %v947, %v947
  %v1012 = vpack.c.b16 %v948, %v948
  %v1013 = vpack.c.b16 %v949, %v949
  %v1014 = vpack.c.b16 %v950, %v950
  %vm1079 = vcmask 125952
  %1080 = vst.msk [vmem:[%s3] sm:$0xf] %vm1079, %v951
  %1081 = vst.msk [vmem:[%s3 + $0x4] sm:$0xf] %vm1079, %v952
  %1082 = vst.msk [vmem:[%s3 + $0x8] sm:$0xf] %vm1079, %v953
  %1083 = vst.msk [vmem:[%s3 + $0xc] sm:$0xf] %vm1079, %v954
  %1084 = vst.msk [vmem:[%s3 + $0x10] sm:$0xf] %vm1079, %v955
  %1085 = vst.msk [vmem:[%s3 + $0x14] sm:$0xf] %vm1079, %v956
  %1086 = vst.msk [vmem:[%s3 + $0x18] sm:$0xf] %vm1079, %v957
  %1087 = vst.msk [vmem:[%s3 + $0x1c] sm:$0xf] %vm1079, %v958
  %1088 = vst.msk [vmem:[%s3 + $0x20] sm:$0xf] %vm1079, %v959
  %1089 = vst.msk [vmem:[%s3 + $0x24] sm:$0xf] %vm1079, %v960
  %1090 = vst.msk [vmem:[%s3 + $0x28] sm:$0xf] %vm1079, %v961
  %1091 = vst.msk [vmem:[%s3 + $0x2c] sm:$0xf] %vm1079, %v962
  %1092 = vst.msk [vmem:[%s3 + $0x30] sm:$0xf] %vm1079, %v963
  %1093 = vst.msk [vmem:[%s3 + $0x34] sm:$0xf] %vm1079, %v964
  %1094 = vst.msk [vmem:[%s3 + $0x38] sm:$0xf] %vm1079, %v965
  %1095 = vst.msk [vmem:[%s3 + $0x3c] sm:$0xf] %vm1079, %v966
  %1096 = vst.msk [vmem:[%s3 + $0x40] sm:$0xf] %vm1079, %v967
  %1097 = vst.msk [vmem:[%s3 + $0x44] sm:$0xf] %vm1079, %v968
  %1098 = vst.msk [vmem:[%s3 + $0x48] sm:$0xf] %vm1079, %v969
  %1099 = vst.msk [vmem:[%s3 + $0x4c] sm:$0xf] %vm1079, %v970
  %1100 = vst.msk [vmem:[%s3 + $0x50] sm:$0xf] %vm1079, %v971
  %1101 = vst.msk [vmem:[%s3 + $0x54] sm:$0xf] %vm1079, %v972
  %1102 = vst.msk [vmem:[%s3 + $0x58] sm:$0xf] %vm1079, %v973
  %1103 = vst.msk [vmem:[%s3 + $0x5c] sm:$0xf] %vm1079, %v974
  %1104 = vst.msk [vmem:[%s3 + $0x60] sm:$0xf] %vm1079, %v975
  %1105 = vst.msk [vmem:[%s3 + $0x64] sm:$0xf] %vm1079, %v976
  %1106 = vst.msk [vmem:[%s3 + $0x68] sm:$0xf] %vm1079, %v977
  %1107 = vst.msk [vmem:[%s3 + $0x6c] sm:$0xf] %vm1079, %v978
  %1108 = vst.msk [vmem:[%s3 + $0x70] sm:$0xf] %vm1079, %v979
  %1109 = vst.msk [vmem:[%s3 + $0x74] sm:$0xf] %vm1079, %v980
  %1110 = vst.msk [vmem:[%s3 + $0x78] sm:$0xf] %vm1079, %v981
  %1111 = vst.msk [vmem:[%s3 + $0x7c] sm:$0xf] %vm1079, %v982
  %1112 = vst.msk [vmem:[%s3 + $0x80] sm:$0xf] %vm1079, %v983
  %1113 = vst.msk [vmem:[%s3 + $0x84] sm:$0xf] %vm1079, %v984
  %1114 = vst.msk [vmem:[%s3 + $0x88] sm:$0xf] %vm1079, %v985
  %1115 = vst.msk [vmem:[%s3 + $0x8c] sm:$0xf] %vm1079, %v986
  %1116 = vst.msk [vmem:[%s3 + $0x90] sm:$0xf] %vm1079, %v987
  %1117 = vst.msk [vmem:[%s3 + $0x94] sm:$0xf] %vm1079, %v988
  %1118 = vst.msk [vmem:[%s3 + $0x98] sm:$0xf] %vm1079, %v989
  %1119 = vst.msk [vmem:[%s3 + $0x9c] sm:$0xf] %vm1079, %v990
  %1120 = vst.msk [vmem:[%s3 + $0xa0] sm:$0xf] %vm1079, %v991
  %1121 = vst.msk [vmem:[%s3 + $0xa4] sm:$0xf] %vm1079, %v992
  %1122 = vst.msk [vmem:[%s3 + $0xa8] sm:$0xf] %vm1079, %v993
  %1123 = vst.msk [vmem:[%s3 + $0xac] sm:$0xf] %vm1079, %v994
  %1124 = vst.msk [vmem:[%s3 + $0xb0] sm:$0xf] %vm1079, %v995
  %1125 = vst.msk [vmem:[%s3 + $0xb4] sm:$0xf] %vm1079, %v996
  %1126 = vst.msk [vmem:[%s3 + $0xb8] sm:$0xf] %vm1079, %v997
  %1127 = vst.msk [vmem:[%s3 + $0xbc] sm:$0xf] %vm1079, %v998
  %1128 = vst.msk [vmem:[%s3 + $0xc0] sm:$0xf] %vm1079, %v999
  %1129 = vst.msk [vmem:[%s3 + $0xc4] sm:$0xf] %vm1079, %v1000
  %1130 = vst.msk [vmem:[%s3 + $0xc8] sm:$0xf] %vm1079, %v1001
  %1131 = vst.msk [vmem:[%s3 + $0xcc] sm:$0xf] %vm1079, %v1002
  %1132 = vst.msk [vmem:[%s3 + $0xd0] sm:$0xf] %vm1079, %v1003
  %1133 = vst.msk [vmem:[%s3 + $0xd4] sm:$0xf] %vm1079, %v1004
  %1134 = vst.msk [vmem:[%s3 + $0xd8] sm:$0xf] %vm1079, %v1005
  %1135 = vst.msk [vmem:[%s3 + $0xdc] sm:$0xf] %vm1079, %v1006
  %1136 = vst.msk [vmem:[%s3 + $0xe0] sm:$0xf] %vm1079, %v1007
  %1137 = vst.msk [vmem:[%s3 + $0xe4] sm:$0xf] %vm1079, %v1008
  %1138 = vst.msk [vmem:[%s3 + $0xe8] sm:$0xf] %vm1079, %v1009
  %1139 = vst.msk [vmem:[%s3 + $0xec] sm:$0xf] %vm1079, %v1010
  %1140 = vst.msk [vmem:[%s3 + $0xf0] sm:$0xf] %vm1079, %v1011
  %1141 = vst.msk [vmem:[%s3 + $0xf4] sm:$0xf] %vm1079, %v1012
  %1142 = vst.msk [vmem:[%s3 + $0xf8] sm:$0xf] %vm1079, %v1013
  %1143 = vst.msk [vmem:[%s3 + $0xfc] sm:$0xf] %vm1079, %v1014
  // Predicated region
  $region14: #{discriminator_forward.6} parent=0 // pred_check
    _
  $region15: #{discriminator_forward.6} parent=0 // pred_check_branch
    %1145 = sbr.rel (0) target = $region17
  $region16: #{discriminator_forward.6} parent=0 // pred_region
    _
  $region17: #{discriminator_forward.6} parent=0 // pred_fallthru
    _
  // Predicated region
  $region18: #{discriminator_forward.6} parent=0 // pred_check
    _
  $region19: #{discriminator_forward.6} parent=0 // pred_check_branch
    %1147 = sbr.rel (0) target = $region21
  $region20: #{discriminator_forward.6} parent=0 // pred_region
    _
  $region21: #{discriminator_forward.6} parent=0 // pred_fallthru
    _

// kernel: discriminator_forward.7
$region0: #{discriminator_forward.7}
  #allocation0 [shape = 'u32[]', space=smem, size = 0x4, offset = 0x4, fixed_abs, tag = 'smem constant byte address 0x4 - core index']
  #allocation1 [shape = 'u32[144,128]{1,0:T(1,128)}', space=vmem, size = 0x12000, scoped, tag = 'internal scratch']
  %s0 = inlined_call_operand.vmem [shape: bf16[128,256], index: 0, kind: input, shape index: {}]
  %s1 = inlined_call_operand.vmem [shape: bf16[256,32], index: 1, kind: input, shape index: {}]
  %s2 = inlined_call_operand.vmem [shape: f32[1,32], index: 2, kind: input, shape index: {}]
  %s3 = inlined_call_operand.vmem [shape: bf16[128,32], index: 3, kind: output, shape index: {}]
  %s4 = sld [smem:[#allocation0]]
  $region22: #{discriminator_forward.7} parent=0
    _
  %s6 = ssub.s32 1, %s4
  %s7 = scalar_select 0, %s6, %s4
  // Predicated region
  $region2: #{discriminator_forward.7} parent=0 // pred_check
    _
  $region3: #{discriminator_forward.7} parent=0 // pred_check_branch
    %9 = sbr.rel (0) target = $region5
  $region4: #{discriminator_forward.7} parent=0 // pred_region
    _
  $region5: #{discriminator_forward.7} parent=0 // pred_fallthru
    _
  // Predicated region
  $region6: #{discriminator_forward.7} parent=0 // pred_check
    _
  $region7: #{discriminator_forward.7} parent=0 // pred_check_branch
    %11 = sbr.rel (0) target = $region9
  $region8: #{discriminator_forward.7} parent=0 // pred_region
    _
  $region9: #{discriminator_forward.7} parent=0 // pred_fallthru
    _
  // Predicated region
  $region10: #{discriminator_forward.7} parent=0 // pred_check
    _
  $region11: #{discriminator_forward.7} parent=0 // pred_check_branch
    %13 = sbr.rel (0) target = $region13
  $region12: #{discriminator_forward.7} parent=0 // pred_region
    _
  $region13: #{discriminator_forward.7} parent=0 // pred_fallthru
    _
  %v15 = vld [vmem:[%s0] sm:$0xff]
  %v16 = vld [vmem:[%s0 + $0x8] sm:$0xff]
  %v17 = vld [vmem:[%s0 + $0x10] sm:$0xff]
  %v18 = vld [vmem:[%s0 + $0x18] sm:$0xff]
  %v19 = vld [vmem:[%s0 + $0x20] sm:$0xff]
  %v20 = vld [vmem:[%s0 + $0x28] sm:$0xff]
  %v21 = vld [vmem:[%s0 + $0x30] sm:$0xff]
  %v22 = vld [vmem:[%s0 + $0x38] sm:$0xff]
  %v23 = vld [vmem:[%s0 + $0x40] sm:$0xff]
  %v24 = vld [vmem:[%s0 + $0x48] sm:$0xff]
  %v25 = vld [vmem:[%s0 + $0x50] sm:$0xff]
  %v26 = vld [vmem:[%s0 + $0x58] sm:$0xff]
  %v27 = vld [vmem:[%s0 + $0x60] sm:$0xff]
  %v28 = vld [vmem:[%s0 + $0x68] sm:$0xff]
  %v29 = vld [vmem:[%s0 + $0x70] sm:$0xff]
  %v30 = vld [vmem:[%s0 + $0x78] sm:$0xff]
  %v31 = vld [vmem:[%s1] sm:$0xf]
  %v32 = vld [vmem:[%s1 + $0x4] sm:$0xf]
  %v33 = vld [vmem:[%s1 + $0x8] sm:$0xf]
  %v34 = vld [vmem:[%s1 + $0xc] sm:$0xf]
  %v35 = vld [vmem:[%s1 + $0x10] sm:$0xf]
  %v36 = vld [vmem:[%s1 + $0x14] sm:$0xf]
  %v37 = vld [vmem:[%s1 + $0x18] sm:$0xf]
  %v38 = vld [vmem:[%s1 + $0x1c] sm:$0xf]
  %v39 = vld [vmem:[%s1 + $0x20] sm:$0xf]
  %v40 = vld [vmem:[%s1 + $0x24] sm:$0xf]
  %v41 = vld [vmem:[%s1 + $0x28] sm:$0xf]
  %v42 = vld [vmem:[%s1 + $0x2c] sm:$0xf]
  %v43 = vld [vmem:[%s1 + $0x30] sm:$0xf]
  %v44 = vld [vmem:[%s1 + $0x34] sm:$0xf]
  %v45 = vld [vmem:[%s1 + $0x38] sm:$0xf]
  %v46 = vld [vmem:[%s1 + $0x3c] sm:$0xf]
  %v47 = vld [vmem:[%s1 + $0x40] sm:$0xf]
  %v48 = vld [vmem:[%s1 + $0x44] sm:$0xf]
  %v49 = vld [vmem:[%s1 + $0x48] sm:$0xf]
  %v50 = vld [vmem:[%s1 + $0x4c] sm:$0xf]
  %v51 = vld [vmem:[%s1 + $0x50] sm:$0xf]
  %v52 = vld [vmem:[%s1 + $0x54] sm:$0xf]
  %v53 = vld [vmem:[%s1 + $0x58] sm:$0xf]
  %v54 = vld [vmem:[%s1 + $0x5c] sm:$0xf]
  %v55 = vld [vmem:[%s1 + $0x60] sm:$0xf]
  %v56 = vld [vmem:[%s1 + $0x64] sm:$0xf]
  %v57 = vld [vmem:[%s1 + $0x68] sm:$0xf]
  %v58 = vld [vmem:[%s1 + $0x6c] sm:$0xf]
  %v59 = vld [vmem:[%s1 + $0x70] sm:$0xf]
  %v60 = vld [vmem:[%s1 + $0x74] sm:$0xf]
  %v61 = vld [vmem:[%s1 + $0x78] sm:$0xf]
  %v62 = vld [vmem:[%s1 + $0x7c] sm:$0xf]
  %v63 = vld [vmem:[%s2] sm:$0x1]
  %v65 = vlaneseq
  %v66 = vshrl.u32 %v65, 7
  %v67 = vsub.s32 0, %v66
  %v68 = vrot.slane %v63, %v67
  %v86 = vunpack.c.l.b16 %v15
  %v87 = vunpack.c.h.b16 %v15
  %v88 = vunpack.c.l.b16 %v16
  %v89 = vunpack.c.h.b16 %v16
  %v90 = vunpack.c.l.b16 %v17
  %v91 = vunpack.c.h.b16 %v17
  %v92 = vunpack.c.l.b16 %v18
  %v93 = vunpack.c.h.b16 %v18
  %v94 = vunpack.c.l.b16 %v19
  %v95 = vunpack.c.h.b16 %v19
  %v96 = vunpack.c.l.b16 %v20
  %v97 = vunpack.c.h.b16 %v20
  %v98 = vunpack.c.l.b16 %v21
  %v99 = vunpack.c.h.b16 %v21
  %v100 = vunpack.c.l.b16 %v22
  %v101 = vunpack.c.h.b16 %v22
  %v102 = vunpack.c.l.b16 %v23
  %v103 = vunpack.c.h.b16 %v23
  %v104 = vunpack.c.l.b16 %v24
  %v105 = vunpack.c.h.b16 %v24
  %v106 = vunpack.c.l.b16 %v25
  %v107 = vunpack.c.h.b16 %v25
  %v108 = vunpack.c.l.b16 %v26
  %v109 = vunpack.c.h.b16 %v26
  %v110 = vunpack.c.l.b16 %v27
  %v111 = vunpack.c.h.b16 %v27
  %v112 = vunpack.c.l.b16 %v28
  %v113 = vunpack.c.h.b16 %v28
  %v114 = vunpack.c.l.b16 %v29
  %v115 = vunpack.c.h.b16 %v29
  %v116 = vunpack.c.l.b16 %v30
  %v117 = vunpack.c.h.b16 %v30
  %v118 = vpack.c.b16 %v88, %v86
  %v119 = vpack.c.b16 %v89, %v87
  %v120 = vpack.c.b16 %v92, %v90
  %v121 = vpack.c.b16 %v93, %v91
  %v122 = vpack.c.b16 %v96, %v94
  %v123 = vpack.c.b16 %v97, %v95
  %v124 = vpack.c.b16 %v100, %v98
  %v125 = vpack.c.b16 %v101, %v99
  %v126 = vpack.c.b16 %v104, %v102
  %v127 = vpack.c.b16 %v105, %v103
  %v128 = vpack.c.b16 %v108, %v106
  %v129 = vpack.c.b16 %v109, %v107
  %v130 = vpack.c.b16 %v112, %v110
  %v131 = vpack.c.b16 %v113, %v111
  %v132 = vpack.c.b16 %v116, %v114
  %v133 = vpack.c.b16 %v117, %v115
  %v182 = vunpack.c.l.b16 %v31
  %v183 = vunpack.c.l.b16 %v32
  %v184 = vunpack.c.l.b16 %v33
  %v185 = vunpack.c.l.b16 %v34
  %v186 = vunpack.c.l.b16 %v35
  %v187 = vunpack.c.l.b16 %v36
  %v188 = vunpack.c.l.b16 %v37
  %v189 = vunpack.c.l.b16 %v38
  %v190 = vunpack.c.l.b16 %v39
  %v191 = vunpack.c.l.b16 %v40
  %v192 = vunpack.c.l.b16 %v41
  %v193 = vunpack.c.l.b16 %v42
  %v194 = vunpack.c.l.b16 %v43
  %v195 = vunpack.c.l.b16 %v44
  %v196 = vunpack.c.l.b16 %v45
  %v197 = vunpack.c.l.b16 %v46
  %v198 = vunpack.c.l.b16 %v47
  %v199 = vunpack.c.l.b16 %v48
  %v200 = vunpack.c.l.b16 %v49
  %v201 = vunpack.c.l.b16 %v50
  %v202 = vunpack.c.l.b16 %v51
  %v203 = vunpack.c.l.b16 %v52
  %v204 = vunpack.c.l.b16 %v53
  %v205 = vunpack.c.l.b16 %v54
  %v206 = vunpack.c.l.b16 %v55
  %v207 = vunpack.c.l.b16 %v56
  %v208 = vunpack.c.l.b16 %v57
  %v209 = vunpack.c.l.b16 %v58
  %v210 = vunpack.c.l.b16 %v59
  %v211 = vunpack.c.l.b16 %v60
  %v212 = vunpack.c.l.b16 %v61
  %v213 = vunpack.c.l.b16 %v62
  %v214 = vpack.c.b16 %v183, %v182
  %v215 = vpack.c.b16 %v185, %v184
  %v216 = vpack.c.b16 %v187, %v186
  %v217 = vpack.c.b16 %v189, %v188
  %v218 = vpack.c.b16 %v191, %v190
  %v219 = vpack.c.b16 %v193, %v192
  %v220 = vpack.c.b16 %v195, %v194
  %v221 = vpack.c.b16 %v197, %v196
  %v222 = vpack.c.b16 %v199, %v198
  %v223 = vpack.c.b16 %v201, %v200
  %v224 = vpack.c.b16 %v203, %v202
  %v225 = vpack.c.b16 %v205, %v204
  %v226 = vpack.c.b16 %v207, %v206
  %v227 = vpack.c.b16 %v209, %v208
  %v228 = vpack.c.b16 %v211, %v210
  %v229 = vpack.c.b16 %v213, %v212
  %246 = vmatprep.subr.bf16.mxu0 0
  %247 = vmatpush1.bf16.msra.mxu0 %v221
  %248 = vmatprep.subr.bf16.mxu0 0
  %249 = vmatpush1.bf16.msra.mxu0 %v220
  %250 = vmatprep.subr.bf16.mxu0 0
  %251 = vmatpush1.bf16.msra.mxu0 %v219
  %252 = vmatprep.subr.bf16.mxu0 0
  %253 = vmatpush1.bf16.msra.mxu0 %v218
  %254 = vmatprep.subr.bf16.mxu0 0
  %255 = vmatpush1.bf16.msra.mxu0 %v217
  %256 = vmatprep.subr.bf16.mxu0 0
  %257 = vmatpush1.bf16.msra.mxu0 %v216
  %258 = vmatprep.subr.bf16.mxu0 0
  %259 = vmatpush1.bf16.msra.mxu0 %v215
  %260 = vmatprep.subr.bf16.mxu0 0
  %261 = vmatpush1.bf16.msra.mxu0 %v214
  %262 = vmatprep.subr.bf16.mxu0 0
  %263 = vmatpush2.bf16.msra.mxu0 %v229
  %264 = vmatprep.subr.bf16.mxu0 0
  %265 = vmatpush2.bf16.msra.mxu0 %v228
  %266 = vmatprep.subr.bf16.mxu0 0
  %267 = vmatpush2.bf16.msra.mxu0 %v227
  %268 = vmatprep.subr.bf16.mxu0 0
  %269 = vmatpush2.bf16.msra.mxu0 %v226
  %270 = vmatprep.subr.bf16.mxu0 0
  %271 = vmatpush2.bf16.msra.mxu0 %v225
  %272 = vmatprep.subr.bf16.mxu0 0
  %273 = vmatpush2.bf16.msra.mxu0 %v224
  %274 = vmatprep.subr.bf16.mxu0 0
  %275 = vmatpush2.bf16.msra.mxu0 %v223
  %276 = vmatprep.subr.bf16.mxu0 0
  %277 = vmatpush2.bf16.msra.mxu0 %v222
  %278 = vmatprep.mubr.bf16.mxu0 %v119
  %279 = vmatmul.mubr.bf16.gmra.mxu0 %v118
  %v280 = vpop.f32.mrf.mxu0
  %v281 = vadd.f32 %v68, %v280
  %v282 = vpop.f32.mrf.mxu0
  %v283 = vpop.f32.mrf.mxu0
  %v284 = vadd.f32 %v68, %v283
  %v285 = vpop.f32.mrf.mxu0
  %286 = vmatprep.mubr.bf16.mxu0 %v121
  %287 = vmatmul.mubr.bf16.gmra.mxu0 %v120
  %v288 = vpop.f32.mrf.mxu0
  %v289 = vadd.f32 %v68, %v288
  %v290 = vpop.f32.mrf.mxu0
  %v291 = vpop.f32.mrf.mxu0
  %v292 = vadd.f32 %v68, %v291
  %v293 = vpop.f32.mrf.mxu0
  %294 = vmatprep.mubr.bf16.mxu0 %v123
  %295 = vmatmul.mubr.bf16.gmra.mxu0 %v122
  %v296 = vpop.f32.mrf.mxu0
  %v297 = vadd.f32 %v68, %v296
  %v298 = vpop.f32.mrf.mxu0
  %v299 = vpop.f32.mrf.mxu0
  %v300 = vadd.f32 %v68, %v299
  %v301 = vpop.f32.mrf.mxu0
  %302 = vmatprep.mubr.bf16.mxu0 %v125
  %303 = vmatmul.mubr.bf16.gmra.mxu0 %v124
  %v304 = vpop.f32.mrf.mxu0
  %v305 = vadd.f32 %v68, %v304
  %v306 = vpop.f32.mrf.mxu0
  %v307 = vpop.f32.mrf.mxu0
  %v308 = vadd.f32 %v68, %v307
  %v309 = vpop.f32.mrf.mxu0
  %310 = vmatprep.mubr.bf16.mxu0 %v127
  %311 = vmatmul.mubr.bf16.gmra.mxu0 %v126
  %v312 = vpop.f32.mrf.mxu0
  %v313 = vadd.f32 %v68, %v312
  %v314 = vpop.f32.mrf.mxu0
  %v315 = vpop.f32.mrf.mxu0
  %v316 = vadd.f32 %v68, %v315
  %v317 = vpop.f32.mrf.mxu0
  %318 = vmatprep.mubr.bf16.mxu0 %v129
  %319 = vmatmul.mubr.bf16.gmra.mxu0 %v128
  %v320 = vpop.f32.mrf.mxu0
  %v321 = vadd.f32 %v68, %v320
  %v322 = vpop.f32.mrf.mxu0
  %v323 = vpop.f32.mrf.mxu0
  %v324 = vadd.f32 %v68, %v323
  %v325 = vpop.f32.mrf.mxu0
  %326 = vmatprep.mubr.bf16.mxu0 %v131
  %327 = vmatmul.mubr.bf16.gmra.mxu0 %v130
  %v328 = vpop.f32.mrf.mxu0
  %v329 = vadd.f32 %v68, %v328
  %v330 = vpop.f32.mrf.mxu0
  %v331 = vpop.f32.mrf.mxu0
  %v332 = vadd.f32 %v68, %v331
  %v333 = vpop.f32.mrf.mxu0
  %334 = vmatprep.mubr.bf16.mxu0 %v133
  %335 = vmatmul.mubr.bf16.gmra.mxu0 %v132
  %v336 = vpop.f32.mrf.mxu0
  %v337 = vadd.f32 %v68, %v336
  %v338 = vpop.f32.mrf.mxu0
  %v339 = vpop.f32.mrf.mxu0
  %v340 = vadd.f32 %v68, %v339
  %v341 = vpop.f32.mrf.mxu0
  %342 = vdwg.mxu0
  %vm343 = vcmp.gt.f32.partialorder %v281, 0.0
  %vm344 = vcmp.gt.f32.partialorder %v284, 0.0
  %vm345 = vcmp.gt.f32.partialorder %v289, 0.0
  %vm346 = vcmp.gt.f32.partialorder %v292, 0.0
  %vm347 = vcmp.gt.f32.partialorder %v297, 0.0
  %vm348 = vcmp.gt.f32.partialorder %v300, 0.0
  %vm349 = vcmp.gt.f32.partialorder %v305, 0.0
  %vm350 = vcmp.gt.f32.partialorder %v308, 0.0
  %vm351 = vcmp.gt.f32.partialorder %v313, 0.0
  %vm352 = vcmp.gt.f32.partialorder %v316, 0.0
  %vm353 = vcmp.gt.f32.partialorder %v321, 0.0
  %vm354 = vcmp.gt.f32.partialorder %v324, 0.0
  %vm355 = vcmp.gt.f32.partialorder %v329, 0.0
  %vm356 = vcmp.gt.f32.partialorder %v332, 0.0
  %vm357 = vcmp.gt.f32.partialorder %v337, 0.0
  %vm358 = vcmp.gt.f32.partialorder %v340, 0.0
  %v359 = vmul.f32 %v281, 0.1
  %v360 = vmul.f32 %v284, 0.1
  %v361 = vmul.f32 %v289, 0.1
  %v362 = vmul.f32 %v292, 0.1
  %v363 = vmul.f32 %v297, 0.1
  %v364 = vmul.f32 %v300, 0.1
  %v365 = vmul.f32 %v305, 0.1
  %v366 = vmul.f32 %v308, 0.1
  %v367 = vmul.f32 %v313, 0.1
  %v368 = vmul.f32 %v316, 0.1
  %v369 = vmul.f32 %v321, 0.1
  %v370 = vmul.f32 %v324, 0.1
  %v371 = vmul.f32 %v329, 0.1
  %v372 = vmul.f32 %v332, 0.1
  %v373 = vmul.f32 %v337, 0.1
  %v374 = vmul.f32 %v340, 0.1
  %v375 = vsel %vm343, %v281, %v359
  %v376 = vsel %vm344, %v284, %v360
  %v377 = vsel %vm345, %v289, %v361
  %v378 = vsel %vm346, %v292, %v362
  %v379 = vsel %vm347, %v297, %v363
  %v380 = vsel %vm348, %v300, %v364
  %v381 = vsel %vm349, %v305, %v365
  %v382 = vsel %vm350, %v308, %v366
  %v383 = vsel %vm351, %v313, %v367
  %v384 = vsel %vm352, %v316, %v368
  %v385 = vsel %vm353, %v321, %v369
  %v386 = vsel %vm354, %v324, %v370
  %v387 = vsel %vm355, %v329, %v371
  %v388 = vsel %vm356, %v332, %v372
  %v389 = vsel %vm357, %v337, %v373
  %v390 = vsel %vm358, %v340, %v374
  %v391 = vpack.c.bf16 %v376, %v375
  %v392 = vpack.c.bf16 %v378, %v377
  %v393 = vpack.c.bf16 %v380, %v379
  %v394 = vpack.c.bf16 %v382, %v381
  %v395 = vpack.c.bf16 %v384, %v383
  %v396 = vpack.c.bf16 %v386, %v385
  %v397 = vpack.c.bf16 %v388, %v387
  %v398 = vpack.c.bf16 %v390, %v389
  %v407 = vunpack.c.l.b16 %v391
  %v408 = vunpack.c.h.b16 %v391
  %v409 = vunpack.c.l.b16 %v392
  %v410 = vunpack.c.h.b16 %v392
  %v411 = vunpack.c.l.b16 %v393
  %v412 = vunpack.c.h.b16 %v393
  %v413 = vunpack.c.l.b16 %v394
  %v414 = vunpack.c.h.b16 %v394
  %v415 = vunpack.c.l.b16 %v395
  %v416 = vunpack.c.h.b16 %v395
  %v417 = vunpack.c.l.b16 %v396
  %v418 = vunpack.c.h.b16 %v396
  %v419 = vunpack.c.l.b16 %v397
  %v420 = vunpack.c.h.b16 %v397
  %v421 = vunpack.c.l.b16 %v398
  %v422 = vunpack.c.h.b16 %v398
  %v423 = vpack.c.b16 %v407, %v407
  %v424 = vpack.c.b16 %v408, %v408
  %v425 = vpack.c.b16 %v409, %v409
  %v426 = vpack.c.b16 %v410, %v410
  %v427 = vpack.c.b16 %v411, %v411
  %v428 = vpack.c.b16 %v412, %v412
  %v429 = vpack.c.b16 %v413, %v413
  %v430 = vpack.c.b16 %v414, %v414
  %v431 = vpack.c.b16 %v415, %v415
  %v432 = vpack.c.b16 %v416, %v416
  %v433 = vpack.c.b16 %v417, %v417
  %v434 = vpack.c.b16 %v418, %v418
  %v435 = vpack.c.b16 %v419, %v419
  %v436 = vpack.c.b16 %v420, %v420
  %v437 = vpack.c.b16 %v421, %v421
  %v438 = vpack.c.b16 %v422, %v422
  %vm455 = vcmask 257024
  %456 = vst.msk [vmem:[%s3] sm:$0xf] %vm455, %v423
  %457 = vst.msk [vmem:[%s3 + $0x4] sm:$0xf] %vm455, %v424
  %458 = vst.msk [vmem:[%s3 + $0x8] sm:$0xf] %vm455, %v425
  %459 = vst.msk [vmem:[%s3 + $0xc] sm:$0xf] %vm455, %v426
  %460 = vst.msk [vmem:[%s3 + $0x10] sm:$0xf] %vm455, %v427
  %461 = vst.msk [vmem:[%s3 + $0x14] sm:$0xf] %vm455, %v428
  %462 = vst.msk [vmem:[%s3 + $0x18] sm:$0xf] %vm455, %v429
  %463 = vst.msk [vmem:[%s3 + $0x1c] sm:$0xf] %vm455, %v430
  %464 = vst.msk [vmem:[%s3 + $0x20] sm:$0xf] %vm455, %v431
  %465 = vst.msk [vmem:[%s3 + $0x24] sm:$0xf] %vm455, %v432
  %466 = vst.msk [vmem:[%s3 + $0x28] sm:$0xf] %vm455, %v433
  %467 = vst.msk [vmem:[%s3 + $0x2c] sm:$0xf] %vm455, %v434
  %468 = vst.msk [vmem:[%s3 + $0x30] sm:$0xf] %vm455, %v435
  %469 = vst.msk [vmem:[%s3 + $0x34] sm:$0xf] %vm455, %v436
  %470 = vst.msk [vmem:[%s3 + $0x38] sm:$0xf] %vm455, %v437
  %471 = vst.msk [vmem:[%s3 + $0x3c] sm:$0xf] %vm455, %v438
  // Predicated region
  $region14: #{discriminator_forward.7} parent=0 // pred_check
    _
  $region15: #{discriminator_forward.7} parent=0 // pred_check_branch
    %473 = sbr.rel (0) target = $region17
  $region16: #{discriminator_forward.7} parent=0 // pred_region
    _
  $region17: #{discriminator_forward.7} parent=0 // pred_fallthru
    _
  // Predicated region
  $region18: #{discriminator_forward.7} parent=0 // pred_check
    _
  $region19: #{discriminator_forward.7} parent=0 // pred_check_branch
    %475 = sbr.rel (0) target = $region21
  $region20: #{discriminator_forward.7} parent=0 // pred_region
    _
  $region21: #{discriminator_forward.7} parent=0 // pred_fallthru
    _

// kernel: discriminator_forward.9
$region0: #{discriminator_forward.9}
  #allocation0 [shape = 'u32[]', space=smem, size = 0x4, offset = 0x4, fixed_abs, tag = 'smem constant byte address 0x4 - core index']
  #allocation1 [shape = 'u32[144,128]{1,0:T(1,128)}', space=vmem, size = 0x12000, scoped, tag = 'internal scratch']
  #allocation2 [shape = 'f32[1,1]{1,0:T(1,128)S(1)}', space=vmem, size = 0x200, scoped, tag = 'scoped memory for discriminator_forward.9']
  %s0 = inlined_call_operand.vmem [shape: bf16[2,1024], index: 0, kind: input, shape index: {}]
  %s1 = inlined_call_operand.vmem [shape: f32[1,1024], index: 1, kind: input, shape index: {}]
  %s2 = inlined_call_operand.<no memory space> [shape: f32[1,1], index: 2, kind: input, shape index: {}]
  %s3 = inlined_call_operand.vmem [shape: f32[2,1], index: 3, kind: output, shape index: {}]
  %s4 = sld [smem:[#allocation0]]
  $region22: #{discriminator_forward.9} parent=0
    _
  %s6 = ssub.s32 1, %s4
  %s7 = scalar_select 0, %s6, %s4
  %v8 = vstv %s2
  %9 = vst [vmem:[#allocation2] sm:$0x1] %v8
  // Predicated region
  $region2: #{discriminator_forward.9} parent=0 // pred_check
    _
  $region3: #{discriminator_forward.9} parent=0 // pred_check_branch
    %11 = sbr.rel (0) target = $region5
  $region4: #{discriminator_forward.9} parent=0 // pred_region
    _
  $region5: #{discriminator_forward.9} parent=0 // pred_fallthru
    _
  // Predicated region
  $region6: #{discriminator_forward.9} parent=0 // pred_check
    _
  $region7: #{discriminator_forward.9} parent=0 // pred_check_branch
    %13 = sbr.rel (0) target = $region9
  $region8: #{discriminator_forward.9} parent=0 // pred_region
    _
  $region9: #{discriminator_forward.9} parent=0 // pred_fallthru
    _
  // Predicated region
  $region10: #{discriminator_forward.9} parent=0 // pred_check
    _
  $region11: #{discriminator_forward.9} parent=0 // pred_check_branch
    %15 = sbr.rel (0) target = $region13
  $region12: #{discriminator_forward.9} parent=0 // pred_region
    _
  $region13: #{discriminator_forward.9} parent=0 // pred_fallthru
    _
  %v16 = vld [vmem:[%s0] sm:$0xff]
  %v17 = vunpack.c.l.bf16 %v16
  %v18 = vunpack.c.h.bf16 %v16
  %v19 = vld [vmem:[%s1] sm:$0xff]
  %v21 = vlaneseq
  %v22 = vshrl.u32 %v21, 7
  %v23 = vsub.s32 0, %v22
  %v24 = vrot.slane %v19, %v23
  %v25 = vlaneseq
  %v26 = vshrl.u32 %v25, 7
  %v27 = vsub.s32 1, %v26
  %v28 = vrot.slane %v19, %v27
  %v29 = vlaneseq
  %v30 = vshrl.u32 %v29, 7
  %v31 = vsub.s32 2, %v30
  %v32 = vrot.slane %v19, %v31
  %v33 = vlaneseq
  %v34 = vshrl.u32 %v33, 7
  %v35 = vsub.s32 3, %v34
  %v36 = vrot.slane %v19, %v35
  %v37 = vlaneseq
  %v38 = vshrl.u32 %v37, 7
  %v39 = vsub.s32 4, %v38
  %v40 = vrot.slane %v19, %v39
  %v41 = vlaneseq
  %v42 = vshrl.u32 %v41, 7
  %v43 = vsub.s32 5, %v42
  %v44 = vrot.slane %v19, %v43
  %v45 = vlaneseq
  %v46 = vshrl.u32 %v45, 7
  %v47 = vsub.s32 6, %v46
  %v48 = vrot.slane %v19, %v47
  %v49 = vlaneseq
  %v50 = vshrl.u32 %v49, 7
  %v51 = vsub.s32 7, %v50
  %v52 = vrot.slane %v19, %v51
  %v53 = vcombine.low %v24, %v28
  %v54 = vcombine.low %v32, %v36
  %v56 = vunpack.c.l.s4 1983009808
  %v57 = vunpack.c.0.s8 %v56
  %v58 = vlaneseq
  %v59 = vshrl.u32 %v58, 7
  %v60 = vsub.s32 %v57, %v59
  %v61 = vrot.slane %v53, %v60
  %v63 = vunpack.c.l.s4 1983009808
  %v64 = vunpack.c.0.s8 %v63
  %v65 = vlaneseq
  %v66 = vshrl.u32 %v65, 7
  %v67 = vsub.s32 %v64, %v66
  %v68 = vrot.slane %v54, %v67
  %v69 = vcombine.low %v61, %v68
  %v70 = vcombine.low %v40, %v44
  %v71 = vcombine.low %v48, %v52
  %v73 = vunpack.c.l.s4 1983009808
  %v74 = vunpack.c.0.s8 %v73
  %v75 = vlaneseq
  %v76 = vshrl.u32 %v75, 7
  %v77 = vsub.s32 %v74, %v76
  %v78 = vrot.slane %v70, %v77
  %v80 = vunpack.c.l.s4 1983009808
  %v81 = vunpack.c.0.s8 %v80
  %v82 = vlaneseq
  %v83 = vshrl.u32 %v82, 7
  %v84 = vsub.s32 %v81, %v83
  %v85 = vrot.slane %v71, %v84
  %v86 = vcombine.low %v78, %v85
  %v89 = vmul.f32 %v17, %v69
  %v90 = vmul.f32 %v18, %v86
  %v93 = vcombine.high %v89, %v89
  %v95 = vunpack.c.l.s4 1983009808
  %v96 = vunpack.c.0.s8 %v95
  %v97 = vlaneseq
  %v98 = vshrl.u32 %v97, 7
  %v99 = vsub.s32 %v96, %v98
  %v100 = vrot.slane %v89, %v99
  %v102 = vunpack.c.l.s4 1983009808
  %v103 = vunpack.c.0.s8 %v102
  %v104 = vlaneseq
  %v105 = vshrl.u32 %v104, 7
  %v106 = vsub.s32 %v103, %v105
  %v107 = vrot.slane %v93, %v106
  %v108 = vcombine.high %v100, %v100
  %v109 = vcombine.high %v107, %v107
  %v110 = vcombine.high %v90, %v90
  %v112 = vunpack.c.l.s4 1983009808
  %v113 = vunpack.c.0.s8 %v112
  %v114 = vlaneseq
  %v115 = vshrl.u32 %v114, 7
  %v116 = vsub.s32 %v113, %v115
  %v117 = vrot.slane %v90, %v116
  %v119 = vunpack.c.l.s4 1983009808
  %v120 = vunpack.c.0.s8 %v119
  %v121 = vlaneseq
  %v122 = vshrl.u32 %v121, 7
  %v123 = vsub.s32 %v120, %v122
  %v124 = vrot.slane %v110, %v123
  %v125 = vcombine.high %v117, %v117
  %v126 = vcombine.high %v124, %v124
  %vm135 = vcmask 1041408
  %v136 = vsel %vm135, %v100, 0.0
  %v137 = vsel %vm135, %v108, 0.0
  %v138 = vadd.f32 %v136, %v137
  %v139 = vsel %vm135, %v107, 0.0
  %v140 = vadd.f32 %v138, %v139
  %v141 = vsel %vm135, %v109, 0.0
  %v142 = vadd.f32 %v140, %v141
  %v143 = vsel %vm135, %v117, 0.0
  %v144 = vadd.f32 %v142, %v143
  %v145 = vsel %vm135, %v125, 0.0
  %v146 = vadd.f32 %v144, %v145
  %v147 = vsel %vm135, %v124, 0.0
  %v148 = vadd.f32 %v146, %v147
  %v149 = vsel %vm135, %v126, 0.0
  %v150 = vadd.f32 %v148, %v149
  %151 = vadd.xlane.f32.xlu0 %v150
  %v152 = vpop.xlane.xlu0 %151
  %v153 = vld [vmem:[#allocation2] sm:$0x1]
  %v155 = vlaneseq
  %v156 = vshrl.u32 %v155, 7
  %v157 = vsub.s32 0, %v156
  %v158 = vrot.slane %v153, %v157
  %v160 = vadd.f32 %v152, %v158
  %vm161 = vcmask 1024
  %162 = vst.msk [vmem:[%s3] sm:$0x3] %vm161, %v160
  // Predicated region
  $region14: #{discriminator_forward.9} parent=0 // pred_check
    _
  $region15: #{discriminator_forward.9} parent=0 // pred_check_branch
    %164 = sbr.rel (0) target = $region17
  $region16: #{discriminator_forward.9} parent=0 // pred_region
    _
  $region17: #{discriminator_forward.9} parent=0 // pred_fallthru
    _
  // Predicated region
  $region18: #{discriminator_forward.9} parent=0 // pred_check
    _
  $region19: #{discriminator_forward.9} parent=0 // pred_check_branch
    %166 = sbr.rel (0) target = $region21
  $region20: #{discriminator_forward.9} parent=0 // pred_region
    _
  $region21: #{discriminator_forward.9} parent=0 // pred_fallthru
    _

// kernel: discriminator_forward.8
$region0: #{discriminator_forward.8}
  #allocation0 [shape = 'u32[]', space=smem, size = 0x4, offset = 0x4, fixed_abs, tag = 'smem constant byte address 0x4 - core index']
  #allocation1 [shape = 'u32[144,128]{1,0:T(1,128)}', space=vmem, size = 0x12000, scoped, tag = 'internal scratch']
  %s0 = inlined_call_operand.vmem [shape: bf16[32,512], index: 0, kind: input, shape index: {}]
  %s1 = inlined_call_operand.vmem [shape: bf16[512,64], index: 1, kind: input, shape index: {}]
  %s2 = inlined_call_operand.vmem [shape: f32[1,64], index: 2, kind: input, shape index: {}]
  %s3 = inlined_call_operand.vmem [shape: bf16[32,64], index: 3, kind: output, shape index: {}]
  %s4 = sld [smem:[#allocation0]]
  $region22: #{discriminator_forward.8} parent=0
    _
  %s6 = ssub.s32 1, %s4
  %s7 = scalar_select 0, %s6, %s4
  // Predicated region
  $region2: #{discriminator_forward.8} parent=0 // pred_check
    _
  $region3: #{discriminator_forward.8} parent=0 // pred_check_branch
    %9 = sbr.rel (0) target = $region5
  $region4: #{discriminator_forward.8} parent=0 // pred_region
    _
  $region5: #{discriminator_forward.8} parent=0 // pred_fallthru
    _
  // Predicated region
  $region6: #{discriminator_forward.8} parent=0 // pred_check
    _
  $region7: #{discriminator_forward.8} parent=0 // pred_check_branch
    %11 = sbr.rel (0) target = $region9
  $region8: #{discriminator_forward.8} parent=0 // pred_region
    _
  $region9: #{discriminator_forward.8} parent=0 // pred_fallthru
    _
  // Predicated region
  $region10: #{discriminator_forward.8} parent=0 // pred_check
    _
  $region11: #{discriminator_forward.8} parent=0 // pred_check_branch
    %13 = sbr.rel (0) target = $region13
  $region12: #{discriminator_forward.8} parent=0 // pred_region
    _
  $region13: #{discriminator_forward.8} parent=0 // pred_fallthru
    _
  %v15 = vld [vmem:[%s0] sm:$0xff]
  %v16 = vld [vmem:[%s0 + $0x8] sm:$0xff]
  %v17 = vld [vmem:[%s0 + $0x10] sm:$0xff]
  %v18 = vld [vmem:[%s0 + $0x18] sm:$0xff]
  %v19 = vld [vmem:[%s0 + $0x20] sm:$0xff]
  %v20 = vld [vmem:[%s0 + $0x28] sm:$0xff]
  %v21 = vld [vmem:[%s0 + $0x30] sm:$0xff]
  %v22 = vld [vmem:[%s0 + $0x38] sm:$0xff]
  %v23 = vld [vmem:[%s1] sm:$0xf]
  %v24 = vld [vmem:[%s1 + $0x4] sm:$0xf]
  %v25 = vld [vmem:[%s1 + $0x8] sm:$0xf]
  %v26 = vld [vmem:[%s1 + $0xc] sm:$0xf]
  %v27 = vld [vmem:[%s1 + $0x10] sm:$0xf]
  %v28 = vld [vmem:[%s1 + $0x14] sm:$0xf]
  %v29 = vld [vmem:[%s1 + $0x18] sm:$0xf]
  %v30 = vld [vmem:[%s1 + $0x1c] sm:$0xf]
  %v31 = vld [vmem:[%s1 + $0x20] sm:$0xf]
  %v32 = vld [vmem:[%s1 + $0x24] sm:$0xf]
  %v33 = vld [vmem:[%s1 + $0x28] sm:$0xf]
  %v34 = vld [vmem:[%s1 + $0x2c] sm:$0xf]
  %v35 = vld [vmem:[%s1 + $0x30] sm:$0xf]
  %v36 = vld [vmem:[%s1 + $0x34] sm:$0xf]
  %v37 = vld [vmem:[%s1 + $0x38] sm:$0xf]
  %v38 = vld [vmem:[%s1 + $0x3c] sm:$0xf]
  %v39 = vld [vmem:[%s1 + $0x40] sm:$0xf]
  %v40 = vld [vmem:[%s1 + $0x44] sm:$0xf]
  %v41 = vld [vmem:[%s1 + $0x48] sm:$0xf]
  %v42 = vld [vmem:[%s1 + $0x4c] sm:$0xf]
  %v43 = vld [vmem:[%s1 + $0x50] sm:$0xf]
  %v44 = vld [vmem:[%s1 + $0x54] sm:$0xf]
  %v45 = vld [vmem:[%s1 + $0x58] sm:$0xf]
  %v46 = vld [vmem:[%s1 + $0x5c] sm:$0xf]
  %v47 = vld [vmem:[%s1 + $0x60] sm:$0xf]
  %v48 = vld [vmem:[%s1 + $0x64] sm:$0xf]
  %v49 = vld [vmem:[%s1 + $0x68] sm:$0xf]
  %v50 = vld [vmem:[%s1 + $0x6c] sm:$0xf]
  %v51 = vld [vmem:[%s1 + $0x70] sm:$0xf]
  %v52 = vld [vmem:[%s1 + $0x74] sm:$0xf]
  %v53 = vld [vmem:[%s1 + $0x78] sm:$0xf]
  %v54 = vld [vmem:[%s1 + $0x7c] sm:$0xf]
  %v55 = vld [vmem:[%s1 + $0x80] sm:$0xf]
  %v56 = vld [vmem:[%s1 + $0x84] sm:$0xf]
  %v57 = vld [vmem:[%s1 + $0x88] sm:$0xf]
  %v58 = vld [vmem:[%s1 + $0x8c] sm:$0xf]
  %v59 = vld [vmem:[%s1 + $0x90] sm:$0xf]
  %v60 = vld [vmem:[%s1 + $0x94] sm:$0xf]
  %v61 = vld [vmem:[%s1 + $0x98] sm:$0xf]
  %v62 = vld [vmem:[%s1 + $0x9c] sm:$0xf]
  %v63 = vld [vmem:[%s1 + $0xa0] sm:$0xf]
  %v64 = vld [vmem:[%s1 + $0xa4] sm:$0xf]
  %v65 = vld [vmem:[%s1 + $0xa8] sm:$0xf]
  %v66 = vld [vmem:[%s1 + $0xac] sm:$0xf]
  %v67 = vld [vmem:[%s1 + $0xb0] sm:$0xf]
  %v68 = vld [vmem:[%s1 + $0xb4] sm:$0xf]
  %v69 = vld [vmem:[%s1 + $0xb8] sm:$0xf]
  %v70 = vld [vmem:[%s1 + $0xbc] sm:$0xf]
  %v71 = vld [vmem:[%s1 + $0xc0] sm:$0xf]
  %v72 = vld [vmem:[%s1 + $0xc4] sm:$0xf]
  %v73 = vld [vmem:[%s1 + $0xc8] sm:$0xf]
  %v74 = vld [vmem:[%s1 + $0xcc] sm:$0xf]
  %v75 = vld [vmem:[%s1 + $0xd0] sm:$0xf]
  %v76 = vld [vmem:[%s1 + $0xd4] sm:$0xf]
  %v77 = vld [vmem:[%s1 + $0xd8] sm:$0xf]
  %v78 = vld [vmem:[%s1 + $0xdc] sm:$0xf]
  %v79 = vld [vmem:[%s1 + $0xe0] sm:$0xf]
  %v80 = vld [vmem:[%s1 + $0xe4] sm:$0xf]
  %v81 = vld [vmem:[%s1 + $0xe8] sm:$0xf]
  %v82 = vld [vmem:[%s1 + $0xec] sm:$0xf]
  %v83 = vld [vmem:[%s1 + $0xf0] sm:$0xf]
  %v84 = vld [vmem:[%s1 + $0xf4] sm:$0xf]
  %v85 = vld [vmem:[%s1 + $0xf8] sm:$0xf]
  %v86 = vld [vmem:[%s1 + $0xfc] sm:$0xf]
  %v87 = vld [vmem:[%s2] sm:$0x1]
  %v89 = vlaneseq
  %v90 = vshrl.u32 %v89, 7
  %v91 = vsub.s32 0, %v90
  %v92 = vrot.slane %v87, %v91
  %v102 = vunpack.c.l.b16 %v15
  %v103 = vunpack.c.h.b16 %v15
  %v104 = vunpack.c.l.b16 %v16
  %v105 = vunpack.c.h.b16 %v16
  %v106 = vunpack.c.l.b16 %v17
  %v107 = vunpack.c.h.b16 %v17
  %v108 = vunpack.c.l.b16 %v18
  %v109 = vunpack.c.h.b16 %v18
  %v110 = vunpack.c.l.b16 %v19
  %v111 = vunpack.c.h.b16 %v19
  %v112 = vunpack.c.l.b16 %v20
  %v113 = vunpack.c.h.b16 %v20
  %v114 = vunpack.c.l.b16 %v21
  %v115 = vunpack.c.h.b16 %v21
  %v116 = vunpack.c.l.b16 %v22
  %v117 = vunpack.c.h.b16 %v22
  %v118 = vpack.c.b16 %v106, %v102
  %v119 = vpack.c.b16 %v107, %v103
  %v120 = vpack.c.b16 %v108, %v104
  %v121 = vpack.c.b16 %v109, %v105
  %v122 = vpack.c.b16 %v114, %v110
  %v123 = vpack.c.b16 %v115, %v111
  %v124 = vpack.c.b16 %v116, %v112
  %v125 = vpack.c.b16 %v117, %v113
  %v198 = vunpack.c.l.b16 %v23
  %v199 = vunpack.c.l.b16 %v24
  %v200 = vunpack.c.l.b16 %v25
  %v201 = vunpack.c.l.b16 %v26
  %v202 = vunpack.c.l.b16 %v27
  %v203 = vunpack.c.l.b16 %v28
  %v204 = vunpack.c.l.b16 %v29
  %v205 = vunpack.c.l.b16 %v30
  %v206 = vunpack.c.l.b16 %v31
  %v207 = vunpack.c.l.b16 %v32
  %v208 = vunpack.c.l.b16 %v33
  %v209 = vunpack.c.l.b16 %v34
  %v210 = vunpack.c.l.b16 %v35
  %v211 = vunpack.c.l.b16 %v36
  %v212 = vunpack.c.l.b16 %v37
  %v213 = vunpack.c.l.b16 %v38
  %v214 = vunpack.c.l.b16 %v39
  %v215 = vunpack.c.l.b16 %v40
  %v216 = vunpack.c.l.b16 %v41
  %v217 = vunpack.c.l.b16 %v42
  %v218 = vunpack.c.l.b16 %v43
  %v219 = vunpack.c.l.b16 %v44
  %v220 = vunpack.c.l.b16 %v45
  %v221 = vunpack.c.l.b16 %v46
  %v222 = vunpack.c.l.b16 %v47
  %v223 = vunpack.c.l.b16 %v48
  %v224 = vunpack.c.l.b16 %v49
  %v225 = vunpack.c.l.b16 %v50
  %v226 = vunpack.c.l.b16 %v51
  %v227 = vunpack.c.l.b16 %v52
  %v228 = vunpack.c.l.b16 %v53
  %v229 = vunpack.c.l.b16 %v54
  %v230 = vunpack.c.l.b16 %v55
  %v231 = vunpack.c.l.b16 %v56
  %v232 = vunpack.c.l.b16 %v57
  %v233 = vunpack.c.l.b16 %v58
  %v234 = vunpack.c.l.b16 %v59
  %v235 = vunpack.c.l.b16 %v60
  %v236 = vunpack.c.l.b16 %v61
  %v237 = vunpack.c.l.b16 %v62
  %v238 = vunpack.c.l.b16 %v63
  %v239 = vunpack.c.l.b16 %v64
  %v240 = vunpack.c.l.b16 %v65
  %v241 = vunpack.c.l.b16 %v66
  %v242 = vunpack.c.l.b16 %v67
  %v243 = vunpack.c.l.b16 %v68
  %v244 = vunpack.c.l.b16 %v69
  %v245 = vunpack.c.l.b16 %v70
  %v246 = vunpack.c.l.b16 %v71
  %v247 = vunpack.c.l.b16 %v72
  %v248 = vunpack.c.l.b16 %v73
  %v249 = vunpack.c.l.b16 %v74
  %v250 = vunpack.c.l.b16 %v75
  %v251 = vunpack.c.l.b16 %v76
  %v252 = vunpack.c.l.b16 %v77
  %v253 = vunpack.c.l.b16 %v78
  %v254 = vunpack.c.l.b16 %v79
  %v255 = vunpack.c.l.b16 %v80
  %v256 = vunpack.c.l.b16 %v81
  %v257 = vunpack.c.l.b16 %v82
  %v258 = vunpack.c.l.b16 %v83
  %v259 = vunpack.c.l.b16 %v84
  %v260 = vunpack.c.l.b16 %v85
  %v261 = vunpack.c.l.b16 %v86
  %v262 = vpack.c.b16 %v199, %v198
  %v263 = vpack.c.b16 %v201, %v200
  %v264 = vpack.c.b16 %v203, %v202
  %v265 = vpack.c.b16 %v205, %v204
  %v266 = vpack.c.b16 %v207, %v206
  %v267 = vpack.c.b16 %v209, %v208
  %v268 = vpack.c.b16 %v211, %v210
  %v269 = vpack.c.b16 %v213, %v212
  %v270 = vpack.c.b16 %v215, %v214
  %v271 = vpack.c.b16 %v217, %v216
  %v272 = vpack.c.b16 %v219, %v218
  %v273 = vpack.c.b16 %v221, %v220
  %v274 = vpack.c.b16 %v223, %v222
  %v275 = vpack.c.b16 %v225, %v224
  %v276 = vpack.c.b16 %v227, %v226
  %v277 = vpack.c.b16 %v229, %v228
  %v278 = vpack.c.b16 %v231, %v230
  %v279 = vpack.c.b16 %v233, %v232
  %v280 = vpack.c.b16 %v235, %v234
  %v281 = vpack.c.b16 %v237, %v236
  %v282 = vpack.c.b16 %v239, %v238
  %v283 = vpack.c.b16 %v241, %v240
  %v284 = vpack.c.b16 %v243, %v242
  %v285 = vpack.c.b16 %v245, %v244
  %v286 = vpack.c.b16 %v247, %v246
  %v287 = vpack.c.b16 %v249, %v248
  %v288 = vpack.c.b16 %v251, %v250
  %v289 = vpack.c.b16 %v253, %v252
  %v290 = vpack.c.b16 %v255, %v254
  %v291 = vpack.c.b16 %v257, %v256
  %v292 = vpack.c.b16 %v259, %v258
  %v293 = vpack.c.b16 %v261, %v260
  %326 = vmatprep.subr.bf16.mxu0 0
  %327 = vmatpush1.bf16.msra.mxu0 %v269
  %328 = vmatprep.subr.bf16.mxu0 0
  %329 = vmatpush1.bf16.msra.mxu0 %v268
  %330 = vmatprep.subr.bf16.mxu0 0
  %331 = vmatpush1.bf16.msra.mxu0 %v267
  %332 = vmatprep.subr.bf16.mxu0 0
  %333 = vmatpush1.bf16.msra.mxu0 %v266
  %334 = vmatprep.subr.bf16.mxu0 0
  %335 = vmatpush1.bf16.msra.mxu0 %v265
  %336 = vmatprep.subr.bf16.mxu0 0
  %337 = vmatpush1.bf16.msra.mxu0 %v264
  %338 = vmatprep.subr.bf16.mxu0 0
  %339 = vmatpush1.bf16.msra.mxu0 %v263
  %340 = vmatprep.subr.bf16.mxu0 0
  %341 = vmatpush1.bf16.msra.mxu0 %v262
  %342 = vmatprep.subr.bf16.mxu0 0
  %343 = vmatpush2.bf16.msra.mxu0 %v277
  %344 = vmatprep.subr.bf16.mxu0 0
  %345 = vmatpush2.bf16.msra.mxu0 %v276
  %346 = vmatprep.subr.bf16.mxu0 0
  %347 = vmatpush2.bf16.msra.mxu0 %v275
  %348 = vmatprep.subr.bf16.mxu0 0
  %349 = vmatpush2.bf16.msra.mxu0 %v274
  %350 = vmatprep.subr.bf16.mxu0 0
  %351 = vmatpush2.bf16.msra.mxu0 %v273
  %352 = vmatprep.subr.bf16.mxu0 0
  %353 = vmatpush2.bf16.msra.mxu0 %v272
  %354 = vmatprep.subr.bf16.mxu0 0
  %355 = vmatpush2.bf16.msra.mxu0 %v271
  %356 = vmatprep.subr.bf16.mxu0 0
  %357 = vmatpush2.bf16.msra.mxu0 %v270
  %358 = vmatprep.mubr.bf16.mxu0 %v119
  %359 = vmatmul.mubr.bf16.gmra.mxu0 %v118
  %v360 = vpop.f32.mrf.mxu0
  %v361 = vadd.f32 %v92, %v360
  %v362 = vpop.f32.mrf.mxu0
  %v363 = vpop.f32.mrf.mxu0
  %v364 = vadd.f32 %v92, %v363
  %v365 = vpop.f32.mrf.mxu0
  %366 = vmatprep.mubr.bf16.mxu0 %v123
  %367 = vmatmul.mubr.bf16.gmra.mxu0 %v122
  %v368 = vpop.f32.mrf.mxu0
  %v369 = vadd.f32 %v92, %v368
  %v370 = vpop.f32.mrf.mxu0
  %v371 = vpop.f32.mrf.mxu0
  %v372 = vadd.f32 %v92, %v371
  %v373 = vpop.f32.mrf.mxu0
  %374 = vdwg.mxu0
  %375 = vmatprep.subr.bf16.mxu0 0
  %376 = vmatpush1.bf16.msra.mxu0 %v285
  %377 = vmatprep.subr.bf16.mxu0 0
  %378 = vmatpush1.bf16.msra.mxu0 %v284
  %379 = vmatprep.subr.bf16.mxu0 0
  %380 = vmatpush1.bf16.msra.mxu0 %v283
  %381 = vmatprep.subr.bf16.mxu0 0
  %382 = vmatpush1.bf16.msra.mxu0 %v282
  %383 = vmatprep.subr.bf16.mxu0 0
  %384 = vmatpush1.bf16.msra.mxu0 %v281
  %385 = vmatprep.subr.bf16.mxu0 0
  %386 = vmatpush1.bf16.msra.mxu0 %v280
  %387 = vmatprep.subr.bf16.mxu0 0
  %388 = vmatpush1.bf16.msra.mxu0 %v279
  %389 = vmatprep.subr.bf16.mxu0 0
  %390 = vmatpush1.bf16.msra.mxu0 %v278
  %391 = vmatprep.subr.bf16.mxu0 0
  %392 = vmatpush2.bf16.msra.mxu0 %v293
  %393 = vmatprep.subr.bf16.mxu0 0
  %394 = vmatpush2.bf16.msra.mxu0 %v292
  %395 = vmatprep.subr.bf16.mxu0 0
  %396 = vmatpush2.bf16.msra.mxu0 %v291
  %397 = vmatprep.subr.bf16.mxu0 0
  %398 = vmatpush2.bf16.msra.mxu0 %v290
  %399 = vmatprep.subr.bf16.mxu0 0
  %400 = vmatpush2.bf16.msra.mxu0 %v289
  %401 = vmatprep.subr.bf16.mxu0 0
  %402 = vmatpush2.bf16.msra.mxu0 %v288
  %403 = vmatprep.subr.bf16.mxu0 0
  %404 = vmatpush2.bf16.msra.mxu0 %v287
  %405 = vmatprep.subr.bf16.mxu0 0
  %406 = vmatpush2.bf16.msra.mxu0 %v286
  %407 = vmatprep.mubr.bf16.mxu0 %v121
  %408 = vmatmul.mubr.bf16.gmra.mxu0 %v120
  %v409 = vpop.f32.mrf.mxu0
  %v410 = vadd.f32 %v361, %v409
  %v411 = vpop.f32.mrf.mxu0
  %v412 = vpop.f32.mrf.mxu0
  %v413 = vadd.f32 %v364, %v412
  %v414 = vpop.f32.mrf.mxu0
  %415 = vmatprep.mubr.bf16.mxu0 %v125
  %416 = vmatmul.mubr.bf16.gmra.mxu0 %v124
  %v417 = vpop.f32.mrf.mxu0
  %v418 = vadd.f32 %v369, %v417
  %v419 = vpop.f32.mrf.mxu0
  %v420 = vpop.f32.mrf.mxu0
  %v421 = vadd.f32 %v372, %v420
  %v422 = vpop.f32.mrf.mxu0
  %423 = vdwg.mxu0
  %vm424 = vcmp.gt.f32.partialorder %v410, 0.0
  %vm425 = vcmp.gt.f32.partialorder %v413, 0.0
  %vm426 = vcmp.gt.f32.partialorder %v418, 0.0
  %vm427 = vcmp.gt.f32.partialorder %v421, 0.0
  %v428 = vmul.f32 %v410, 0.1
  %v429 = vmul.f32 %v413, 0.1
  %v430 = vmul.f32 %v418, 0.1
  %v431 = vmul.f32 %v421, 0.1
  %v432 = vsel %vm424, %v410, %v428
  %v433 = vsel %vm425, %v413, %v429
  %v434 = vsel %vm426, %v418, %v430
  %v435 = vsel %vm427, %v421, %v431
  %v436 = vpack.c.bf16 %v433, %v432
  %v437 = vpack.c.bf16 %v435, %v434
  %v440 = vunpack.c.l.b16 %v436
  %v441 = vunpack.c.h.b16 %v436
  %v442 = vunpack.c.l.b16 %v437
  %v443 = vunpack.c.h.b16 %v437
  %v444 = vpack.c.b16 %v440, %v440
  %v445 = vpack.c.b16 %v441, %v441
  %v446 = vpack.c.b16 %v442, %v442
  %v447 = vpack.c.b16 %v443, %v443
  %vm452 = vcmask 519168
  %453 = vst.msk [vmem:[%s3] sm:$0xf] %vm452, %v444
  %454 = vst.msk [vmem:[%s3 + $0x4] sm:$0xf] %vm452, %v445
  %455 = vst.msk [vmem:[%s3 + $0x8] sm:$0xf] %vm452, %v446
  %456 = vst.msk [vmem:[%s3 + $0xc] sm:$0xf] %vm452, %v447
  // Predicated region
  $region14: #{discriminator_forward.8} parent=0 // pred_check
    _
  $region15: #{discriminator_forward.8} parent=0 // pred_check_branch
    %458 = sbr.rel (0) target = $region17
  $region16: #{discriminator_forward.8} parent=0 // pred_region
    _
  $region17: #{discriminator_forward.8} parent=0 // pred_fallthru
    _
  // Predicated region
  $region18: #{discriminator_forward.8} parent=0 // pred_check
    _
  $region19: #{discriminator_forward.8} parent=0 // pred_check_branch
    %460 = sbr.rel (0) target = $region21
  $region20: #{discriminator_forward.8} parent=0 // pred_region
    _
  $region21: #{discriminator_forward.8} parent=0 // pred_fallthru
    _

</llo_original>
